<compile_context>
chip_gen: v6e
topology: v6e:2x2x1
jax: 0.10.0
libtpu: 0.0.40
codegen_flags: <defaults>
</compile_context>

<pallas_src>
import functools

import jax
import jax.numpy as jnp
from jax import lax
from jax.experimental import pallas as pl
from jax.experimental.pallas import tpu as pltpu


def _single_conv_kernel(x_ref, w_ref, pg_ref, mask_ref, o_ref, col_ref, *,
                        hp_wp, wp, p, c_in_p, num_groups, inv_count, eps):
    """One batch sample: im2col + one big-K conv matmul + GroupNorm + ReLU.

    x_ref:    (1, C_in_p, L)      bf16 zero-padded input, L = Dp*Hp*Wp
    w_ref:    (C_out, 27*C_in_p)  bf16 lane-dense weights; col t*C_in_p + c holds
                                  w[o, c, kd, kh, kw] with t = kd*9 + kh*3 + kw
    pg_ref:   (C_out, 3)          f32 columns = [conv bias, gn weight, gn bias]
    mask_ref: (1, P)              f32, 1.0 where the shifted row is a real voxel
    o_ref:    (1, C_out, P)       f32 output
    col_ref:  (27*C_in_p, P)      bf16 VMEM scratch (im2col slab)
    """
    c_out = w_ref.shape[0]
    cpg = c_out // num_groups

    # --- im2col: copy the 27 contiguous tap windows once.  Lane-misaligned shift
    #     is paid here (copy pass), sublane offsets are multiples of 16 (bf16 tile).
    t = 0
    for kd in range(3):
        for kh in range(3):
            for kw in range(3):
                off = kd * hp_wp + kh * wp + kw                 # static python int
                col_ref[t * c_in_p:(t + 1) * c_in_p, :] = x_ref[0, :, off:off + p]
                t += 1

    # --- 3x3x3 conv == ONE bf16 MXU matmul with K = 27*C_in_p, f32 accumulation.
    acc = jnp.dot(w_ref[...], col_ref[...],
                  preferred_element_type=jnp.float32)           # (C_out, P) f32
    acc = acc + pg_ref[:, 0:1]                                  # conv bias

    # --- GroupNorm stats over valid voxels only (am reused for both moments).
    mask = mask_ref[...]                                        # (1, P)
    am = acc * mask
    s1 = jnp.sum(am, axis=1, keepdims=True)                     # (C_out, 1)
    s2 = jnp.sum(am * acc, axis=1, keepdims=True)               # (C_out, 1)

    # per-group combine + broadcast back: VPU/XLU only (no MXU, no reshapes).
    row_id = lax.broadcasted_iota(jnp.int32, (c_out, 1), 0)
    mean_c = jnp.zeros((c_out, 1), jnp.float32)
    var_c = jnp.zeros((c_out, 1), jnp.float32)
    for g in range(num_groups):
        in_g = (row_id >= g * cpg) & (row_id < (g + 1) * cpg)   # (C_out, 1) bool
        gs1 = jnp.sum(jnp.where(in_g, s1, 0.0), axis=0, keepdims=True)  # (1, 1)
        gs2 = jnp.sum(jnp.where(in_g, s2, 0.0), axis=0, keepdims=True)  # (1, 1)
        m = gs1 * inv_count
        v = gs2 * inv_count - m * m                             # biased var (torch GN)
        mean_c = jnp.where(in_g, m, mean_c)
        var_c = jnp.where(in_g, v, var_c)
    inv_c = lax.rsqrt(var_c + eps)                              # EUP

    scale = pg_ref[:, 1:2] * inv_c                              # gamma / sigma
    shift = pg_ref[:, 2:3] - mean_c * scale                     # beta - mu*gamma/sigma

    # --- normalize + affine + ReLU; zero the padding-position rows in-kernel so
    #     out_flat never carries garbage (wrapper crop is then purely layout).
    o_ref[0, :, :] = jnp.maximum(acc * scale + shift, 0.0) * mask


def single_conv_forward(x, params, *, num_groups=4, eps=1e-5):
    """x: (N, C_in, D, H, W) float. Returns (N, C_out, D, H, W) float32."""
    n, c_in, d, h, w = x.shape
    w_conv = params["conv_w"]                 # (C_out, C_in, 3, 3, 3)
    b_conv = params["conv_b"]                 # (C_out,)
    gamma, beta = params["gn_w"], params["gn_b"]
    c_out = w_conv.shape[0]
    assert c_out % num_groups == 0
    cpg = c_out // num_groups

    dp, hp, wp = d + 2, h + 2, w + 2
    hp_wp = hp * wp
    l = dp * hp_wp                            # flattened padded spatial length
    base = hp_wp + wp + 1                     # padded index of unpadded voxel (0,0,0)
    p = l - 2 * base                          # number of shifted output rows

    # pad channels to a multiple of 16 (bf16 sublane tile) — padded channels are
    # zero in both x and the weights, so they contribute nothing.
    c_in_p = ((c_in + 15) // 16) * 16
    k_dim = 27 * c_in_p

    # single fused pad (channel + spatial halo), bf16 for the MXU / half the DMA.
    x_pad = jnp.pad(x.astype(jnp.bfloat16),
                    ((0, 0), (0, c_in_p - c_in), (1, 1), (1, 1), (1, 1)))
    x_flat = x_pad.reshape(n, c_in_p, l)

    # lane-dense weights: (C_out, 27*C_in_p), column t*C_in_p + c, t = kd*9+kh*3+kw.
    w_p = jnp.pad(w_conv.astype(jnp.float32),
                  ((0, 0), (0, c_in_p - c_in), (0, 0), (0, 0), (0, 0)))
    w_flat = jnp.transpose(w_p, (0, 2, 3, 4, 1)).reshape(c_out, k_dim)
    w_flat = w_flat.astype(jnp.bfloat16)

    # merged per-channel params: [:, 0]=conv bias, [:, 1]=gn weight, [:, 2]=gn bias.
    pg = jnp.stack([b_conv, gamma, beta], axis=1).astype(jnp.float32)   # (C_out, 3)

    # validity mask over the P shifted rows (1 where the row is a real voxel).
    q = base + jnp.arange(p)
    wi = q % wp
    hi = (q // wp) % hp
    di = q // hp_wp
    valid = ((di >= 1) & (di <= d) & (hi >= 1) & (hi <= h) & (wi >= 1) & (wi <= w))
    mask = valid.astype(jnp.float32).reshape(1, p)

    inv_count = 1.0 / float(d * h * w * cpg)

    kernel = functools.partial(_single_conv_kernel, hp_wp=hp_wp, wp=wp, p=p,
                               c_in_p=c_in_p, num_groups=num_groups,
                               inv_count=inv_count, eps=float(eps))

    out_flat = pl.pallas_call(
        kernel,
        out_shape=jax.ShapeDtypeStruct((n, c_out, p), jnp.float32),
        grid=(n,),
        in_specs=[
            pl.BlockSpec((1, c_in_p, l), lambda i: (i, 0, 0)),   # per-sample x slab
            pl.BlockSpec((c_out, k_dim), lambda i: (0, 0)),      # conv weights
            pl.BlockSpec((c_out, 3), lambda i: (0, 0)),          # bias/gamma/beta
            pl.BlockSpec((1, p), lambda i: (0, 0)),              # validity mask
        ],
        out_specs=pl.BlockSpec((1, c_out, p), lambda i: (i, 0, 0)),
        scratch_shapes=[pltpu.VMEM((k_dim, p), jnp.bfloat16)],   # im2col slab
        compiler_params=pltpu.CompilerParams(
            dimension_semantics=("parallel",),
            vmem_limit_bytes=32 * 1024 * 1024),
    )(x_flat, w_flat, pg, mask)

    # scatter the shifted rows back into the padded volume and crop the halo.
    y = jnp.pad(out_flat, ((0, 0), (0, 0), (base, base)))
    y = y.reshape(n, c_out, dp, hp, wp)[:, :, 1:-1, 1:-1, 1:-1]
    return y


def single_conv_reference(x, params, *, num_groups=4, eps=1e-5):
    """Pure-JAX f32 reference of the torch module (for validation)."""
    y = lax.conv_general_dilated(
        x.astype(jnp.float32), params["conv_w"].astype(jnp.float32),
        window_strides=(1, 1, 1), padding=((1, 1), (1, 1), (1, 1)),
        dimension_numbers=("NCDHW", "OIDHW", "NCDHW"),
        precision=lax.Precision.HIGHEST)
    y = y + params["conv_b"].astype(jnp.float32).reshape(1, -1, 1, 1, 1)
    n, c, d, h, w = y.shape
    g = num_groups
    yg = y.reshape(n, g, c // g, d, h, w)
    mean = yg.mean(axis=(2, 3, 4, 5), keepdims=True)
    var = yg.var(axis=(2, 3, 4, 5), keepdims=True)
    yn = ((yg - mean) / jnp.sqrt(var + eps)).reshape(n, c, d, h, w)
    yn = (yn * params["gn_w"].reshape(1, -1, 1, 1, 1)
          + params["gn_b"].reshape(1, -1, 1, 1, 1))
    return jnp.maximum(yn, 0.0)


if __name__ == "__main__":
    n, in_ch, out_ch = 2, 4, 8
    d, h, w = 8, 8, 8

    key = jax.random.PRNGKey(0)
    kx, kw_, kb, kg, kbt = jax.random.split(key, 5)
    x = jax.random.normal(kx, (n, in_ch, d, h, w), dtype=jnp.float32)
    params = dict(
        conv_w=0.1 * jax.random.normal(kw_, (out_ch, in_ch, 3, 3, 3), jnp.float32),
        conv_b=0.1 * jax.random.normal(kb, (out_ch,), jnp.float32),
        gn_w=1.0 + 0.1 * jax.random.normal(kg, (out_ch,), jnp.float32),
        gn_b=0.1 * jax.random.normal(kbt, (out_ch,), jnp.float32),
    )

    fwd = jax.jit(functools.partial(single_conv_forward, num_groups=4))
    out = fwd(x, params)
    jax.block_until_ready(out)

    assert out.shape == (n, out_ch, d, h, w)
    assert bool(jnp.all(out >= 0.0))                     # ReLU

    # strict check vs a reference fed the SAME bf16-rounded conv inputs
    # (isolates kernel error from the deliberate bf16 input quantization).
    x_bf = x.astype(jnp.bfloat16).astype(jnp.float32)
    params_bf = dict(params,
                     conv_w=params["conv_w"].astype(jnp.bfloat16).astype(jnp.float32))
    ref_bf = single_conv_reference(x_bf, params_bf, num_groups=4)
    err_bf = float(jnp.max(jnp.abs(out - ref_bf)))
    assert jnp.allclose(out, ref_bf, atol=1e-3, rtol=1e-3), f"bf16-matched err = {err_bf}"

    # looser check vs the full-f32 module semantics (bounds bf16 quantization drift).
    ref_f32 = single_conv_reference(x, params, num_groups=4)
    err_f32 = float(jnp.max(jnp.abs(out - ref_f32)))
    assert jnp.allclose(out, ref_f32, atol=2e-2, rtol=2e-2), f"f32 err = {err_f32}"

    print("KERNEL_OK")
</pallas_src>

<mosaic_0001>
module attributes {stable_mosaic.version = 11 : i64} {
  func.func @_single_conv_kernel(%arg0: i32, %arg1: memref<1x16x1000xbf16, #tpu.memory_space<vmem>>, %arg2: memref<8x432xbf16, #tpu.memory_space<vmem>>, %arg3: memref<8x3xf32, #tpu.memory_space<vmem>>, %arg4: memref<1x778xf32, #tpu.memory_space<vmem>>, %arg5: memref<1x8x778xf32, #tpu.memory_space<vmem>>, %arg6: memref<432x778xbf16, #tpu.memory_space<vmem>>) attributes {dimension_semantics = [#tpu.dimension_semantics<parallel>], iteration_bounds = array<i64: 2>, scalar_prefetch = 0 : i64, scratch_operands = 1 : i64, tpu.core_type = #tpu.core_type<tc>, window_params = [{transform_indices = @transform_0, window_bounds = array<i64: 1, 16, 1000>}, {pipeline_mode = #tpu.pipeline_mode<synchronous>, transform_indices = @transform_1, window_bounds = array<i64: 8, 432>}, {pipeline_mode = #tpu.pipeline_mode<synchronous>, transform_indices = @transform_2, window_bounds = array<i64: 8, 3>}, {pipeline_mode = #tpu.pipeline_mode<synchronous>, transform_indices = @transform_3, window_bounds = array<i64: 1, 778>}, {transform_indices = @transform_4, window_bounds = array<i64: 1, 8, 778>}]} {
    %c0 = arith.constant 0 : index
    %c0_0 = arith.constant 0 : index
    %c0_1 = arith.constant 0 : index
    %0 = vector.load %arg1[%c0, %c0_0, %c0_1] : memref<1x16x1000xbf16, #tpu.memory_space<vmem>>, vector<1x16x778xbf16>
    %1 = vector.shape_cast %0 : vector<1x16x778xbf16> to vector<16x778xbf16>
    %c0_2 = arith.constant 0 : index
    %c0_3 = arith.constant 0 : index
    %2 = vector.load %arg6[%c0_2, %c0_3] : memref<432x778xbf16, #tpu.memory_space<vmem>>, vector<16x778xbf16>
    tpu.vector_store %arg6[%c0_2, %c0_3], %1 {strides = array<i32>} : memref<432x778xbf16, #tpu.memory_space<vmem>>, vector<16x778xbf16>,
    %c0_4 = arith.constant 0 : index
    %c0_5 = arith.constant 0 : index
    %c1 = arith.constant 1 : index
    %3 = vector.load %arg1[%c0_4, %c0_5, %c1] : memref<1x16x1000xbf16, #tpu.memory_space<vmem>>, vector<1x16x778xbf16>
    %4 = vector.shape_cast %3 : vector<1x16x778xbf16> to vector<16x778xbf16>
    %c16 = arith.constant 16 : index
    %c0_6 = arith.constant 0 : index
    %5 = vector.load %arg6[%c16, %c0_6] : memref<432x778xbf16, #tpu.memory_space<vmem>>, vector<16x778xbf16>
    tpu.vector_store %arg6[%c16, %c0_6], %4 {strides = array<i32>} : memref<432x778xbf16, #tpu.memory_space<vmem>>, vector<16x778xbf16>,
    %c0_7 = arith.constant 0 : index
    %c0_8 = arith.constant 0 : index
    %c2 = arith.constant 2 : index
    %6 = vector.load %arg1[%c0_7, %c0_8, %c2] : memref<1x16x1000xbf16, #tpu.memory_space<vmem>>, vector<1x16x778xbf16>
    %7 = vector.shape_cast %6 : vector<1x16x778xbf16> to vector<16x778xbf16>
    %c32 = arith.constant 32 : index
    %c0_9 = arith.constant 0 : index
    %8 = vector.load %arg6[%c32, %c0_9] : memref<432x778xbf16, #tpu.memory_space<vmem>>, vector<16x778xbf16>
    tpu.vector_store %arg6[%c32, %c0_9], %7 {strides = array<i32>} : memref<432x778xbf16, #tpu.memory_space<vmem>>, vector<16x778xbf16>,
    %c0_10 = arith.constant 0 : index
    %c0_11 = arith.constant 0 : index
    %c10 = arith.constant 10 : index
    %9 = vector.load %arg1[%c0_10, %c0_11, %c10] : memref<1x16x1000xbf16, #tpu.memory_space<vmem>>, vector<1x16x778xbf16>
    %10 = vector.shape_cast %9 : vector<1x16x778xbf16> to vector<16x778xbf16>
    %c48 = arith.constant 48 : index
    %c0_12 = arith.constant 0 : index
    %11 = vector.load %arg6[%c48, %c0_12] : memref<432x778xbf16, #tpu.memory_space<vmem>>, vector<16x778xbf16>
    tpu.vector_store %arg6[%c48, %c0_12], %10 {strides = array<i32>} : memref<432x778xbf16, #tpu.memory_space<vmem>>, vector<16x778xbf16>,
    %c0_13 = arith.constant 0 : index
    %c0_14 = arith.constant 0 : index
    %c11 = arith.constant 11 : index
    %12 = vector.load %arg1[%c0_13, %c0_14, %c11] : memref<1x16x1000xbf16, #tpu.memory_space<vmem>>, vector<1x16x778xbf16>
    %13 = vector.shape_cast %12 : vector<1x16x778xbf16> to vector<16x778xbf16>
    %c64 = arith.constant 64 : index
    %c0_15 = arith.constant 0 : index
    %14 = vector.load %arg6[%c64, %c0_15] : memref<432x778xbf16, #tpu.memory_space<vmem>>, vector<16x778xbf16>
    tpu.vector_store %arg6[%c64, %c0_15], %13 {strides = array<i32>} : memref<432x778xbf16, #tpu.memory_space<vmem>>, vector<16x778xbf16>,
    %c0_16 = arith.constant 0 : index
    %c0_17 = arith.constant 0 : index
    %c12 = arith.constant 12 : index
    %15 = vector.load %arg1[%c0_16, %c0_17, %c12] : memref<1x16x1000xbf16, #tpu.memory_space<vmem>>, vector<1x16x778xbf16>
    %16 = vector.shape_cast %15 : vector<1x16x778xbf16> to vector<16x778xbf16>
    %c80 = arith.constant 80 : index
    %c0_18 = arith.constant 0 : index
    %17 = vector.load %arg6[%c80, %c0_18] : memref<432x778xbf16, #tpu.memory_space<vmem>>, vector<16x778xbf16>
    tpu.vector_store %arg6[%c80, %c0_18], %16 {strides = array<i32>} : memref<432x778xbf16, #tpu.memory_space<vmem>>, vector<16x778xbf16>,
    %c0_19 = arith.constant 0 : index
    %c0_20 = arith.constant 0 : index
    %c20 = arith.constant 20 : index
    %18 = vector.load %arg1[%c0_19, %c0_20, %c20] : memref<1x16x1000xbf16, #tpu.memory_space<vmem>>, vector<1x16x778xbf16>
    %19 = vector.shape_cast %18 : vector<1x16x778xbf16> to vector<16x778xbf16>
    %c96 = arith.constant 96 : index
    %c0_21 = arith.constant 0 : index
    %20 = vector.load %arg6[%c96, %c0_21] : memref<432x778xbf16, #tpu.memory_space<vmem>>, vector<16x778xbf16>
    tpu.vector_store %arg6[%c96, %c0_21], %19 {strides = array<i32>} : memref<432x778xbf16, #tpu.memory_space<vmem>>, vector<16x778xbf16>,
    %c0_22 = arith.constant 0 : index
    %c0_23 = arith.constant 0 : index
    %c21 = arith.constant 21 : index
    %21 = vector.load %arg1[%c0_22, %c0_23, %c21] : memref<1x16x1000xbf16, #tpu.memory_space<vmem>>, vector<1x16x778xbf16>
    %22 = vector.shape_cast %21 : vector<1x16x778xbf16> to vector<16x778xbf16>
    %c112 = arith.constant 112 : index
    %c0_24 = arith.constant 0 : index
    %23 = vector.load %arg6[%c112, %c0_24] : memref<432x778xbf16, #tpu.memory_space<vmem>>, vector<16x778xbf16>
    tpu.vector_store %arg6[%c112, %c0_24], %22 {strides = array<i32>} : memref<432x778xbf16, #tpu.memory_space<vmem>>, vector<16x778xbf16>,
    %c0_25 = arith.constant 0 : index
    %c0_26 = arith.constant 0 : index
    %c22 = arith.constant 22 : index
    %24 = vector.load %arg1[%c0_25, %c0_26, %c22] : memref<1x16x1000xbf16, #tpu.memory_space<vmem>>, vector<1x16x778xbf16>
    %25 = vector.shape_cast %24 : vector<1x16x778xbf16> to vector<16x778xbf16>
    %c128 = arith.constant 128 : index
    %c0_27 = arith.constant 0 : index
    %26 = vector.load %arg6[%c128, %c0_27] : memref<432x778xbf16, #tpu.memory_space<vmem>>, vector<16x778xbf16>
    tpu.vector_store %arg6[%c128, %c0_27], %25 {strides = array<i32>} : memref<432x778xbf16, #tpu.memory_space<vmem>>, vector<16x778xbf16>,
    %c0_28 = arith.constant 0 : index
    %c0_29 = arith.constant 0 : index
    %c100 = arith.constant 100 : index
    %27 = vector.load %arg1[%c0_28, %c0_29, %c100] : memref<1x16x1000xbf16, #tpu.memory_space<vmem>>, vector<1x16x778xbf16>
    %28 = vector.shape_cast %27 : vector<1x16x778xbf16> to vector<16x778xbf16>
    %c144 = arith.constant 144 : index
    %c0_30 = arith.constant 0 : index
    %29 = vector.load %arg6[%c144, %c0_30] : memref<432x778xbf16, #tpu.memory_space<vmem>>, vector<16x778xbf16>
    tpu.vector_store %arg6[%c144, %c0_30], %28 {strides = array<i32>} : memref<432x778xbf16, #tpu.memory_space<vmem>>, vector<16x778xbf16>,
    %c0_31 = arith.constant 0 : index
    %c0_32 = arith.constant 0 : index
    %c101 = arith.constant 101 : index
    %30 = vector.load %arg1[%c0_31, %c0_32, %c101] : memref<1x16x1000xbf16, #tpu.memory_space<vmem>>, vector<1x16x778xbf16>
    %31 = vector.shape_cast %30 : vector<1x16x778xbf16> to vector<16x778xbf16>
    %c160 = arith.constant 160 : index
    %c0_33 = arith.constant 0 : index
    %32 = vector.load %arg6[%c160, %c0_33] : memref<432x778xbf16, #tpu.memory_space<vmem>>, vector<16x778xbf16>
    tpu.vector_store %arg6[%c160, %c0_33], %31 {strides = array<i32>} : memref<432x778xbf16, #tpu.memory_space<vmem>>, vector<16x778xbf16>,
    %c0_34 = arith.constant 0 : index
    %c0_35 = arith.constant 0 : index
    %c102 = arith.constant 102 : index
    %33 = vector.load %arg1[%c0_34, %c0_35, %c102] : memref<1x16x1000xbf16, #tpu.memory_space<vmem>>, vector<1x16x778xbf16>
    %34 = vector.shape_cast %33 : vector<1x16x778xbf16> to vector<16x778xbf16>
    %c176 = arith.constant 176 : index
    %c0_36 = arith.constant 0 : index
    %35 = vector.load %arg6[%c176, %c0_36] : memref<432x778xbf16, #tpu.memory_space<vmem>>, vector<16x778xbf16>
    tpu.vector_store %arg6[%c176, %c0_36], %34 {strides = array<i32>} : memref<432x778xbf16, #tpu.memory_space<vmem>>, vector<16x778xbf16>,
    %c0_37 = arith.constant 0 : index
    %c0_38 = arith.constant 0 : index
    %c110 = arith.constant 110 : index
    %36 = vector.load %arg1[%c0_37, %c0_38, %c110] : memref<1x16x1000xbf16, #tpu.memory_space<vmem>>, vector<1x16x778xbf16>
    %37 = vector.shape_cast %36 : vector<1x16x778xbf16> to vector<16x778xbf16>
    %c192 = arith.constant 192 : index
    %c0_39 = arith.constant 0 : index
    %38 = vector.load %arg6[%c192, %c0_39] : memref<432x778xbf16, #tpu.memory_space<vmem>>, vector<16x778xbf16>
    tpu.vector_store %arg6[%c192, %c0_39], %37 {strides = array<i32>} : memref<432x778xbf16, #tpu.memory_space<vmem>>, vector<16x778xbf16>,
    %c0_40 = arith.constant 0 : index
    %c0_41 = arith.constant 0 : index
    %c111 = arith.constant 111 : index
    %39 = vector.load %arg1[%c0_40, %c0_41, %c111] : memref<1x16x1000xbf16, #tpu.memory_space<vmem>>, vector<1x16x778xbf16>
    %40 = vector.shape_cast %39 : vector<1x16x778xbf16> to vector<16x778xbf16>
    %c208 = arith.constant 208 : index
    %c0_42 = arith.constant 0 : index
    %41 = vector.load %arg6[%c208, %c0_42] : memref<432x778xbf16, #tpu.memory_space<vmem>>, vector<16x778xbf16>
    tpu.vector_store %arg6[%c208, %c0_42], %40 {strides = array<i32>} : memref<432x778xbf16, #tpu.memory_space<vmem>>, vector<16x778xbf16>,
    %c0_43 = arith.constant 0 : index
    %c0_44 = arith.constant 0 : index
    %c112_45 = arith.constant 112 : index
    %42 = vector.load %arg1[%c0_43, %c0_44, %c112_45] : memref<1x16x1000xbf16, #tpu.memory_space<vmem>>, vector<1x16x778xbf16>
    %43 = vector.shape_cast %42 : vector<1x16x778xbf16> to vector<16x778xbf16>
    %c224 = arith.constant 224 : index
    %c0_46 = arith.constant 0 : index
    %44 = vector.load %arg6[%c224, %c0_46] : memref<432x778xbf16, #tpu.memory_space<vmem>>, vector<16x778xbf16>
    tpu.vector_store %arg6[%c224, %c0_46], %43 {strides = array<i32>} : memref<432x778xbf16, #tpu.memory_space<vmem>>, vector<16x778xbf16>,
    %c0_47 = arith.constant 0 : index
    %c0_48 = arith.constant 0 : index
    %c120 = arith.constant 120 : index
    %45 = vector.load %arg1[%c0_47, %c0_48, %c120] : memref<1x16x1000xbf16, #tpu.memory_space<vmem>>, vector<1x16x778xbf16>
    %46 = vector.shape_cast %45 : vector<1x16x778xbf16> to vector<16x778xbf16>
    %c240 = arith.constant 240 : index
    %c0_49 = arith.constant 0 : index
    %47 = vector.load %arg6[%c240, %c0_49] : memref<432x778xbf16, #tpu.memory_space<vmem>>, vector<16x778xbf16>
    tpu.vector_store %arg6[%c240, %c0_49], %46 {strides = array<i32>} : memref<432x778xbf16, #tpu.memory_space<vmem>>, vector<16x778xbf16>,
    %c0_50 = arith.constant 0 : index
    %c0_51 = arith.constant 0 : index
    %c121 = arith.constant 121 : index
    %48 = vector.load %arg1[%c0_50, %c0_51, %c121] : memref<1x16x1000xbf16, #tpu.memory_space<vmem>>, vector<1x16x778xbf16>
    %49 = vector.shape_cast %48 : vector<1x16x778xbf16> to vector<16x778xbf16>
    %c256 = arith.constant 256 : index
    %c0_52 = arith.constant 0 : index
    %50 = vector.load %arg6[%c256, %c0_52] : memref<432x778xbf16, #tpu.memory_space<vmem>>, vector<16x778xbf16>
    tpu.vector_store %arg6[%c256, %c0_52], %49 {strides = array<i32>} : memref<432x778xbf16, #tpu.memory_space<vmem>>, vector<16x778xbf16>,
    %c0_53 = arith.constant 0 : index
    %c0_54 = arith.constant 0 : index
    %c122 = arith.constant 122 : index
    %51 = vector.load %arg1[%c0_53, %c0_54, %c122] : memref<1x16x1000xbf16, #tpu.memory_space<vmem>>, vector<1x16x778xbf16>
    %52 = vector.shape_cast %51 : vector<1x16x778xbf16> to vector<16x778xbf16>
    %c272 = arith.constant 272 : index
    %c0_55 = arith.constant 0 : index
    %53 = vector.load %arg6[%c272, %c0_55] : memref<432x778xbf16, #tpu.memory_space<vmem>>, vector<16x778xbf16>
    tpu.vector_store %arg6[%c272, %c0_55], %52 {strides = array<i32>} : memref<432x778xbf16, #tpu.memory_space<vmem>>, vector<16x778xbf16>,
    %c0_56 = arith.constant 0 : index
    %c0_57 = arith.constant 0 : index
    %c200 = arith.constant 200 : index
    %54 = vector.load %arg1[%c0_56, %c0_57, %c200] : memref<1x16x1000xbf16, #tpu.memory_space<vmem>>, vector<1x16x778xbf16>
    %55 = vector.shape_cast %54 : vector<1x16x778xbf16> to vector<16x778xbf16>
    %c288 = arith.constant 288 : index
    %c0_58 = arith.constant 0 : index
    %56 = vector.load %arg6[%c288, %c0_58] : memref<432x778xbf16, #tpu.memory_space<vmem>>, vector<16x778xbf16>
    tpu.vector_store %arg6[%c288, %c0_58], %55 {strides = array<i32>} : memref<432x778xbf16, #tpu.memory_space<vmem>>, vector<16x778xbf16>,
    %c0_59 = arith.constant 0 : index
    %c0_60 = arith.constant 0 : index
    %c201 = arith.constant 201 : index
    %57 = vector.load %arg1[%c0_59, %c0_60, %c201] : memref<1x16x1000xbf16, #tpu.memory_space<vmem>>, vector<1x16x778xbf16>
    %58 = vector.shape_cast %57 : vector<1x16x778xbf16> to vector<16x778xbf16>
    %c304 = arith.constant 304 : index
    %c0_61 = arith.constant 0 : index
    %59 = vector.load %arg6[%c304, %c0_61] : memref<432x778xbf16, #tpu.memory_space<vmem>>, vector<16x778xbf16>
    tpu.vector_store %arg6[%c304, %c0_61], %58 {strides = array<i32>} : memref<432x778xbf16, #tpu.memory_space<vmem>>, vector<16x778xbf16>,
    %c0_62 = arith.constant 0 : index
    %c0_63 = arith.constant 0 : index
    %c202 = arith.constant 202 : index
    %60 = vector.load %arg1[%c0_62, %c0_63, %c202] : memref<1x16x1000xbf16, #tpu.memory_space<vmem>>, vector<1x16x778xbf16>
    %61 = vector.shape_cast %60 : vector<1x16x778xbf16> to vector<16x778xbf16>
    %c320 = arith.constant 320 : index
    %c0_64 = arith.constant 0 : index
    %62 = vector.load %arg6[%c320, %c0_64] : memref<432x778xbf16, #tpu.memory_space<vmem>>, vector<16x778xbf16>
    tpu.vector_store %arg6[%c320, %c0_64], %61 {strides = array<i32>} : memref<432x778xbf16, #tpu.memory_space<vmem>>, vector<16x778xbf16>,
    %c0_65 = arith.constant 0 : index
    %c0_66 = arith.constant 0 : index
    %c210 = arith.constant 210 : index
    %63 = vector.load %arg1[%c0_65, %c0_66, %c210] : memref<1x16x1000xbf16, #tpu.memory_space<vmem>>, vector<1x16x778xbf16>
    %64 = vector.shape_cast %63 : vector<1x16x778xbf16> to vector<16x778xbf16>
    %c336 = arith.constant 336 : index
    %c0_67 = arith.constant 0 : index
    %65 = vector.load %arg6[%c336, %c0_67] : memref<432x778xbf16, #tpu.memory_space<vmem>>, vector<16x778xbf16>
    tpu.vector_store %arg6[%c336, %c0_67], %64 {strides = array<i32>} : memref<432x778xbf16, #tpu.memory_space<vmem>>, vector<16x778xbf16>,
    %c0_68 = arith.constant 0 : index
    %c0_69 = arith.constant 0 : index
    %c211 = arith.constant 211 : index
    %66 = vector.load %arg1[%c0_68, %c0_69, %c211] : memref<1x16x1000xbf16, #tpu.memory_space<vmem>>, vector<1x16x778xbf16>
    %67 = vector.shape_cast %66 : vector<1x16x778xbf16> to vector<16x778xbf16>
    %c352 = arith.constant 352 : index
    %c0_70 = arith.constant 0 : index
    %68 = vector.load %arg6[%c352, %c0_70] : memref<432x778xbf16, #tpu.memory_space<vmem>>, vector<16x778xbf16>
    tpu.vector_store %arg6[%c352, %c0_70], %67 {strides = array<i32>} : memref<432x778xbf16, #tpu.memory_space<vmem>>, vector<16x778xbf16>,
    %c0_71 = arith.constant 0 : index
    %c0_72 = arith.constant 0 : index
    %c212 = arith.constant 212 : index
    %69 = vector.load %arg1[%c0_71, %c0_72, %c212] : memref<1x16x1000xbf16, #tpu.memory_space<vmem>>, vector<1x16x778xbf16>
    %70 = vector.shape_cast %69 : vector<1x16x778xbf16> to vector<16x778xbf16>
    %c368 = arith.constant 368 : index
    %c0_73 = arith.constant 0 : index
    %71 = vector.load %arg6[%c368, %c0_73] : memref<432x778xbf16, #tpu.memory_space<vmem>>, vector<16x778xbf16>
    tpu.vector_store %arg6[%c368, %c0_73], %70 {strides = array<i32>} : memref<432x778xbf16, #tpu.memory_space<vmem>>, vector<16x778xbf16>,
    %c0_74 = arith.constant 0 : index
    %c0_75 = arith.constant 0 : index
    %c220 = arith.constant 220 : index
    %72 = vector.load %arg1[%c0_74, %c0_75, %c220] : memref<1x16x1000xbf16, #tpu.memory_space<vmem>>, vector<1x16x778xbf16>
    %73 = vector.shape_cast %72 : vector<1x16x778xbf16> to vector<16x778xbf16>
    %c384 = arith.constant 384 : index
    %c0_76 = arith.constant 0 : index
    %74 = vector.load %arg6[%c384, %c0_76] : memref<432x778xbf16, #tpu.memory_space<vmem>>, vector<16x778xbf16>
    tpu.vector_store %arg6[%c384, %c0_76], %73 {strides = array<i32>} : memref<432x778xbf16, #tpu.memory_space<vmem>>, vector<16x778xbf16>,
    %c0_77 = arith.constant 0 : index
    %c0_78 = arith.constant 0 : index
    %c221 = arith.constant 221 : index
    %75 = vector.load %arg1[%c0_77, %c0_78, %c221] : memref<1x16x1000xbf16, #tpu.memory_space<vmem>>, vector<1x16x778xbf16>
    %76 = vector.shape_cast %75 : vector<1x16x778xbf16> to vector<16x778xbf16>
    %c400 = arith.constant 400 : index
    %c0_79 = arith.constant 0 : index
    %77 = vector.load %arg6[%c400, %c0_79] : memref<432x778xbf16, #tpu.memory_space<vmem>>, vector<16x778xbf16>
    tpu.vector_store %arg6[%c400, %c0_79], %76 {strides = array<i32>} : memref<432x778xbf16, #tpu.memory_space<vmem>>, vector<16x778xbf16>,
    %c0_80 = arith.constant 0 : index
    %c0_81 = arith.constant 0 : index
    %c222 = arith.constant 222 : index
    %78 = vector.load %arg1[%c0_80, %c0_81, %c222] : memref<1x16x1000xbf16, #tpu.memory_space<vmem>>, vector<1x16x778xbf16>
    %79 = vector.shape_cast %78 : vector<1x16x778xbf16> to vector<16x778xbf16>
    %c416 = arith.constant 416 : index
    %c0_82 = arith.constant 0 : index
    %80 = vector.load %arg6[%c416, %c0_82] : memref<432x778xbf16, #tpu.memory_space<vmem>>, vector<16x778xbf16>
    tpu.vector_store %arg6[%c416, %c0_82], %79 {strides = array<i32>} : memref<432x778xbf16, #tpu.memory_space<vmem>>, vector<16x778xbf16>,
    %c0_83 = arith.constant 0 : index
    %c0_84 = arith.constant 0 : index
    %81 = vector.load %arg2[%c0_83, %c0_84] : memref<8x432xbf16, #tpu.memory_space<vmem>>, vector<8x432xbf16>
    %c0_85 = arith.constant 0 : index
    %c0_86 = arith.constant 0 : index
    %82 = vector.load %arg6[%c0_85, %c0_86] : memref<432x778xbf16, #tpu.memory_space<vmem>>, vector<432x778xbf16>
    %cst = arith.constant dense<0.000000e+00> : vector<8x778xf32>
    %83 = tpu.matmul %81, %82, %cst {dimension_numbers = #tpu.dot_dimension_numbers<[1], [0], [0], [1], [0, 0, 1, 1], [], []>} : vector<8x432xbf16>, vector<432x778xbf16>, vector<8x778xf32> -> vector<8x778xf32>
    %c0_87 = arith.constant 0 : index
    %c0_88 = arith.constant 0 : index
    %84 = vector.load %arg3[%c0_87, %c0_88] : memref<8x3xf32, #tpu.memory_space<vmem>>, vector<8x1xf32>
    %85 = vector.broadcast %84 : vector<8x1xf32> to vector<8x778xf32>
    %86 = arith.addf %83, %85 : vector<8x778xf32>
    %c0_89 = arith.constant 0 : index
    %c0_90 = arith.constant 0 : index
    %87 = vector.load %arg4[%c0_89, %c0_90] : memref<1x778xf32, #tpu.memory_space<vmem>>, vector<1x778xf32>
    %88 = vector.broadcast %87 : vector<1x778xf32> to vector<8x778xf32>
    %89 = arith.mulf %86, %88 : vector<8x778xf32>
    %cst_91 = arith.constant dense<0.000000e+00> : vector<8xf32>
    %90 = vector.multi_reduction <add>, %89, %cst_91 [1] : vector<8x778xf32> to vector<8xf32>
    %91 = vector.shape_cast %90 : vector<8xf32> to vector<8x1xf32>
    %92 = arith.mulf %89, %86 : vector<8x778xf32>
    %cst_92 = arith.constant dense<0.000000e+00> : vector<8xf32>
    %93 = vector.multi_reduction <add>, %92, %cst_92 [1] : vector<8x778xf32> to vector<8xf32>
    %94 = vector.shape_cast %93 : vector<8xf32> to vector<8x1xf32>
    %95 = tpu.iota {dimensions = array<i32: 0>} : vector<8x1xi32>
    %cst_93 = arith.constant 0.000000e+00 : f32
    %96 = vector.broadcast %cst_93 : f32 to vector<8x1xf32>
    %cst_94 = arith.constant 0.000000e+00 : f32
    %97 = vector.broadcast %cst_94 : f32 to vector<8x1xf32>
    %c0_i32 = arith.constant 0 : i32
    %98 = vector.broadcast %c0_i32 : i32 to vector<8x1xi32>
    %99 = arith.cmpi sge, %95, %98 : vector<8x1xi32>
    %c2_i32 = arith.constant 2 : i32
    %100 = vector.broadcast %c2_i32 : i32 to vector<8x1xi32>
    %101 = arith.cmpi slt, %95, %100 : vector<8x1xi32>
    %102 = arith.andi %99, %101 : vector<8x1xi1>
    %cst_95 = arith.constant 0.000000e+00 : f32
    %103 = vector.broadcast %cst_95 : f32 to vector<8x1xf32>
    %104 = arith.select %102, %91, %103 : vector<8x1xi1>, vector<8x1xf32>
    %cst_96 = arith.constant dense<0.000000e+00> : vector<1xf32>
    %105 = vector.multi_reduction <add>, %104, %cst_96 [0] : vector<8x1xf32> to vector<1xf32>
    %106 = vector.shape_cast %105 : vector<1xf32> to vector<1x1xf32>
    %cst_97 = arith.constant 0.000000e+00 : f32
    %107 = vector.broadcast %cst_97 : f32 to vector<8x1xf32>
    %108 = arith.select %102, %94, %107 : vector<8x1xi1>, vector<8x1xf32>
    %cst_98 = arith.constant dense<0.000000e+00> : vector<1xf32>
    %109 = vector.multi_reduction <add>, %108, %cst_98 [0] : vector<8x1xf32> to vector<1xf32>
    %110 = vector.shape_cast %109 : vector<1xf32> to vector<1x1xf32>
    %cst_99 = arith.constant 9.765625E-4 : f32
    %111 = vector.broadcast %cst_99 : f32 to vector<1x1xf32>
    %112 = arith.mulf %106, %111 : vector<1x1xf32>
    %cst_100 = arith.constant 9.765625E-4 : f32
    %113 = vector.broadcast %cst_100 : f32 to vector<1x1xf32>
    %114 = arith.mulf %110, %113 : vector<1x1xf32>
    %115 = arith.mulf %112, %112 : vector<1x1xf32>
    %116 = arith.subf %114, %115 : vector<1x1xf32>
    %117 = vector.shape_cast %112 : vector<1x1xf32> to vector<1x1xf32>
    %118 = vector.broadcast %117 : vector<1x1xf32> to vector<8x1xf32>
    %119 = arith.select %102, %118, %96 : vector<8x1xi1>, vector<8x1xf32>
    %120 = vector.shape_cast %116 : vector<1x1xf32> to vector<1x1xf32>
    %121 = vector.broadcast %120 : vector<1x1xf32> to vector<8x1xf32>
    %122 = arith.select %102, %121, %97 : vector<8x1xi1>, vector<8x1xf32>
    %c2_i32_101 = arith.constant 2 : i32
    %123 = vector.broadcast %c2_i32_101 : i32 to vector<8x1xi32>
    %124 = arith.cmpi sge, %95, %123 : vector<8x1xi32>
    %c4_i32 = arith.constant 4 : i32
    %125 = vector.broadcast %c4_i32 : i32 to vector<8x1xi32>
    %126 = arith.cmpi slt, %95, %125 : vector<8x1xi32>
    %127 = arith.andi %124, %126 : vector<8x1xi1>
    %cst_102 = arith.constant 0.000000e+00 : f32
    %128 = vector.broadcast %cst_102 : f32 to vector<8x1xf32>
    %129 = arith.select %127, %91, %128 : vector<8x1xi1>, vector<8x1xf32>
    %cst_103 = arith.constant dense<0.000000e+00> : vector<1xf32>
    %130 = vector.multi_reduction <add>, %129, %cst_103 [0] : vector<8x1xf32> to vector<1xf32>
    %131 = vector.shape_cast %130 : vector<1xf32> to vector<1x1xf32>
    %cst_104 = arith.constant 0.000000e+00 : f32
    %132 = vector.broadcast %cst_104 : f32 to vector<8x1xf32>
    %133 = arith.select %127, %94, %132 : vector<8x1xi1>, vector<8x1xf32>
    %cst_105 = arith.constant dense<0.000000e+00> : vector<1xf32>
    %134 = vector.multi_reduction <add>, %133, %cst_105 [0] : vector<8x1xf32> to vector<1xf32>
    %135 = vector.shape_cast %134 : vector<1xf32> to vector<1x1xf32>
    %cst_106 = arith.constant 9.765625E-4 : f32
    %136 = vector.broadcast %cst_106 : f32 to vector<1x1xf32>
    %137 = arith.mulf %131, %136 : vector<1x1xf32>
    %cst_107 = arith.constant 9.765625E-4 : f32
    %138 = vector.broadcast %cst_107 : f32 to vector<1x1xf32>
    %139 = arith.mulf %135, %138 : vector<1x1xf32>
    %140 = arith.mulf %137, %137 : vector<1x1xf32>
    %141 = arith.subf %139, %140 : vector<1x1xf32>
    %142 = vector.shape_cast %137 : vector<1x1xf32> to vector<1x1xf32>
    %143 = vector.broadcast %142 : vector<1x1xf32> to vector<8x1xf32>
    %144 = arith.select %127, %143, %119 : vector<8x1xi1>, vector<8x1xf32>
    %145 = vector.shape_cast %141 : vector<1x1xf32> to vector<1x1xf32>
    %146 = vector.broadcast %145 : vector<1x1xf32> to vector<8x1xf32>
    %147 = arith.select %127, %146, %122 : vector<8x1xi1>, vector<8x1xf32>
    %c4_i32_108 = arith.constant 4 : i32
    %148 = vector.broadcast %c4_i32_108 : i32 to vector<8x1xi32>
    %149 = arith.cmpi sge, %95, %148 : vector<8x1xi32>
    %c6_i32 = arith.constant 6 : i32
    %150 = vector.broadcast %c6_i32 : i32 to vector<8x1xi32>
    %151 = arith.cmpi slt, %95, %150 : vector<8x1xi32>
    %152 = arith.andi %149, %151 : vector<8x1xi1>
    %cst_109 = arith.constant 0.000000e+00 : f32
    %153 = vector.broadcast %cst_109 : f32 to vector<8x1xf32>
    %154 = arith.select %152, %91, %153 : vector<8x1xi1>, vector<8x1xf32>
    %cst_110 = arith.constant dense<0.000000e+00> : vector<1xf32>
    %155 = vector.multi_reduction <add>, %154, %cst_110 [0] : vector<8x1xf32> to vector<1xf32>
    %156 = vector.shape_cast %155 : vector<1xf32> to vector<1x1xf32>
    %cst_111 = arith.constant 0.000000e+00 : f32
    %157 = vector.broadcast %cst_111 : f32 to vector<8x1xf32>
    %158 = arith.select %152, %94, %157 : vector<8x1xi1>, vector<8x1xf32>
    %cst_112 = arith.constant dense<0.000000e+00> : vector<1xf32>
    %159 = vector.multi_reduction <add>, %158, %cst_112 [0] : vector<8x1xf32> to vector<1xf32>
    %160 = vector.shape_cast %159 : vector<1xf32> to vector<1x1xf32>
    %cst_113 = arith.constant 9.765625E-4 : f32
    %161 = vector.broadcast %cst_113 : f32 to vector<1x1xf32>
    %162 = arith.mulf %156, %161 : vector<1x1xf32>
    %cst_114 = arith.constant 9.765625E-4 : f32
    %163 = vector.broadcast %cst_114 : f32 to vector<1x1xf32>
    %164 = arith.mulf %160, %163 : vector<1x1xf32>
    %165 = arith.mulf %162, %162 : vector<1x1xf32>
    %166 = arith.subf %164, %165 : vector<1x1xf32>
    %167 = vector.shape_cast %162 : vector<1x1xf32> to vector<1x1xf32>
    %168 = vector.broadcast %167 : vector<1x1xf32> to vector<8x1xf32>
    %169 = arith.select %152, %168, %144 : vector<8x1xi1>, vector<8x1xf32>
    %170 = vector.shape_cast %166 : vector<1x1xf32> to vector<1x1xf32>
    %171 = vector.broadcast %170 : vector<1x1xf32> to vector<8x1xf32>
    %172 = arith.select %152, %171, %147 : vector<8x1xi1>, vector<8x1xf32>
    %c6_i32_115 = arith.constant 6 : i32
    %173 = vector.broadcast %c6_i32_115 : i32 to vector<8x1xi32>
    %174 = arith.cmpi sge, %95, %173 : vector<8x1xi32>
    %c8_i32 = arith.constant 8 : i32
    %175 = vector.broadcast %c8_i32 : i32 to vector<8x1xi32>
    %176 = arith.cmpi slt, %95, %175 : vector<8x1xi32>
    %177 = arith.andi %174, %176 : vector<8x1xi1>
    %cst_116 = arith.constant 0.000000e+00 : f32
    %178 = vector.broadcast %cst_116 : f32 to vector<8x1xf32>
    %179 = arith.select %177, %91, %178 : vector<8x1xi1>, vector<8x1xf32>
    %cst_117 = arith.constant dense<0.000000e+00> : vector<1xf32>
    %180 = vector.multi_reduction <add>, %179, %cst_117 [0] : vector<8x1xf32> to vector<1xf32>
    %181 = vector.shape_cast %180 : vector<1xf32> to vector<1x1xf32>
    %cst_118 = arith.constant 0.000000e+00 : f32
    %182 = vector.broadcast %cst_118 : f32 to vector<8x1xf32>
    %183 = arith.select %177, %94, %182 : vector<8x1xi1>, vector<8x1xf32>
    %cst_119 = arith.constant dense<0.000000e+00> : vector<1xf32>
    %184 = vector.multi_reduction <add>, %183, %cst_119 [0] : vector<8x1xf32> to vector<1xf32>
    %185 = vector.shape_cast %184 : vector<1xf32> to vector<1x1xf32>
    %cst_120 = arith.constant 9.765625E-4 : f32
    %186 = vector.broadcast %cst_120 : f32 to vector<1x1xf32>
    %187 = arith.mulf %181, %186 : vector<1x1xf32>
    %cst_121 = arith.constant 9.765625E-4 : f32
    %188 = vector.broadcast %cst_121 : f32 to vector<1x1xf32>
    %189 = arith.mulf %185, %188 : vector<1x1xf32>
    %190 = arith.mulf %187, %187 : vector<1x1xf32>
    %191 = arith.subf %189, %190 : vector<1x1xf32>
    %192 = vector.shape_cast %187 : vector<1x1xf32> to vector<1x1xf32>
    %193 = vector.broadcast %192 : vector<1x1xf32> to vector<8x1xf32>
    %194 = arith.select %177, %193, %169 : vector<8x1xi1>, vector<8x1xf32>
    %195 = vector.shape_cast %191 : vector<1x1xf32> to vector<1x1xf32>
    %196 = vector.broadcast %195 : vector<1x1xf32> to vector<8x1xf32>
    %197 = arith.select %177, %196, %172 : vector<8x1xi1>, vector<8x1xf32>
    %cst_122 = arith.constant 9.99999974E-6 : f32
    %198 = vector.broadcast %cst_122 : f32 to vector<8x1xf32>
    %199 = arith.addf %197, %198 : vector<8x1xf32>
    %200 = math.rsqrt %199 : vector<8x1xf32>
    %c0_123 = arith.constant 0 : index
    %c1_124 = arith.constant 1 : index
    %201 = vector.load %arg3[%c0_123, %c1_124] : memref<8x3xf32, #tpu.memory_space<vmem>>, vector<8x1xf32>
    %202 = arith.mulf %201, %200 : vector<8x1xf32>
    %c0_125 = arith.constant 0 : index
    %c2_126 = arith.constant 2 : index
    %203 = vector.load %arg3[%c0_125, %c2_126] : memref<8x3xf32, #tpu.memory_space<vmem>>, vector<8x1xf32>
    %204 = arith.mulf %194, %202 : vector<8x1xf32>
    %205 = arith.subf %203, %204 : vector<8x1xf32>
    %206 = vector.broadcast %202 : vector<8x1xf32> to vector<8x778xf32>
    %207 = arith.mulf %86, %206 : vector<8x778xf32>
    %208 = vector.broadcast %205 : vector<8x1xf32> to vector<8x778xf32>
    %209 = arith.addf %207, %208 : vector<8x778xf32>
    %cst_127 = arith.constant 0.000000e+00 : f32
    %210 = vector.broadcast %cst_127 : f32 to vector<8x778xf32>
    %211 = arith.maximumf %209, %210 : vector<8x778xf32>
    %212 = vector.broadcast %87 : vector<1x778xf32> to vector<8x778xf32>
    %213 = arith.mulf %211, %212 : vector<8x778xf32>
    %c0_128 = arith.constant 0 : index
    %c0_129 = arith.constant 0 : index
    %c0_130 = arith.constant 0 : index
    %214 = vector.load %arg5[%c0_128, %c0_129, %c0_130] : memref<1x8x778xf32, #tpu.memory_space<vmem>>, vector<1x8x778xf32>
    %215 = vector.shape_cast %214 : vector<1x8x778xf32> to vector<8x778xf32>
    %216 = vector.shape_cast %213 : vector<8x778xf32> to vector<1x8x778xf32>
    tpu.vector_store %arg5[%c0_128, %c0_129, %c0_130], %216 {strides = array<i32>} : memref<1x8x778xf32, #tpu.memory_space<vmem>>, vector<1x8x778xf32>,
    return
  }
  func.func @transform_0(%arg0: i32) -> (i32, i32, i32) {
    %c0_i32 = arith.constant 0 : i32
    %c0_i32_0 = arith.constant 0 : i32
    %c0_i32_1 = arith.constant 0 : i32
    return %arg0, %c0_i32, %c0_i32_0 : i32, i32, i32
  }
  func.func @transform_1(%arg0: i32) -> (i32, i32) {
    %c0_i32 = arith.constant 0 : i32
    %c0_i32_0 = arith.constant 0 : i32
    %c0_i32_1 = arith.constant 0 : i32
    return %c0_i32, %c0_i32_0 : i32, i32
  }
  func.func @transform_2(%arg0: i32) -> (i32, i32) {
    %c0_i32 = arith.constant 0 : i32
    %c0_i32_0 = arith.constant 0 : i32
    %c0_i32_1 = arith.constant 0 : i32
    return %c0_i32, %c0_i32_0 : i32, i32
  }
  func.func @transform_3(%arg0: i32) -> (i32, i32) {
    %c0_i32 = arith.constant 0 : i32
    %c0_i32_0 = arith.constant 0 : i32
    %c0_i32_1 = arith.constant 0 : i32
    return %c0_i32, %c0_i32_0 : i32, i32
  }
  func.func @transform_4(%arg0: i32) -> (i32, i32, i32) {
    %c0_i32 = arith.constant 0 : i32
    %c0_i32_0 = arith.constant 0 : i32
    %c0_i32_1 = arith.constant 0 : i32
    return %arg0, %c0_i32, %c0_i32_0 : i32, i32, i32
  }
}

</mosaic_0001>

<llo_original>
// kernel: single_conv_forward.1
$region0: #{single_conv_forward.1}
  #allocation0 [shape = 'u32[]', space=smem, size = 0x4, offset = 0x4, fixed_abs, tag = 'smem constant byte address 0x4 - core index']
  #allocation1 [shape = 'u32[144,128]{1,0:T(1,128)}', space=vmem, size = 0x12000, scoped, tag = 'internal scratch']
  #allocation2 [shape = 'bf16[432,778]{1,0:T(8,128)(2,1)}', space=vmem, size = 0xbd000, scoped, tag = 'scratch operand']
  %s0 = inlined_call_operand.vmem [shape: bf16[2,16,1000], index: 0, kind: input, shape index: {}]
  %s1 = inlined_call_operand.vmem [shape: bf16[8,432], index: 1, kind: input, shape index: {}]
  %s2 = inlined_call_operand.vmem [shape: f32[8,3], index: 2, kind: input, shape index: {}]
  %s3 = inlined_call_operand.vmem [shape: f32[1,778], index: 3, kind: input, shape index: {}]
  %s4 = inlined_call_operand.vmem [shape: f32[2,8,778], index: 4, kind: output, shape index: {}]
  %s5 = sld [smem:[#allocation0]]
  $region49: #{single_conv_forward.1} parent=0
    _
  %s7 = ssub.s32 1, %s5
  %s8 = scalar_select 0, %s7, %s5
  loop: start=0, step=1, limit=4
  $region2: #{single_conv_forward.1} parent=0 // loop_pre_header
    _
  $region3: #{single_conv_forward.1} parent=0 // loop_header
    %s10 = sphi 0, %s14
    %p11 = scmp.ge.s32.totalorder %s10, 4
    %s20 = sphi 0, %s22
    %s23 = sphi 0, %s20
    %s24 = sphi 0, %s23
    %s40 = sphi 0, %s24
    %s44 = sphi 0, %s44
    %s46 = sphi 0, %s44
    %s47 = sphi 0, %s46
    %s61 = sphi 0, %s47
    %s65 = sphi 0, %s65
    %s67 = sphi 0, %s65
    %s68 = sphi 0, %s67
    %s82 = sphi 0, %s68
    %s86 = sphi 0, %s86
    %s88 = sphi 0, %s86
    %s89 = sphi 0, %s88
    %s103 = sphi 0, %s89
    %s109 = sphi 0, %s111
    %s112 = sphi 0, %s109
    %s113 = sphi 0, %s112
    %s129 = sphi 0, %s113
  $region4: #{single_conv_forward.1} parent=0 // loop_header_branch
    %13 = sbr.rel (%p11) target = $region8
  $region5: #{single_conv_forward.1} parent=0 // loop_body
    %s15 = ssub.s32 %s10, 1
    %s16 = ssub.s32 %s10, 2
    %s17 = sadd.s32 %s10, 1
    %s18 = ssub.s32 %s10, %s17
    %p19 = scmp.eq.s32.totalorder %s18, 0
    %s21 = sadd.s32 %s20, 1
    %s22 = scalar_select %p19, %s20, %s21
    %p25 = pneg %p19
    %p26 = scmp.eq.s32.totalorder %s10, 1
    %p27 = por %p25, %p26
    %p28 = scmp.ne.s32.totalorder %s20, %s23
    %p29 = scmp.eq.s32.totalorder %s10, 0
    %p30 = por %p28, %p29
    %p31 = scmp.ne.s32.totalorder %s20, %s23
    %p32 = scmp.eq.s32.totalorder %s15, 1
    %p33 = por %p31, %p32
    %p34 = scmp.ne.s32.totalorder %s23, %s24
    %p35 = scmp.eq.s32.totalorder %s15, 0
    %p36 = por %p34, %p35
    %p37 = scmp.ne.s32.totalorder %s23, %s24
    %p38 = scmp.eq.s32.totalorder %s16, 1
    %p39 = por %p37, %p38
    %p41 = scmp.ne.s32.totalorder %s24, %s40
    %p42 = scmp.eq.s32.totalorder %s16, 0
    %p43 = por %p41, %p42
    %s45 = sadd.s32 %s44, 1
    %p48 = scmp.eq.s32.totalorder %s10, 1
    %p49 = scmp.ne.s32.totalorder %s44, %s46
    %p50 = scmp.eq.s32.totalorder %s10, 0
    %p51 = por %p49, %p50
    %p52 = scmp.ne.s32.totalorder %s44, %s46
    %p53 = scmp.eq.s32.totalorder %s15, 1
    %p54 = por %p52, %p53
    %p55 = scmp.ne.s32.totalorder %s46, %s47
    %p56 = scmp.eq.s32.totalorder %s15, 0
    %p57 = por %p55, %p56
    %p58 = scmp.ne.s32.totalorder %s46, %s47
    %p59 = scmp.eq.s32.totalorder %s16, 1
    %p60 = por %p58, %p59
    %p62 = scmp.ne.s32.totalorder %s47, %s61
    %p63 = scmp.eq.s32.totalorder %s16, 0
    %p64 = por %p62, %p63
    %s66 = sadd.s32 %s65, 1
    %p69 = scmp.eq.s32.totalorder %s10, 1
    %p70 = scmp.ne.s32.totalorder %s65, %s67
    %p71 = scmp.eq.s32.totalorder %s10, 0
    %p72 = por %p70, %p71
    %p73 = scmp.ne.s32.totalorder %s65, %s67
    %p74 = scmp.eq.s32.totalorder %s15, 1
    %p75 = por %p73, %p74
    %p76 = scmp.ne.s32.totalorder %s67, %s68
    %p77 = scmp.eq.s32.totalorder %s15, 0
    %p78 = por %p76, %p77
    %p79 = scmp.ne.s32.totalorder %s67, %s68
    %p80 = scmp.eq.s32.totalorder %s16, 1
    %p81 = por %p79, %p80
    %p83 = scmp.ne.s32.totalorder %s68, %s82
    %p84 = scmp.eq.s32.totalorder %s16, 0
    %p85 = por %p83, %p84
    %s87 = sadd.s32 %s86, 1
    %p90 = scmp.eq.s32.totalorder %s10, 1
    %p91 = scmp.ne.s32.totalorder %s86, %s88
    %p92 = scmp.eq.s32.totalorder %s10, 0
    %p93 = por %p91, %p92
    %p94 = scmp.ne.s32.totalorder %s86, %s88
    %p95 = scmp.eq.s32.totalorder %s15, 1
    %p96 = por %p94, %p95
    %p97 = scmp.ne.s32.totalorder %s88, %s89
    %p98 = scmp.eq.s32.totalorder %s15, 0
    %p99 = por %p97, %p98
    %p100 = scmp.ne.s32.totalorder %s88, %s89
    %p101 = scmp.eq.s32.totalorder %s16, 1
    %p102 = por %p100, %p101
    %p104 = scmp.ne.s32.totalorder %s89, %s103
    %p105 = scmp.eq.s32.totalorder %s16, 0
    %p106 = por %p104, %p105
    %s107 = ssub.s32 %s10, %s17
    %p108 = scmp.eq.s32.totalorder %s107, 0
    %s110 = sadd.s32 %s109, 1
    %s111 = scalar_select %p108, %s109, %s110
    %p114 = pneg %p108
    %p115 = scmp.eq.s32.totalorder %s10, 1
    %p116 = por %p114, %p115
    %p117 = scmp.ne.s32.totalorder %s109, %s112
    %p118 = scmp.eq.s32.totalorder %s10, 0
    %p119 = por %p117, %p118
    %p120 = scmp.ne.s32.totalorder %s109, %s112
    %p121 = scmp.eq.s32.totalorder %s15, 1
    %p122 = por %p120, %p121
    %p123 = scmp.ne.s32.totalorder %s112, %s113
    %p124 = scmp.eq.s32.totalorder %s15, 0
    %p125 = por %p123, %p124
    %p126 = scmp.ne.s32.totalorder %s112, %s113
    %p127 = scmp.eq.s32.totalorder %s16, 1
    %p128 = por %p126, %p127
    %p130 = scmp.ne.s32.totalorder %s113, %s129
    %p131 = scmp.eq.s32.totalorder %s16, 0
    %p132 = por %p130, %p131
    %p133 = scmp.le.s32.totalorder 1, %s10
    %p134 = scmp.lt.s32.totalorder %s10, 3
    %p135 = pnand %p133, %p134
    %p136 = pneg %p135
    // Predicated region
    $region9: #{single_conv_forward.1} parent=5 // pred_check
      _
    $region10: #{single_conv_forward.1} parent=5 // pred_check_branch
      %138 = sbr.rel (%p135) target = $region12
    $region11: #{single_conv_forward.1} parent=5 // pred_region
      %s139 = ssub.s32 %s10, 1
      // Predicated region
      $region13: #{single_conv_forward.1} parent=11 // pred_check
        %p140 = pneg %p57
      $region14: #{single_conv_forward.1} parent=11 // pred_check_branch
        %142 = sbr.rel (%p140) target = $region16
      $region15: #{single_conv_forward.1} parent=11 // pred_region
        _
      $region16: #{single_conv_forward.1} parent=11 // pred_fallthru
        _
      // Predicated region
      $region17: #{single_conv_forward.1} parent=11 // pred_check
        %p143 = pneg %p78
      $region18: #{single_conv_forward.1} parent=11 // pred_check_branch
        %145 = sbr.rel (%p143) target = $region20
      $region19: #{single_conv_forward.1} parent=11 // pred_region
        _
      $region20: #{single_conv_forward.1} parent=11 // pred_fallthru
        _
      // Predicated region
      $region21: #{single_conv_forward.1} parent=11 // pred_check
        %p146 = pneg %p99
      $region22: #{single_conv_forward.1} parent=11 // pred_check_branch
        %148 = sbr.rel (%p146) target = $region24
      $region23: #{single_conv_forward.1} parent=11 // pred_region
        _
      $region24: #{single_conv_forward.1} parent=11 // pred_fallthru
        _
    $region12: #{single_conv_forward.1} parent=5 // pred_fallthru
      _
    %p149 = scmp.lt.s32.totalorder %s10, 2
    // Predicated region
    $region25: #{single_conv_forward.1} parent=5 // pred_check
      %p150 = pneg %p149
    $region26: #{single_conv_forward.1} parent=5 // pred_check_branch
      %152 = sbr.rel (%p150) target = $region28
    $region27: #{single_conv_forward.1} parent=5 // pred_region
      // Predicated region
      $region29: #{single_conv_forward.1} parent=27 // pred_check
        %p153 = pneg %p30
      $region30: #{single_conv_forward.1} parent=27 // pred_check_branch
        %155 = sbr.rel (%p153) target = $region32
      $region31: #{single_conv_forward.1} parent=27 // pred_region
        %p156 = scmp.lt.s32.totalorder %s10, 1
        %s157 = scalar_select %p156, %s10, 1
        %s158 = smul.addr %s157, 16
        %s159 = smul.addr %s158, 4
        %s160 = scalar_lea.vmem %s0, %s159
      $region32: #{single_conv_forward.1} parent=27 // pred_fallthru
        _
    $region28: #{single_conv_forward.1} parent=5 // pred_fallthru
      _
    %p161 = scmp.le.s32.totalorder 1, %s10
    %p162 = scmp.lt.s32.totalorder %s10, 3
    %p163 = pnand %p161, %p162
    %p164 = pneg %p163
    // Predicated region
    $region33: #{single_conv_forward.1} parent=5 // pred_check
      _
    $region34: #{single_conv_forward.1} parent=5 // pred_check_branch
      %166 = sbr.rel (%p163) target = $region36
    $region35: #{single_conv_forward.1} parent=5 // pred_region
      %s167 = ssub.s32 %s10, 1
      %p168 = scmp.lt.s32.totalorder %s15, 1
      %s169 = scalar_select %p168, %s15, 1
      %s170 = smul.addr %s169, 16
      %s171 = smul.addr %s170, 4
      %s172 = scalar_lea.vmem %s0, %s171
      %p173 = pneg %p36
      %p174 = pneg %p33
      %p175 = pneg %p57
      %p176 = pneg %p54
      %p177 = pneg %p78
      %p178 = pneg %p75
      %p179 = pneg %p99
      %p180 = pneg %p96
      %p181 = pneg %p125
      %p182 = pneg %p122
      %p183 = scmp.lt.s32.totalorder %s15, 1
      %s184 = scalar_select %p183, %s15, 1
      %s185 = smul.addr %s184, 7
      %s186 = smul.addr %s185, 8
      %s187 = scalar_lea.vmem %s4, %s186
      %p188 = scmp.lt.s32.totalorder %s15, 1
      %s189 = scalar_select %p188, %s15, 1
      %s190 = smul.addr %s189, 16
      %s191 = smul.addr %s190, 4
      %s192 = scalar_lea.vmem %s0, %s191
      %p193 = scmp.lt.s32.totalorder %s15, 1
      %s194 = scalar_select %p193, %s15, 1
      %s195 = smul.addr %s194, 7
      %s196 = smul.addr %s195, 8
      %s197 = scalar_lea.vmem %s4, %s196
      %v199 = vld [vmem:[%s192] sm:$0xff]
      %v200 = vld [vmem:[%s192 + $0x8] sm:$0xff]
      %v201 = vld [vmem:[%s192 + $0x10] sm:$0xff]
      %v202 = vld [vmem:[%s192 + $0x18] sm:$0xf]
      %v203 = vld [vmem:[%s192 + $0x20] sm:$0xff]
      %v204 = vld [vmem:[%s192 + $0x28] sm:$0xff]
      %v205 = vld [vmem:[%s192 + $0x30] sm:$0xff]
      %v206 = vld [vmem:[%s192 + $0x38] sm:$0xf]
      %207 = vst [vmem:[#allocation2] sm:$0xff] %v199
      %208 = vst [vmem:[#allocation2 + $0x8] sm:$0xff] %v200
      %209 = vst [vmem:[#allocation2 + $0x10] sm:$0xff] %v201
      %vm210 = vcmask 76800
      %211 = vst.msk [vmem:[#allocation2 + $0x18] sm:$0xf] %vm210, %v202
      %212 = vst [vmem:[#allocation2 + $0x1c] sm:$0xff] %v203
      %213 = vst [vmem:[#allocation2 + $0x24] sm:$0xff] %v204
      %214 = vst [vmem:[#allocation2 + $0x2c] sm:$0xff] %v205
      %215 = vst.msk [vmem:[#allocation2 + $0x34] sm:$0xf] %vm210, %v206
      %v216 = vld [vmem:[%s192] sm:$0xff]
      %v217 = vld [vmem:[%s192 + $0x8] sm:$0xff]
      %v218 = vld [vmem:[%s192 + $0x10] sm:$0xff]
      %v219 = vld [vmem:[%s192 + $0x18] sm:$0xf]
      %v220 = vld [vmem:[%s192 + $0x20] sm:$0xff]
      %v221 = vld [vmem:[%s192 + $0x28] sm:$0xff]
      %v222 = vld [vmem:[%s192 + $0x30] sm:$0xff]
      %v223 = vld [vmem:[%s192 + $0x38] sm:$0xf]
      %232 = vrot.lane.b32.xlu0 %v216, 127
      %v233 = vpop.permute.xlu0 %232
      %234 = vrot.lane.b32.xlu0 %v217, 127
      %v235 = vpop.permute.xlu0 %234
      %236 = vrot.lane.b32.xlu0 %v218, 127
      %v237 = vpop.permute.xlu0 %236
      %238 = vrot.lane.b32.xlu0 %v219, 127
      %v239 = vpop.permute.xlu0 %238
      %240 = vrot.lane.b32.xlu0 %v220, 127
      %v241 = vpop.permute.xlu0 %240
      %242 = vrot.lane.b32.xlu0 %v221, 127
      %v243 = vpop.permute.xlu0 %242
      %244 = vrot.lane.b32.xlu0 %v222, 127
      %v245 = vpop.permute.xlu0 %244
      %246 = vrot.lane.b32.xlu0 %v223, 127
      %v247 = vpop.permute.xlu0 %246
      %v248 = vrot.slane %v233, 4
      %v249 = vrot.slane %v235, 4
      %v250 = vrot.slane %v237, 4
      %v251 = vrot.slane %v239, 4
      %v252 = vrot.slane %v241, 4
      %v253 = vrot.slane %v243, 4
      %v254 = vrot.slane %v245, 4
      %v255 = vrot.slane %v247, 4
      %vm256 = vcmask 1043456
      %v257 = vsel %vm256, %v248, %v249
      %vm258 = vcmask 1039360
      %v259 = vsel %vm258, %v233, %v257
      %v260 = vsel %vm256, %v249, %v250
      %v261 = vsel %vm258, %v235, %v260
      %v262 = vsel %vm256, %v250, %v251
      %v263 = vsel %vm258, %v237, %v262
      %v264 = vsel %vm256, %v252, %v253
      %v265 = vsel %vm258, %v241, %v264
      %v266 = vsel %vm256, %v253, %v254
      %v267 = vsel %vm258, %v243, %v266
      %v268 = vsel %vm256, %v254, %v255
      %v269 = vsel %vm258, %v245, %v268
      %278 = vst [vmem:[#allocation2 + $0x38] sm:$0xff] %v259
      %279 = vst [vmem:[#allocation2 + $0x40] sm:$0xff] %v261
      %280 = vst [vmem:[#allocation2 + $0x48] sm:$0xff] %v263
      %281 = vst.msk [vmem:[#allocation2 + $0x50] sm:$0xf] %vm210, %v239
      %282 = vst [vmem:[#allocation2 + $0x54] sm:$0xff] %v265
      %283 = vst [vmem:[#allocation2 + $0x5c] sm:$0xff] %v267
      %284 = vst [vmem:[#allocation2 + $0x64] sm:$0xff] %v269
      %285 = vst.msk [vmem:[#allocation2 + $0x6c] sm:$0xf] %vm210, %v247
      %v286 = vld [vmem:[%s192] sm:$0xff]
      %v287 = vld [vmem:[%s192 + $0x8] sm:$0xff]
      %v288 = vld [vmem:[%s192 + $0x10] sm:$0xff]
      %v289 = vld [vmem:[%s192 + $0x18] sm:$0xf]
      %v290 = vld [vmem:[%s192 + $0x20] sm:$0xff]
      %v291 = vld [vmem:[%s192 + $0x28] sm:$0xff]
      %v292 = vld [vmem:[%s192 + $0x30] sm:$0xff]
      %v293 = vld [vmem:[%s192 + $0x38] sm:$0xf]
      %302 = vrot.lane.b32.xlu0 %v286, 126
      %v303 = vpop.permute.xlu0 %302
      %304 = vrot.lane.b32.xlu0 %v287, 126
      %v305 = vpop.permute.xlu0 %304
      %306 = vrot.lane.b32.xlu0 %v288, 126
      %v307 = vpop.permute.xlu0 %306
      %308 = vrot.lane.b32.xlu0 %v289, 126
      %v309 = vpop.permute.xlu0 %308
      %310 = vrot.lane.b32.xlu0 %v290, 126
      %v311 = vpop.permute.xlu0 %310
      %312 = vrot.lane.b32.xlu0 %v291, 126
      %v313 = vpop.permute.xlu0 %312
      %314 = vrot.lane.b32.xlu0 %v292, 126
      %v315 = vpop.permute.xlu0 %314
      %316 = vrot.lane.b32.xlu0 %v293, 126
      %v317 = vpop.permute.xlu0 %316
      %v318 = vrot.slane %v303, 4
      %v319 = vrot.slane %v305, 4
      %v320 = vrot.slane %v307, 4
      %v321 = vrot.slane %v309, 4
      %v322 = vrot.slane %v311, 4
      %v323 = vrot.slane %v313, 4
      %v324 = vrot.slane %v315, 4
      %v325 = vrot.slane %v317, 4
      %v326 = vsel %vm256, %v318, %v319
      %vm327 = vcmask 1031168
      %v328 = vsel %vm327, %v303, %v326
      %v329 = vsel %vm256, %v319, %v320
      %v330 = vsel %vm327, %v305, %v329
      %v331 = vsel %vm256, %v320, %v321
      %v332 = vsel %vm327, %v307, %v331
      %v333 = vsel %vm256, %v322, %v323
      %v334 = vsel %vm327, %v311, %v333
      %v335 = vsel %vm256, %v323, %v324
      %v336 = vsel %vm327, %v313, %v335
      %v337 = vsel %vm256, %v324, %v325
      %v338 = vsel %vm327, %v315, %v337
      %347 = vst [vmem:[#allocation2 + $0x70] sm:$0xff] %v328
      %348 = vst [vmem:[#allocation2 + $0x78] sm:$0xff] %v330
      %349 = vst [vmem:[#allocation2 + $0x80] sm:$0xff] %v332
      %350 = vst.msk [vmem:[#allocation2 + $0x88] sm:$0xf] %vm210, %v309
      %351 = vst [vmem:[#allocation2 + $0x8c] sm:$0xff] %v334
      %352 = vst [vmem:[#allocation2 + $0x94] sm:$0xff] %v336
      %353 = vst [vmem:[#allocation2 + $0x9c] sm:$0xff] %v338
      %354 = vst.msk [vmem:[#allocation2 + $0xa4] sm:$0xf] %vm210, %v317
      %v355 = vld [vmem:[%s192] sm:$0xff]
      %v356 = vld [vmem:[%s192 + $0x8] sm:$0xff]
      %v357 = vld [vmem:[%s192 + $0x10] sm:$0xff]
      %v358 = vld [vmem:[%s192 + $0x18] sm:$0xf]
      %v359 = vld [vmem:[%s192 + $0x20] sm:$0xff]
      %v360 = vld [vmem:[%s192 + $0x28] sm:$0xff]
      %v361 = vld [vmem:[%s192 + $0x30] sm:$0xff]
      %v362 = vld [vmem:[%s192 + $0x38] sm:$0xf]
      %371 = vrot.lane.b32.xlu0 %v355, 118
      %v372 = vpop.permute.xlu0 %371
      %373 = vrot.lane.b32.xlu0 %v356, 118
      %v374 = vpop.permute.xlu0 %373
      %375 = vrot.lane.b32.xlu0 %v357, 118
      %v376 = vpop.permute.xlu0 %375
      %377 = vrot.lane.b32.xlu0 %v358, 118
      %v378 = vpop.permute.xlu0 %377
      %379 = vrot.lane.b32.xlu0 %v359, 118
      %v380 = vpop.permute.xlu0 %379
      %381 = vrot.lane.b32.xlu0 %v360, 118
      %v382 = vpop.permute.xlu0 %381
      %383 = vrot.lane.b32.xlu0 %v361, 118
      %v384 = vpop.permute.xlu0 %383
      %385 = vrot.lane.b32.xlu0 %v362, 118
      %v386 = vpop.permute.xlu0 %385
      %v387 = vrot.slane %v372, 4
      %v388 = vrot.slane %v374, 4
      %v389 = vrot.slane %v376, 4
      %v390 = vrot.slane %v378, 4
      %v391 = vrot.slane %v380, 4
      %v392 = vrot.slane %v382, 4
      %v393 = vrot.slane %v384, 4
      %v394 = vrot.slane %v386, 4
      %v395 = vsel %vm256, %v387, %v388
      %vm396 = vcmask 965632
      %v397 = vsel %vm396, %v372, %v395
      %v398 = vsel %vm256, %v388, %v389
      %v399 = vsel %vm396, %v374, %v398
      %v400 = vsel %vm256, %v389, %v390
      %v401 = vsel %vm396, %v376, %v400
      %v402 = vsel %vm256, %v391, %v392
      %v403 = vsel %vm396, %v380, %v402
      %v404 = vsel %vm256, %v392, %v393
      %v405 = vsel %vm396, %v382, %v404
      %v406 = vsel %vm256, %v393, %v394
      %v407 = vsel %vm396, %v384, %v406
      %416 = vst [vmem:[#allocation2 + $0xa8] sm:$0xff] %v397
      %417 = vst [vmem:[#allocation2 + $0xb0] sm:$0xff] %v399
      %418 = vst [vmem:[#allocation2 + $0xb8] sm:$0xff] %v401
      %419 = vst.msk [vmem:[#allocation2 + $0xc0] sm:$0xf] %vm210, %v378
      %420 = vst [vmem:[#allocation2 + $0xc4] sm:$0xff] %v403
      %421 = vst [vmem:[#allocation2 + $0xcc] sm:$0xff] %v405
      %422 = vst [vmem:[#allocation2 + $0xd4] sm:$0xff] %v407
      %423 = vst.msk [vmem:[#allocation2 + $0xdc] sm:$0xf] %vm210, %v386
      %v424 = vld [vmem:[%s192] sm:$0xff]
      %v425 = vld [vmem:[%s192 + $0x8] sm:$0xff]
      %v426 = vld [vmem:[%s192 + $0x10] sm:$0xff]
      %v427 = vld [vmem:[%s192 + $0x18] sm:$0xf]
      %v428 = vld [vmem:[%s192 + $0x20] sm:$0xff]
      %v429 = vld [vmem:[%s192 + $0x28] sm:$0xff]
      %v430 = vld [vmem:[%s192 + $0x30] sm:$0xff]
      %v431 = vld [vmem:[%s192 + $0x38] sm:$0xf]
      %440 = vrot.lane.b32.xlu0 %v424, 117
      %v441 = vpop.permute.xlu0 %440
      %442 = vrot.lane.b32.xlu0 %v425, 117
      %v443 = vpop.permute.xlu0 %442
      %444 = vrot.lane.b32.xlu0 %v426, 117
      %v445 = vpop.permute.xlu0 %444
      %446 = vrot.lane.b32.xlu0 %v427, 117
      %v447 = vpop.permute.xlu0 %446
      %448 = vrot.lane.b32.xlu0 %v428, 117
      %v449 = vpop.permute.xlu0 %448
      %450 = vrot.lane.b32.xlu0 %v429, 117
      %v451 = vpop.permute.xlu0 %450
      %452 = vrot.lane.b32.xlu0 %v430, 117
      %v453 = vpop.permute.xlu0 %452
      %454 = vrot.lane.b32.xlu0 %v431, 117
      %v455 = vpop.permute.xlu0 %454
      %v456 = vrot.slane %v441, 4
      %v457 = vrot.slane %v443, 4
      %v458 = vrot.slane %v445, 4
      %v459 = vrot.slane %v447, 4
      %v460 = vrot.slane %v449, 4
      %v461 = vrot.slane %v451, 4
      %v462 = vrot.slane %v453, 4
      %v463 = vrot.slane %v455, 4
      %v464 = vsel %vm256, %v456, %v457
      %vm465 = vcmask 957440
      %v466 = vsel %vm465, %v441, %v464
      %v467 = vsel %vm256, %v457, %v458
      %v468 = vsel %vm465, %v443, %v467
      %v469 = vsel %vm256, %v458, %v459
      %v470 = vsel %vm465, %v445, %v469
      %v471 = vsel %vm256, %v460, %v461
      %v472 = vsel %vm465, %v449, %v471
      %v473 = vsel %vm256, %v461, %v462
      %v474 = vsel %vm465, %v451, %v473
      %v475 = vsel %vm256, %v462, %v463
      %v476 = vsel %vm465, %v453, %v475
      %485 = vst [vmem:[#allocation2 + $0xe0] sm:$0xff] %v466
      %486 = vst [vmem:[#allocation2 + $0xe8] sm:$0xff] %v468
      %487 = vst [vmem:[#allocation2 + $0xf0] sm:$0xff] %v470
      %488 = vst.msk [vmem:[#allocation2 + $0xf8] sm:$0xf] %vm210, %v447
      %489 = vst [vmem:[#allocation2 + $0xfc] sm:$0xff] %v472
      %490 = vst [vmem:[#allocation2 + $0x104] sm:$0xff] %v474
      %491 = vst [vmem:[#allocation2 + $0x10c] sm:$0xff] %v476
      %492 = vst.msk [vmem:[#allocation2 + $0x114] sm:$0xf] %vm210, %v455
      %v493 = vld [vmem:[%s192] sm:$0xff]
      %v494 = vld [vmem:[%s192 + $0x8] sm:$0xff]
      %v495 = vld [vmem:[%s192 + $0x10] sm:$0xff]
      %v496 = vld [vmem:[%s192 + $0x18] sm:$0xf]
      %v497 = vld [vmem:[%s192 + $0x20] sm:$0xff]
      %v498 = vld [vmem:[%s192 + $0x28] sm:$0xff]
      %v499 = vld [vmem:[%s192 + $0x30] sm:$0xff]
      %v500 = vld [vmem:[%s192 + $0x38] sm:$0xf]
      %509 = vrot.lane.b32.xlu0 %v493, 116
      %v510 = vpop.permute.xlu0 %509
      %511 = vrot.lane.b32.xlu0 %v494, 116
      %v512 = vpop.permute.xlu0 %511
      %513 = vrot.lane.b32.xlu0 %v495, 116
      %v514 = vpop.permute.xlu0 %513
      %515 = vrot.lane.b32.xlu0 %v496, 116
      %v516 = vpop.permute.xlu0 %515
      %517 = vrot.lane.b32.xlu0 %v497, 116
      %v518 = vpop.permute.xlu0 %517
      %519 = vrot.lane.b32.xlu0 %v498, 116
      %v520 = vpop.permute.xlu0 %519
      %521 = vrot.lane.b32.xlu0 %v499, 116
      %v522 = vpop.permute.xlu0 %521
      %523 = vrot.lane.b32.xlu0 %v500, 116
      %v524 = vpop.permute.xlu0 %523
      %v525 = vrot.slane %v510, 4
      %v526 = vrot.slane %v512, 4
      %v527 = vrot.slane %v514, 4
      %v528 = vrot.slane %v516, 4
      %v529 = vrot.slane %v518, 4
      %v530 = vrot.slane %v520, 4
      %v531 = vrot.slane %v522, 4
      %v532 = vrot.slane %v524, 4
      %v533 = vsel %vm256, %v525, %v526
      %vm534 = vcmask 949248
      %v535 = vsel %vm534, %v510, %v533
      %v536 = vsel %vm256, %v526, %v527
      %v537 = vsel %vm534, %v512, %v536
      %v538 = vsel %vm256, %v527, %v528
      %v539 = vsel %vm534, %v514, %v538
      %v540 = vsel %vm256, %v529, %v530
      %v541 = vsel %vm534, %v518, %v540
      %v542 = vsel %vm256, %v530, %v531
      %v543 = vsel %vm534, %v520, %v542
      %v544 = vsel %vm256, %v531, %v532
      %v545 = vsel %vm534, %v522, %v544
      %554 = vst [vmem:[#allocation2 + $0x118] sm:$0xff] %v535
      %555 = vst [vmem:[#allocation2 + $0x120] sm:$0xff] %v537
      %556 = vst [vmem:[#allocation2 + $0x128] sm:$0xff] %v539
      %557 = vst.msk [vmem:[#allocation2 + $0x130] sm:$0xf] %vm210, %v516
      %558 = vst [vmem:[#allocation2 + $0x134] sm:$0xff] %v541
      %559 = vst [vmem:[#allocation2 + $0x13c] sm:$0xff] %v543
      %560 = vst [vmem:[#allocation2 + $0x144] sm:$0xff] %v545
      %561 = vst.msk [vmem:[#allocation2 + $0x14c] sm:$0xf] %vm210, %v524
      %v562 = vld [vmem:[%s192] sm:$0xff]
      %v563 = vld [vmem:[%s192 + $0x8] sm:$0xff]
      %v564 = vld [vmem:[%s192 + $0x10] sm:$0xff]
      %v565 = vld [vmem:[%s192 + $0x18] sm:$0xf]
      %v566 = vld [vmem:[%s192 + $0x20] sm:$0xff]
      %v567 = vld [vmem:[%s192 + $0x28] sm:$0xff]
      %v568 = vld [vmem:[%s192 + $0x30] sm:$0xff]
      %v569 = vld [vmem:[%s192 + $0x38] sm:$0xf]
      %578 = vrot.lane.b32.xlu0 %v562, 108
      %v579 = vpop.permute.xlu0 %578
      %580 = vrot.lane.b32.xlu0 %v563, 108
      %v581 = vpop.permute.xlu0 %580
      %582 = vrot.lane.b32.xlu0 %v564, 108
      %v583 = vpop.permute.xlu0 %582
      %584 = vrot.lane.b32.xlu0 %v565, 108
      %v585 = vpop.permute.xlu0 %584
      %586 = vrot.lane.b32.xlu0 %v566, 108
      %v587 = vpop.permute.xlu0 %586
      %588 = vrot.lane.b32.xlu0 %v567, 108
      %v589 = vpop.permute.xlu0 %588
      %590 = vrot.lane.b32.xlu0 %v568, 108
      %v591 = vpop.permute.xlu0 %590
      %592 = vrot.lane.b32.xlu0 %v569, 108
      %v593 = vpop.permute.xlu0 %592
      %v594 = vrot.slane %v579, 4
      %v595 = vrot.slane %v581, 4
      %v596 = vrot.slane %v583, 4
      %v597 = vrot.slane %v585, 4
      %v598 = vrot.slane %v587, 4
      %v599 = vrot.slane %v589, 4
      %v600 = vrot.slane %v591, 4
      %v601 = vrot.slane %v593, 4
      %v602 = vsel %vm256, %v594, %v595
      %vm603 = vcmask 883712
      %v604 = vsel %vm603, %v579, %v602
      %v605 = vsel %vm256, %v595, %v596
      %v606 = vsel %vm603, %v581, %v605
      %v607 = vsel %vm256, %v596, %v597
      %v608 = vsel %vm603, %v583, %v607
      %v609 = vsel %vm256, %v598, %v599
      %v610 = vsel %vm603, %v587, %v609
      %v611 = vsel %vm256, %v599, %v600
      %v612 = vsel %vm603, %v589, %v611
      %v613 = vsel %vm256, %v600, %v601
      %v614 = vsel %vm603, %v591, %v613
      %623 = vst [vmem:[#allocation2 + $0x150] sm:$0xff] %v604
      %624 = vst [vmem:[#allocation2 + $0x158] sm:$0xff] %v606
      %625 = vst [vmem:[#allocation2 + $0x160] sm:$0xff] %v608
      %626 = vst.msk [vmem:[#allocation2 + $0x168] sm:$0xf] %vm210, %v585
      %627 = vst [vmem:[#allocation2 + $0x16c] sm:$0xff] %v610
      %628 = vst [vmem:[#allocation2 + $0x174] sm:$0xff] %v612
      %629 = vst [vmem:[#allocation2 + $0x17c] sm:$0xff] %v614
      %630 = vst.msk [vmem:[#allocation2 + $0x184] sm:$0xf] %vm210, %v593
      %v631 = vld [vmem:[%s192] sm:$0xff]
      %v632 = vld [vmem:[%s192 + $0x8] sm:$0xff]
      %v633 = vld [vmem:[%s192 + $0x10] sm:$0xff]
      %v634 = vld [vmem:[%s192 + $0x18] sm:$0xf]
      %v635 = vld [vmem:[%s192 + $0x20] sm:$0xff]
      %v636 = vld [vmem:[%s192 + $0x28] sm:$0xff]
      %v637 = vld [vmem:[%s192 + $0x30] sm:$0xff]
      %v638 = vld [vmem:[%s192 + $0x38] sm:$0xf]
      %647 = vrot.lane.b32.xlu0 %v631, 107
      %v648 = vpop.permute.xlu0 %647
      %649 = vrot.lane.b32.xlu0 %v632, 107
      %v650 = vpop.permute.xlu0 %649
      %651 = vrot.lane.b32.xlu0 %v633, 107
      %v652 = vpop.permute.xlu0 %651
      %653 = vrot.lane.b32.xlu0 %v634, 107
      %v654 = vpop.permute.xlu0 %653
      %655 = vrot.lane.b32.xlu0 %v635, 107
      %v656 = vpop.permute.xlu0 %655
      %657 = vrot.lane.b32.xlu0 %v636, 107
      %v658 = vpop.permute.xlu0 %657
      %659 = vrot.lane.b32.xlu0 %v637, 107
      %v660 = vpop.permute.xlu0 %659
      %661 = vrot.lane.b32.xlu0 %v638, 107
      %v662 = vpop.permute.xlu0 %661
      %v663 = vrot.slane %v648, 4
      %v664 = vrot.slane %v650, 4
      %v665 = vrot.slane %v652, 4
      %v666 = vrot.slane %v654, 4
      %v667 = vrot.slane %v656, 4
      %v668 = vrot.slane %v658, 4
      %v669 = vrot.slane %v660, 4
      %v670 = vrot.slane %v662, 4
      %v671 = vsel %vm256, %v663, %v664
      %vm672 = vcmask 875520
      %v673 = vsel %vm672, %v648, %v671
      %v674 = vsel %vm256, %v664, %v665
      %v675 = vsel %vm672, %v650, %v674
      %v676 = vsel %vm256, %v665, %v666
      %v677 = vsel %vm672, %v652, %v676
      %v678 = vsel %vm256, %v667, %v668
      %v679 = vsel %vm672, %v656, %v678
      %v680 = vsel %vm256, %v668, %v669
      %v681 = vsel %vm672, %v658, %v680
      %v682 = vsel %vm256, %v669, %v670
      %v683 = vsel %vm672, %v660, %v682
      %692 = vst [vmem:[#allocation2 + $0x188] sm:$0xff] %v673
      %693 = vst [vmem:[#allocation2 + $0x190] sm:$0xff] %v675
      %694 = vst [vmem:[#allocation2 + $0x198] sm:$0xff] %v677
      %695 = vst.msk [vmem:[#allocation2 + $0x1a0] sm:$0xf] %vm210, %v654
      %696 = vst [vmem:[#allocation2 + $0x1a4] sm:$0xff] %v679
      %697 = vst [vmem:[#allocation2 + $0x1ac] sm:$0xff] %v681
      %698 = vst [vmem:[#allocation2 + $0x1b4] sm:$0xff] %v683
      %699 = vst.msk [vmem:[#allocation2 + $0x1bc] sm:$0xf] %vm210, %v662
      %v700 = vld [vmem:[%s192] sm:$0xff]
      %v701 = vld [vmem:[%s192 + $0x8] sm:$0xff]
      %v702 = vld [vmem:[%s192 + $0x10] sm:$0xff]
      %v703 = vld [vmem:[%s192 + $0x18] sm:$0xf]
      %v704 = vld [vmem:[%s192 + $0x20] sm:$0xff]
      %v705 = vld [vmem:[%s192 + $0x28] sm:$0xff]
      %v706 = vld [vmem:[%s192 + $0x30] sm:$0xff]
      %v707 = vld [vmem:[%s192 + $0x38] sm:$0xf]
      %716 = vrot.lane.b32.xlu0 %v700, 106
      %v717 = vpop.permute.xlu0 %716
      %718 = vrot.lane.b32.xlu0 %v701, 106
      %v719 = vpop.permute.xlu0 %718
      %720 = vrot.lane.b32.xlu0 %v702, 106
      %v721 = vpop.permute.xlu0 %720
      %722 = vrot.lane.b32.xlu0 %v703, 106
      %v723 = vpop.permute.xlu0 %722
      %724 = vrot.lane.b32.xlu0 %v704, 106
      %v725 = vpop.permute.xlu0 %724
      %726 = vrot.lane.b32.xlu0 %v705, 106
      %v727 = vpop.permute.xlu0 %726
      %728 = vrot.lane.b32.xlu0 %v706, 106
      %v729 = vpop.permute.xlu0 %728
      %730 = vrot.lane.b32.xlu0 %v707, 106
      %v731 = vpop.permute.xlu0 %730
      %v732 = vrot.slane %v717, 4
      %v733 = vrot.slane %v719, 4
      %v734 = vrot.slane %v721, 4
      %v735 = vrot.slane %v723, 4
      %v736 = vrot.slane %v725, 4
      %v737 = vrot.slane %v727, 4
      %v738 = vrot.slane %v729, 4
      %v739 = vrot.slane %v731, 4
      %v740 = vsel %vm256, %v732, %v733
      %vm741 = vcmask 867328
      %v742 = vsel %vm741, %v717, %v740
      %v743 = vsel %vm256, %v733, %v734
      %v744 = vsel %vm741, %v719, %v743
      %v745 = vsel %vm256, %v734, %v735
      %v746 = vsel %vm741, %v721, %v745
      %v747 = vsel %vm256, %v736, %v737
      %v748 = vsel %vm741, %v725, %v747
      %v749 = vsel %vm256, %v737, %v738
      %v750 = vsel %vm741, %v727, %v749
      %v751 = vsel %vm256, %v738, %v739
      %v752 = vsel %vm741, %v729, %v751
      %761 = vst [vmem:[#allocation2 + $0x1c0] sm:$0xff] %v742
      %762 = vst [vmem:[#allocation2 + $0x1c8] sm:$0xff] %v744
      %763 = vst [vmem:[#allocation2 + $0x1d0] sm:$0xff] %v746
      %764 = vst.msk [vmem:[#allocation2 + $0x1d8] sm:$0xf] %vm210, %v723
      %765 = vst [vmem:[#allocation2 + $0x1dc] sm:$0xff] %v748
      %766 = vst [vmem:[#allocation2 + $0x1e4] sm:$0xff] %v750
      %767 = vst [vmem:[#allocation2 + $0x1ec] sm:$0xff] %v752
      %768 = vst.msk [vmem:[#allocation2 + $0x1f4] sm:$0xf] %vm210, %v731
      %v769 = vld [vmem:[%s192] sm:$0xff]
      %v770 = vld [vmem:[%s192 + $0x8] sm:$0xff]
      %v771 = vld [vmem:[%s192 + $0x10] sm:$0xff]
      %v772 = vld [vmem:[%s192 + $0x18] sm:$0xf]
      %v773 = vld [vmem:[%s192 + $0x20] sm:$0xff]
      %v774 = vld [vmem:[%s192 + $0x28] sm:$0xff]
      %v775 = vld [vmem:[%s192 + $0x30] sm:$0xff]
      %v776 = vld [vmem:[%s192 + $0x38] sm:$0xf]
      %785 = vrot.lane.b32.xlu0 %v769, 28
      %v786 = vpop.permute.xlu0 %785
      %787 = vrot.lane.b32.xlu0 %v770, 28
      %v788 = vpop.permute.xlu0 %787
      %789 = vrot.lane.b32.xlu0 %v771, 28
      %v790 = vpop.permute.xlu0 %789
      %791 = vrot.lane.b32.xlu0 %v772, 28
      %v792 = vpop.permute.xlu0 %791
      %793 = vrot.lane.b32.xlu0 %v773, 28
      %v794 = vpop.permute.xlu0 %793
      %795 = vrot.lane.b32.xlu0 %v774, 28
      %v796 = vpop.permute.xlu0 %795
      %797 = vrot.lane.b32.xlu0 %v775, 28
      %v798 = vpop.permute.xlu0 %797
      %799 = vrot.lane.b32.xlu0 %v776, 28
      %v800 = vpop.permute.xlu0 %799
      %v801 = vrot.slane %v786, 4
      %v802 = vrot.slane %v788, 4
      %v803 = vrot.slane %v790, 4
      %v804 = vrot.slane %v792, 4
      %v805 = vrot.slane %v794, 4
      %v806 = vrot.slane %v796, 4
      %v807 = vrot.slane %v798, 4
      %v808 = vrot.slane %v800, 4
      %v809 = vsel %vm256, %v801, %v802
      %vm810 = vcmask 228352
      %v811 = vsel %vm810, %v786, %v809
      %v812 = vsel %vm256, %v802, %v803
      %v813 = vsel %vm810, %v788, %v812
      %v814 = vsel %vm256, %v803, %v804
      %v815 = vsel %vm810, %v790, %v814
      %v816 = vsel %vm256, %v805, %v806
      %v817 = vsel %vm810, %v794, %v816
      %v818 = vsel %vm256, %v806, %v807
      %v819 = vsel %vm810, %v796, %v818
      %v820 = vsel %vm256, %v807, %v808
      %v821 = vsel %vm810, %v798, %v820
      %830 = vst [vmem:[#allocation2 + $0x1f8] sm:$0xff] %v811
      %831 = vst [vmem:[#allocation2 + $0x200] sm:$0xff] %v813
      %832 = vst [vmem:[#allocation2 + $0x208] sm:$0xff] %v815
      %833 = vst.msk [vmem:[#allocation2 + $0x210] sm:$0xf] %vm210, %v792
      %834 = vst [vmem:[#allocation2 + $0x214] sm:$0xff] %v817
      %835 = vst [vmem:[#allocation2 + $0x21c] sm:$0xff] %v819
      %836 = vst [vmem:[#allocation2 + $0x224] sm:$0xff] %v821
      %837 = vst.msk [vmem:[#allocation2 + $0x22c] sm:$0xf] %vm210, %v800
      %v838 = vld [vmem:[%s192] sm:$0xff]
      %v839 = vld [vmem:[%s192 + $0x8] sm:$0xff]
      %v840 = vld [vmem:[%s192 + $0x10] sm:$0xff]
      %v841 = vld [vmem:[%s192 + $0x18] sm:$0xf]
      %v842 = vld [vmem:[%s192 + $0x20] sm:$0xff]
      %v843 = vld [vmem:[%s192 + $0x28] sm:$0xff]
      %v844 = vld [vmem:[%s192 + $0x30] sm:$0xff]
      %v845 = vld [vmem:[%s192 + $0x38] sm:$0xf]
      %854 = vrot.lane.b32.xlu0 %v838, 27
      %v855 = vpop.permute.xlu0 %854
      %856 = vrot.lane.b32.xlu0 %v839, 27
      %v857 = vpop.permute.xlu0 %856
      %858 = vrot.lane.b32.xlu0 %v840, 27
      %v859 = vpop.permute.xlu0 %858
      %860 = vrot.lane.b32.xlu0 %v841, 27
      %v861 = vpop.permute.xlu0 %860
      %862 = vrot.lane.b32.xlu0 %v842, 27
      %v863 = vpop.permute.xlu0 %862
      %864 = vrot.lane.b32.xlu0 %v843, 27
      %v865 = vpop.permute.xlu0 %864
      %866 = vrot.lane.b32.xlu0 %v844, 27
      %v867 = vpop.permute.xlu0 %866
      %868 = vrot.lane.b32.xlu0 %v845, 27
      %v869 = vpop.permute.xlu0 %868
      %v870 = vrot.slane %v855, 4
      %v871 = vrot.slane %v857, 4
      %v872 = vrot.slane %v859, 4
      %v873 = vrot.slane %v861, 4
      %v874 = vrot.slane %v863, 4
      %v875 = vrot.slane %v865, 4
      %v876 = vrot.slane %v867, 4
      %v877 = vrot.slane %v869, 4
      %v878 = vsel %vm256, %v870, %v871
      %vm879 = vcmask 220160
      %v880 = vsel %vm879, %v855, %v878
      %v881 = vsel %vm256, %v871, %v872
      %v882 = vsel %vm879, %v857, %v881
      %v883 = vsel %vm256, %v872, %v873
      %v884 = vsel %vm879, %v859, %v883
      %v885 = vsel %vm256, %v874, %v875
      %v886 = vsel %vm879, %v863, %v885
      %v887 = vsel %vm256, %v875, %v876
      %v888 = vsel %vm879, %v865, %v887
      %v889 = vsel %vm256, %v876, %v877
      %v890 = vsel %vm879, %v867, %v889
      %899 = vst [vmem:[#allocation2 + $0x230] sm:$0xff] %v880
      %900 = vst [vmem:[#allocation2 + $0x238] sm:$0xff] %v882
      %901 = vst [vmem:[#allocation2 + $0x240] sm:$0xff] %v884
      %902 = vst.msk [vmem:[#allocation2 + $0x248] sm:$0xf] %vm210, %v861
      %903 = vst [vmem:[#allocation2 + $0x24c] sm:$0xff] %v886
      %904 = vst [vmem:[#allocation2 + $0x254] sm:$0xff] %v888
      %905 = vst [vmem:[#allocation2 + $0x25c] sm:$0xff] %v890
      %906 = vst.msk [vmem:[#allocation2 + $0x264] sm:$0xf] %vm210, %v869
      %v907 = vld [vmem:[%s192] sm:$0xff]
      %v908 = vld [vmem:[%s192 + $0x8] sm:$0xff]
      %v909 = vld [vmem:[%s192 + $0x10] sm:$0xff]
      %v910 = vld [vmem:[%s192 + $0x18] sm:$0xf]
      %v911 = vld [vmem:[%s192 + $0x20] sm:$0xff]
      %v912 = vld [vmem:[%s192 + $0x28] sm:$0xff]
      %v913 = vld [vmem:[%s192 + $0x30] sm:$0xff]
      %v914 = vld [vmem:[%s192 + $0x38] sm:$0xf]
      %923 = vrot.lane.b32.xlu0 %v907, 26
      %v924 = vpop.permute.xlu0 %923
      %925 = vrot.lane.b32.xlu0 %v908, 26
      %v926 = vpop.permute.xlu0 %925
      %927 = vrot.lane.b32.xlu0 %v909, 26
      %v928 = vpop.permute.xlu0 %927
      %929 = vrot.lane.b32.xlu0 %v910, 26
      %v930 = vpop.permute.xlu0 %929
      %931 = vrot.lane.b32.xlu0 %v911, 26
      %v932 = vpop.permute.xlu0 %931
      %933 = vrot.lane.b32.xlu0 %v912, 26
      %v934 = vpop.permute.xlu0 %933
      %935 = vrot.lane.b32.xlu0 %v913, 26
      %v936 = vpop.permute.xlu0 %935
      %937 = vrot.lane.b32.xlu0 %v914, 26
      %v938 = vpop.permute.xlu0 %937
      %v939 = vrot.slane %v924, 4
      %v940 = vrot.slane %v926, 4
      %v941 = vrot.slane %v928, 4
      %v942 = vrot.slane %v930, 4
      %v943 = vrot.slane %v932, 4
      %v944 = vrot.slane %v934, 4
      %v945 = vrot.slane %v936, 4
      %v946 = vrot.slane %v938, 4
      %v947 = vsel %vm256, %v939, %v940
      %vm948 = vcmask 211968
      %v949 = vsel %vm948, %v924, %v947
      %v950 = vsel %vm256, %v940, %v941
      %v951 = vsel %vm948, %v926, %v950
      %v952 = vsel %vm256, %v941, %v942
      %v953 = vsel %vm948, %v928, %v952
      %v954 = vsel %vm256, %v943, %v944
      %v955 = vsel %vm948, %v932, %v954
      %v956 = vsel %vm256, %v944, %v945
      %v957 = vsel %vm948, %v934, %v956
      %v958 = vsel %vm256, %v945, %v946
      %v959 = vsel %vm948, %v936, %v958
      %968 = vst [vmem:[#allocation2 + $0x268] sm:$0xff] %v949
      %969 = vst [vmem:[#allocation2 + $0x270] sm:$0xff] %v951
      %970 = vst [vmem:[#allocation2 + $0x278] sm:$0xff] %v953
      %971 = vst.msk [vmem:[#allocation2 + $0x280] sm:$0xf] %vm210, %v930
      %972 = vst [vmem:[#allocation2 + $0x284] sm:$0xff] %v955
      %973 = vst [vmem:[#allocation2 + $0x28c] sm:$0xff] %v957
      %974 = vst [vmem:[#allocation2 + $0x294] sm:$0xff] %v959
      %975 = vst.msk [vmem:[#allocation2 + $0x29c] sm:$0xf] %vm210, %v938
      %v976 = vld [vmem:[%s192] sm:$0xff]
      %v977 = vld [vmem:[%s192 + $0x8] sm:$0xff]
      %v978 = vld [vmem:[%s192 + $0x10] sm:$0xff]
      %v979 = vld [vmem:[%s192 + $0x18] sm:$0xf]
      %v980 = vld [vmem:[%s192 + $0x20] sm:$0xff]
      %v981 = vld [vmem:[%s192 + $0x28] sm:$0xff]
      %v982 = vld [vmem:[%s192 + $0x30] sm:$0xff]
      %v983 = vld [vmem:[%s192 + $0x38] sm:$0xf]
      %992 = vrot.lane.b32.xlu0 %v976, 18
      %v993 = vpop.permute.xlu0 %992
      %994 = vrot.lane.b32.xlu0 %v977, 18
      %v995 = vpop.permute.xlu0 %994
      %996 = vrot.lane.b32.xlu0 %v978, 18
      %v997 = vpop.permute.xlu0 %996
      %998 = vrot.lane.b32.xlu0 %v979, 18
      %v999 = vpop.permute.xlu0 %998
      %1000 = vrot.lane.b32.xlu0 %v980, 18
      %v1001 = vpop.permute.xlu0 %1000
      %1002 = vrot.lane.b32.xlu0 %v981, 18
      %v1003 = vpop.permute.xlu0 %1002
      %1004 = vrot.lane.b32.xlu0 %v982, 18
      %v1005 = vpop.permute.xlu0 %1004
      %1006 = vrot.lane.b32.xlu0 %v983, 18
      %v1007 = vpop.permute.xlu0 %1006
      %v1008 = vrot.slane %v993, 4
      %v1009 = vrot.slane %v995, 4
      %v1010 = vrot.slane %v997, 4
      %v1011 = vrot.slane %v999, 4
      %v1012 = vrot.slane %v1001, 4
      %v1013 = vrot.slane %v1003, 4
      %v1014 = vrot.slane %v1005, 4
      %v1015 = vrot.slane %v1007, 4
      %v1016 = vsel %vm256, %v1008, %v1009
      %vm1017 = vcmask 146432
      %v1018 = vsel %vm1017, %v993, %v1016
      %v1019 = vsel %vm256, %v1009, %v1010
      %v1020 = vsel %vm1017, %v995, %v1019
      %v1021 = vsel %vm256, %v1010, %v1011
      %v1022 = vsel %vm1017, %v997, %v1021
      %v1023 = vsel %vm256, %v1012, %v1013
      %v1024 = vsel %vm1017, %v1001, %v1023
      %v1025 = vsel %vm256, %v1013, %v1014
      %v1026 = vsel %vm1017, %v1003, %v1025
      %v1027 = vsel %vm256, %v1014, %v1015
      %v1028 = vsel %vm1017, %v1005, %v1027
      %1037 = vst [vmem:[#allocation2 + $0x2a0] sm:$0xff] %v1018
      %1038 = vst [vmem:[#allocation2 + $0x2a8] sm:$0xff] %v1020
      %1039 = vst [vmem:[#allocation2 + $0x2b0] sm:$0xff] %v1022
      %1040 = vst.msk [vmem:[#allocation2 + $0x2b8] sm:$0xf] %vm210, %v999
      %1041 = vst [vmem:[#allocation2 + $0x2bc] sm:$0xff] %v1024
      %1042 = vst [vmem:[#allocation2 + $0x2c4] sm:$0xff] %v1026
      %1043 = vst [vmem:[#allocation2 + $0x2cc] sm:$0xff] %v1028
      %1044 = vst.msk [vmem:[#allocation2 + $0x2d4] sm:$0xf] %vm210, %v1007
      %v1045 = vld [vmem:[%s192] sm:$0xff]
      %v1046 = vld [vmem:[%s192 + $0x8] sm:$0xff]
      %v1047 = vld [vmem:[%s192 + $0x10] sm:$0xff]
      %v1048 = vld [vmem:[%s192 + $0x18] sm:$0xf]
      %v1049 = vld [vmem:[%s192 + $0x20] sm:$0xff]
      %v1050 = vld [vmem:[%s192 + $0x28] sm:$0xff]
      %v1051 = vld [vmem:[%s192 + $0x30] sm:$0xff]
      %v1052 = vld [vmem:[%s192 + $0x38] sm:$0xf]
      %1061 = vrot.lane.b32.xlu0 %v1045, 17
      %v1062 = vpop.permute.xlu0 %1061
      %1063 = vrot.lane.b32.xlu0 %v1046, 17
      %v1064 = vpop.permute.xlu0 %1063
      %1065 = vrot.lane.b32.xlu0 %v1047, 17
      %v1066 = vpop.permute.xlu0 %1065
      %1067 = vrot.lane.b32.xlu0 %v1048, 17
      %v1068 = vpop.permute.xlu0 %1067
      %1069 = vrot.lane.b32.xlu0 %v1049, 17
      %v1070 = vpop.permute.xlu0 %1069
      %1071 = vrot.lane.b32.xlu0 %v1050, 17
      %v1072 = vpop.permute.xlu0 %1071
      %1073 = vrot.lane.b32.xlu0 %v1051, 17
      %v1074 = vpop.permute.xlu0 %1073
      %1075 = vrot.lane.b32.xlu0 %v1052, 17
      %v1076 = vpop.permute.xlu0 %1075
      %v1077 = vrot.slane %v1062, 4
      %v1078 = vrot.slane %v1064, 4
      %v1079 = vrot.slane %v1066, 4
      %v1080 = vrot.slane %v1068, 4
      %v1081 = vrot.slane %v1070, 4
      %v1082 = vrot.slane %v1072, 4
      %v1083 = vrot.slane %v1074, 4
      %v1084 = vrot.slane %v1076, 4
      %v1085 = vsel %vm256, %v1077, %v1078
      %vm1086 = vcmask 138240
      %v1087 = vsel %vm1086, %v1062, %v1085
      %v1088 = vsel %vm256, %v1078, %v1079
      %v1089 = vsel %vm1086, %v1064, %v1088
      %v1090 = vsel %vm256, %v1079, %v1080
      %v1091 = vsel %vm1086, %v1066, %v1090
      %v1092 = vsel %vm256, %v1081, %v1082
      %v1093 = vsel %vm1086, %v1070, %v1092
      %v1094 = vsel %vm256, %v1082, %v1083
      %v1095 = vsel %vm1086, %v1072, %v1094
      %v1096 = vsel %vm256, %v1083, %v1084
      %v1097 = vsel %vm1086, %v1074, %v1096
      %1106 = vst [vmem:[#allocation2 + $0x2d8] sm:$0xff] %v1087
      %1107 = vst [vmem:[#allocation2 + $0x2e0] sm:$0xff] %v1089
      %1108 = vst [vmem:[#allocation2 + $0x2e8] sm:$0xff] %v1091
      %1109 = vst.msk [vmem:[#allocation2 + $0x2f0] sm:$0xf] %vm210, %v1068
      %1110 = vst [vmem:[#allocation2 + $0x2f4] sm:$0xff] %v1093
      %1111 = vst [vmem:[#allocation2 + $0x2fc] sm:$0xff] %v1095
      %1112 = vst [vmem:[#allocation2 + $0x304] sm:$0xff] %v1097
      %1113 = vst.msk [vmem:[#allocation2 + $0x30c] sm:$0xf] %vm210, %v1076
      %v1114 = vld [vmem:[%s192] sm:$0xff]
      %v1115 = vld [vmem:[%s192 + $0x8] sm:$0xff]
      %v1116 = vld [vmem:[%s192 + $0x10] sm:$0xff]
      %v1117 = vld [vmem:[%s192 + $0x18] sm:$0xf]
      %v1118 = vld [vmem:[%s192 + $0x20] sm:$0xff]
      %v1119 = vld [vmem:[%s192 + $0x28] sm:$0xff]
      %v1120 = vld [vmem:[%s192 + $0x30] sm:$0xff]
      %v1121 = vld [vmem:[%s192 + $0x38] sm:$0xf]
      %1130 = vrot.lane.b32.xlu0 %v1114, 16
      %v1131 = vpop.permute.xlu0 %1130
      %1132 = vrot.lane.b32.xlu0 %v1115, 16
      %v1133 = vpop.permute.xlu0 %1132
      %1134 = vrot.lane.b32.xlu0 %v1116, 16
      %v1135 = vpop.permute.xlu0 %1134
      %1136 = vrot.lane.b32.xlu0 %v1117, 16
      %v1137 = vpop.permute.xlu0 %1136
      %1138 = vrot.lane.b32.xlu0 %v1118, 16
      %v1139 = vpop.permute.xlu0 %1138
      %1140 = vrot.lane.b32.xlu0 %v1119, 16
      %v1141 = vpop.permute.xlu0 %1140
      %1142 = vrot.lane.b32.xlu0 %v1120, 16
      %v1143 = vpop.permute.xlu0 %1142
      %1144 = vrot.lane.b32.xlu0 %v1121, 16
      %v1145 = vpop.permute.xlu0 %1144
      %v1146 = vrot.slane %v1131, 4
      %v1147 = vrot.slane %v1133, 4
      %v1148 = vrot.slane %v1135, 4
      %v1149 = vrot.slane %v1137, 4
      %v1150 = vrot.slane %v1139, 4
      %v1151 = vrot.slane %v1141, 4
      %v1152 = vrot.slane %v1143, 4
      %v1153 = vrot.slane %v1145, 4
      %v1154 = vsel %vm256, %v1146, %v1147
      %vm1155 = vcmask 130048
      %v1156 = vsel %vm1155, %v1131, %v1154
      %v1157 = vsel %vm256, %v1147, %v1148
      %v1158 = vsel %vm1155, %v1133, %v1157
      %v1159 = vsel %vm256, %v1148, %v1149
      %v1160 = vsel %vm1155, %v1135, %v1159
      %v1161 = vsel %vm256, %v1150, %v1151
      %v1162 = vsel %vm1155, %v1139, %v1161
      %v1163 = vsel %vm256, %v1151, %v1152
      %v1164 = vsel %vm1155, %v1141, %v1163
      %v1165 = vsel %vm256, %v1152, %v1153
      %v1166 = vsel %vm1155, %v1143, %v1165
      %1175 = vst [vmem:[#allocation2 + $0x310] sm:$0xff] %v1156
      %1176 = vst [vmem:[#allocation2 + $0x318] sm:$0xff] %v1158
      %1177 = vst [vmem:[#allocation2 + $0x320] sm:$0xff] %v1160
      %1178 = vst.msk [vmem:[#allocation2 + $0x328] sm:$0xf] %vm210, %v1137
      %1179 = vst [vmem:[#allocation2 + $0x32c] sm:$0xff] %v1162
      %1180 = vst [vmem:[#allocation2 + $0x334] sm:$0xff] %v1164
      %1181 = vst [vmem:[#allocation2 + $0x33c] sm:$0xff] %v1166
      %1182 = vst.msk [vmem:[#allocation2 + $0x344] sm:$0xf] %vm210, %v1145
      %v1183 = vld [vmem:[%s192] sm:$0xff]
      %v1184 = vld [vmem:[%s192 + $0x8] sm:$0xff]
      %v1185 = vld [vmem:[%s192 + $0x10] sm:$0xff]
      %v1186 = vld [vmem:[%s192 + $0x18] sm:$0xff]
      %v1187 = vld [vmem:[%s192 + $0x20] sm:$0xff]
      %v1188 = vld [vmem:[%s192 + $0x28] sm:$0xff]
      %v1189 = vld [vmem:[%s192 + $0x30] sm:$0xff]
      %v1190 = vld [vmem:[%s192 + $0x38] sm:$0xff]
      %1199 = vrot.lane.b32.xlu0 %v1183, 8
      %v1200 = vpop.permute.xlu0 %1199
      %1201 = vrot.lane.b32.xlu0 %v1184, 8
      %v1202 = vpop.permute.xlu0 %1201
      %1203 = vrot.lane.b32.xlu0 %v1185, 8
      %v1204 = vpop.permute.xlu0 %1203
      %1205 = vrot.lane.b32.xlu0 %v1186, 8
      %v1206 = vpop.permute.xlu0 %1205
      %1207 = vrot.lane.b32.xlu0 %v1187, 8
      %v1208 = vpop.permute.xlu0 %1207
      %1209 = vrot.lane.b32.xlu0 %v1188, 8
      %v1210 = vpop.permute.xlu0 %1209
      %1211 = vrot.lane.b32.xlu0 %v1189, 8
      %v1212 = vpop.permute.xlu0 %1211
      %1213 = vrot.lane.b32.xlu0 %v1190, 8
      %v1214 = vpop.permute.xlu0 %1213
      %v1215 = vrot.slane %v1200, 4
      %v1216 = vrot.slane %v1202, 4
      %v1217 = vrot.slane %v1204, 4
      %v1218 = vrot.slane %v1206, 4
      %v1219 = vrot.slane %v1208, 4
      %v1220 = vrot.slane %v1210, 4
      %v1221 = vrot.slane %v1212, 4
      %v1222 = vrot.slane %v1214, 4
      %v1223 = vsel %vm256, %v1215, %v1216
      %vm1224 = vcmask 64512
      %v1225 = vsel %vm1224, %v1200, %v1223
      %v1226 = vsel %vm256, %v1216, %v1217
      %v1227 = vsel %vm1224, %v1202, %v1226
      %v1228 = vsel %vm256, %v1217, %v1218
      %v1229 = vsel %vm1224, %v1204, %v1228
      %v1230 = vsel %vm1224, %v1206, %v1218
      %v1231 = vsel %vm256, %v1219, %v1220
      %v1232 = vsel %vm1224, %v1208, %v1231
      %v1233 = vsel %vm256, %v1220, %v1221
      %v1234 = vsel %vm1224, %v1210, %v1233
      %v1235 = vsel %vm256, %v1221, %v1222
      %v1236 = vsel %vm1224, %v1212, %v1235
      %v1237 = vsel %vm1224, %v1214, %v1222
      %1246 = vst [vmem:[#allocation2 + $0x348] sm:$0xff] %v1225
      %1247 = vst [vmem:[#allocation2 + $0x350] sm:$0xff] %v1227
      %1248 = vst [vmem:[#allocation2 + $0x358] sm:$0xff] %v1229
      %1249 = vst.msk [vmem:[#allocation2 + $0x360] sm:$0xf] %vm210, %v1230
      %1250 = vst [vmem:[#allocation2 + $0x364] sm:$0xff] %v1232
      %1251 = vst [vmem:[#allocation2 + $0x36c] sm:$0xff] %v1234
      %1252 = vst [vmem:[#allocation2 + $0x374] sm:$0xff] %v1236
      %1253 = vst.msk [vmem:[#allocation2 + $0x37c] sm:$0xf] %vm210, %v1237
      %v1254 = vld [vmem:[%s192] sm:$0xff]
      %v1255 = vld [vmem:[%s192 + $0x8] sm:$0xff]
      %v1256 = vld [vmem:[%s192 + $0x10] sm:$0xff]
      %v1257 = vld [vmem:[%s192 + $0x18] sm:$0xff]
      %v1258 = vld [vmem:[%s192 + $0x20] sm:$0xff]
      %v1259 = vld [vmem:[%s192 + $0x28] sm:$0xff]
      %v1260 = vld [vmem:[%s192 + $0x30] sm:$0xff]
      %v1261 = vld [vmem:[%s192 + $0x38] sm:$0xff]
      %1270 = vrot.lane.b32.xlu0 %v1254, 7
      %v1271 = vpop.permute.xlu0 %1270
      %1272 = vrot.lane.b32.xlu0 %v1255, 7
      %v1273 = vpop.permute.xlu0 %1272
      %1274 = vrot.lane.b32.xlu0 %v1256, 7
      %v1275 = vpop.permute.xlu0 %1274
      %1276 = vrot.lane.b32.xlu0 %v1257, 7
      %v1277 = vpop.permute.xlu0 %1276
      %1278 = vrot.lane.b32.xlu0 %v1258, 7
      %v1279 = vpop.permute.xlu0 %1278
      %1280 = vrot.lane.b32.xlu0 %v1259, 7
      %v1281 = vpop.permute.xlu0 %1280
      %1282 = vrot.lane.b32.xlu0 %v1260, 7
      %v1283 = vpop.permute.xlu0 %1282
      %1284 = vrot.lane.b32.xlu0 %v1261, 7
      %v1285 = vpop.permute.xlu0 %1284
      %v1286 = vrot.slane %v1271, 4
      %v1287 = vrot.slane %v1273, 4
      %v1288 = vrot.slane %v1275, 4
      %v1289 = vrot.slane %v1277, 4
      %v1290 = vrot.slane %v1279, 4
      %v1291 = vrot.slane %v1281, 4
      %v1292 = vrot.slane %v1283, 4
      %v1293 = vrot.slane %v1285, 4
      %v1294 = vsel %vm256, %v1286, %v1287
      %vm1295 = vcmask 56320
      %v1296 = vsel %vm1295, %v1271, %v1294
      %v1297 = vsel %vm256, %v1287, %v1288
      %v1298 = vsel %vm1295, %v1273, %v1297
      %v1299 = vsel %vm256, %v1288, %v1289
      %v1300 = vsel %vm1295, %v1275, %v1299
      %v1301 = vsel %vm1295, %v1277, %v1289
      %v1302 = vsel %vm256, %v1290, %v1291
      %v1303 = vsel %vm1295, %v1279, %v1302
      %v1304 = vsel %vm256, %v1291, %v1292
      %v1305 = vsel %vm1295, %v1281, %v1304
      %v1306 = vsel %vm256, %v1292, %v1293
      %v1307 = vsel %vm1295, %v1283, %v1306
      %v1308 = vsel %vm1295, %v1285, %v1293
      %1317 = vst [vmem:[#allocation2 + $0x380] sm:$0xff] %v1296
      %1318 = vst [vmem:[#allocation2 + $0x388] sm:$0xff] %v1298
      %1319 = vst [vmem:[#allocation2 + $0x390] sm:$0xff] %v1300
      %1320 = vst.msk [vmem:[#allocation2 + $0x398] sm:$0xf] %vm210, %v1301
      %1321 = vst [vmem:[#allocation2 + $0x39c] sm:$0xff] %v1303
      %1322 = vst [vmem:[#allocation2 + $0x3a4] sm:$0xff] %v1305
      %1323 = vst [vmem:[#allocation2 + $0x3ac] sm:$0xff] %v1307
      %1324 = vst.msk [vmem:[#allocation2 + $0x3b4] sm:$0xf] %vm210, %v1308
      %v1325 = vld [vmem:[%s192] sm:$0xff]
      %v1326 = vld [vmem:[%s192 + $0x8] sm:$0xff]
      %v1327 = vld [vmem:[%s192 + $0x10] sm:$0xff]
      %v1328 = vld [vmem:[%s192 + $0x18] sm:$0xff]
      %v1329 = vld [vmem:[%s192 + $0x20] sm:$0xff]
      %v1330 = vld [vmem:[%s192 + $0x28] sm:$0xff]
      %v1331 = vld [vmem:[%s192 + $0x30] sm:$0xff]
      %v1332 = vld [vmem:[%s192 + $0x38] sm:$0xff]
      %1341 = vrot.lane.b32.xlu0 %v1325, 6
      %v1342 = vpop.permute.xlu0 %1341
      %1343 = vrot.lane.b32.xlu0 %v1326, 6
      %v1344 = vpop.permute.xlu0 %1343
      %1345 = vrot.lane.b32.xlu0 %v1327, 6
      %v1346 = vpop.permute.xlu0 %1345
      %1347 = vrot.lane.b32.xlu0 %v1328, 6
      %v1348 = vpop.permute.xlu0 %1347
      %1349 = vrot.lane.b32.xlu0 %v1329, 6
      %v1350 = vpop.permute.xlu0 %1349
      %1351 = vrot.lane.b32.xlu0 %v1330, 6
      %v1352 = vpop.permute.xlu0 %1351
      %1353 = vrot.lane.b32.xlu0 %v1331, 6
      %v1354 = vpop.permute.xlu0 %1353
      %1355 = vrot.lane.b32.xlu0 %v1332, 6
      %v1356 = vpop.permute.xlu0 %1355
      %v1357 = vrot.slane %v1342, 4
      %v1358 = vrot.slane %v1344, 4
      %v1359 = vrot.slane %v1346, 4
      %v1360 = vrot.slane %v1348, 4
      %v1361 = vrot.slane %v1350, 4
      %v1362 = vrot.slane %v1352, 4
      %v1363 = vrot.slane %v1354, 4
      %v1364 = vrot.slane %v1356, 4
      %v1365 = vsel %vm256, %v1357, %v1358
      %vm1366 = vcmask 48128
      %v1367 = vsel %vm1366, %v1342, %v1365
      %v1368 = vsel %vm256, %v1358, %v1359
      %v1369 = vsel %vm1366, %v1344, %v1368
      %v1370 = vsel %vm256, %v1359, %v1360
      %v1371 = vsel %vm1366, %v1346, %v1370
      %v1372 = vsel %vm1366, %v1348, %v1360
      %v1373 = vsel %vm256, %v1361, %v1362
      %v1374 = vsel %vm1366, %v1350, %v1373
      %v1375 = vsel %vm256, %v1362, %v1363
      %v1376 = vsel %vm1366, %v1352, %v1375
      %v1377 = vsel %vm256, %v1363, %v1364
      %v1378 = vsel %vm1366, %v1354, %v1377
      %v1379 = vsel %vm1366, %v1356, %v1364
      %1388 = vst [vmem:[#allocation2 + $0x3b8] sm:$0xff] %v1367
      %1389 = vst [vmem:[#allocation2 + $0x3c0] sm:$0xff] %v1369
      %1390 = vst [vmem:[#allocation2 + $0x3c8] sm:$0xff] %v1371
      %1391 = vst.msk [vmem:[#allocation2 + $0x3d0] sm:$0xf] %vm210, %v1372
      %1392 = vst [vmem:[#allocation2 + $0x3d4] sm:$0xff] %v1374
      %1393 = vst [vmem:[#allocation2 + $0x3dc] sm:$0xff] %v1376
      %1394 = vst [vmem:[#allocation2 + $0x3e4] sm:$0xff] %v1378
      %1395 = vst.msk [vmem:[#allocation2 + $0x3ec] sm:$0xf] %vm210, %v1379
      %v1396 = vld [vmem:[%s192 + $0x4] sm:$0xff]
      %v1397 = vld [vmem:[%s192 + $0xc] sm:$0xff]
      %v1398 = vld [vmem:[%s192 + $0x14] sm:$0xff]
      %v1399 = vld [vmem:[%s192 + $0x1c] sm:$0xf]
      %v1400 = vld [vmem:[%s192 + $0x24] sm:$0xff]
      %v1401 = vld [vmem:[%s192 + $0x2c] sm:$0xff]
      %v1402 = vld [vmem:[%s192 + $0x34] sm:$0xff]
      %v1403 = vld [vmem:[%s192 + $0x3c] sm:$0xf]
      %1412 = vrot.lane.b32.xlu0 %v1396, 56
      %v1413 = vpop.permute.xlu0 %1412
      %1414 = vrot.lane.b32.xlu0 %v1397, 56
      %v1415 = vpop.permute.xlu0 %1414
      %1416 = vrot.lane.b32.xlu0 %v1398, 56
      %v1417 = vpop.permute.xlu0 %1416
      %1418 = vrot.lane.b32.xlu0 %v1399, 56
      %v1419 = vpop.permute.xlu0 %1418
      %1420 = vrot.lane.b32.xlu0 %v1400, 56
      %v1421 = vpop.permute.xlu0 %1420
      %1422 = vrot.lane.b32.xlu0 %v1401, 56
      %v1423 = vpop.permute.xlu0 %1422
      %1424 = vrot.lane.b32.xlu0 %v1402, 56
      %v1425 = vpop.permute.xlu0 %1424
      %1426 = vrot.lane.b32.xlu0 %v1403, 56
      %v1427 = vpop.permute.xlu0 %1426
      %v1428 = vrot.slane %v1413, 4
      %v1429 = vrot.slane %v1415, 4
      %v1430 = vrot.slane %v1417, 4
      %v1431 = vrot.slane %v1419, 4
      %v1432 = vrot.slane %v1421, 4
      %v1433 = vrot.slane %v1423, 4
      %v1434 = vrot.slane %v1425, 4
      %v1435 = vrot.slane %v1427, 4
      %v1436 = vsel %vm256, %v1428, %v1429
      %vm1437 = vcmask 457728
      %v1438 = vsel %vm1437, %v1413, %v1436
      %v1439 = vsel %vm256, %v1429, %v1430
      %v1440 = vsel %vm1437, %v1415, %v1439
      %v1441 = vsel %vm256, %v1430, %v1431
      %v1442 = vsel %vm1437, %v1417, %v1441
      %v1443 = vsel %vm256, %v1432, %v1433
      %v1444 = vsel %vm1437, %v1421, %v1443
      %v1445 = vsel %vm256, %v1433, %v1434
      %v1446 = vsel %vm1437, %v1423, %v1445
      %v1447 = vsel %vm256, %v1434, %v1435
      %v1448 = vsel %vm1437, %v1425, %v1447
      %1457 = vst [vmem:[#allocation2 + $0x3f0] sm:$0xff] %v1438
      %1458 = vst [vmem:[#allocation2 + $0x3f8] sm:$0xff] %v1440
      %1459 = vst [vmem:[#allocation2 + $0x400] sm:$0xff] %v1442
      %1460 = vst.msk [vmem:[#allocation2 + $0x408] sm:$0xf] %vm210, %v1419
      %1461 = vst [vmem:[#allocation2 + $0x40c] sm:$0xff] %v1444
      %1462 = vst [vmem:[#allocation2 + $0x414] sm:$0xff] %v1446
      %1463 = vst [vmem:[#allocation2 + $0x41c] sm:$0xff] %v1448
      %1464 = vst.msk [vmem:[#allocation2 + $0x424] sm:$0xf] %vm210, %v1427
      %v1465 = vld [vmem:[%s192 + $0x4] sm:$0xff]
      %v1466 = vld [vmem:[%s192 + $0xc] sm:$0xff]
      %v1467 = vld [vmem:[%s192 + $0x14] sm:$0xff]
      %v1468 = vld [vmem:[%s192 + $0x1c] sm:$0xf]
      %v1469 = vld [vmem:[%s192 + $0x24] sm:$0xff]
      %v1470 = vld [vmem:[%s192 + $0x2c] sm:$0xff]
      %v1471 = vld [vmem:[%s192 + $0x34] sm:$0xff]
      %v1472 = vld [vmem:[%s192 + $0x3c] sm:$0xf]
      %1481 = vrot.lane.b32.xlu0 %v1465, 55
      %v1482 = vpop.permute.xlu0 %1481
      %1483 = vrot.lane.b32.xlu0 %v1466, 55
      %v1484 = vpop.permute.xlu0 %1483
      %1485 = vrot.lane.b32.xlu0 %v1467, 55
      %v1486 = vpop.permute.xlu0 %1485
      %1487 = vrot.lane.b32.xlu0 %v1468, 55
      %v1488 = vpop.permute.xlu0 %1487
      %1489 = vrot.lane.b32.xlu0 %v1469, 55
      %v1490 = vpop.permute.xlu0 %1489
      %1491 = vrot.lane.b32.xlu0 %v1470, 55
      %v1492 = vpop.permute.xlu0 %1491
      %1493 = vrot.lane.b32.xlu0 %v1471, 55
      %v1494 = vpop.permute.xlu0 %1493
      %1495 = vrot.lane.b32.xlu0 %v1472, 55
      %v1496 = vpop.permute.xlu0 %1495
      %v1497 = vrot.slane %v1482, 4
      %v1498 = vrot.slane %v1484, 4
      %v1499 = vrot.slane %v1486, 4
      %v1500 = vrot.slane %v1488, 4
      %v1501 = vrot.slane %v1490, 4
      %v1502 = vrot.slane %v1492, 4
      %v1503 = vrot.slane %v1494, 4
      %v1504 = vrot.slane %v1496, 4
      %v1505 = vsel %vm256, %v1497, %v1498
      %vm1506 = vcmask 449536
      %v1507 = vsel %vm1506, %v1482, %v1505
      %v1508 = vsel %vm256, %v1498, %v1499
      %v1509 = vsel %vm1506, %v1484, %v1508
      %v1510 = vsel %vm256, %v1499, %v1500
      %v1511 = vsel %vm1506, %v1486, %v1510
      %v1512 = vsel %vm256, %v1501, %v1502
      %v1513 = vsel %vm1506, %v1490, %v1512
      %v1514 = vsel %vm256, %v1502, %v1503
      %v1515 = vsel %vm1506, %v1492, %v1514
      %v1516 = vsel %vm256, %v1503, %v1504
      %v1517 = vsel %vm1506, %v1494, %v1516
      %1526 = vst [vmem:[#allocation2 + $0x428] sm:$0xff] %v1507
      %1527 = vst [vmem:[#allocation2 + $0x430] sm:$0xff] %v1509
      %1528 = vst [vmem:[#allocation2 + $0x438] sm:$0xff] %v1511
      %1529 = vst.msk [vmem:[#allocation2 + $0x440] sm:$0xf] %vm210, %v1488
      %1530 = vst [vmem:[#allocation2 + $0x444] sm:$0xff] %v1513
      %1531 = vst [vmem:[#allocation2 + $0x44c] sm:$0xff] %v1515
      %1532 = vst [vmem:[#allocation2 + $0x454] sm:$0xff] %v1517
      %1533 = vst.msk [vmem:[#allocation2 + $0x45c] sm:$0xf] %vm210, %v1496
      %v1534 = vld [vmem:[%s192 + $0x4] sm:$0xff]
      %v1535 = vld [vmem:[%s192 + $0xc] sm:$0xff]
      %v1536 = vld [vmem:[%s192 + $0x14] sm:$0xff]
      %v1537 = vld [vmem:[%s192 + $0x1c] sm:$0xf]
      %v1538 = vld [vmem:[%s192 + $0x24] sm:$0xff]
      %v1539 = vld [vmem:[%s192 + $0x2c] sm:$0xff]
      %v1540 = vld [vmem:[%s192 + $0x34] sm:$0xff]
      %v1541 = vld [vmem:[%s192 + $0x3c] sm:$0xf]
      %1550 = vrot.lane.b32.xlu0 %v1534, 54
      %v1551 = vpop.permute.xlu0 %1550
      %1552 = vrot.lane.b32.xlu0 %v1535, 54
      %v1553 = vpop.permute.xlu0 %1552
      %1554 = vrot.lane.b32.xlu0 %v1536, 54
      %v1555 = vpop.permute.xlu0 %1554
      %1556 = vrot.lane.b32.xlu0 %v1537, 54
      %v1557 = vpop.permute.xlu0 %1556
      %1558 = vrot.lane.b32.xlu0 %v1538, 54
      %v1559 = vpop.permute.xlu0 %1558
      %1560 = vrot.lane.b32.xlu0 %v1539, 54
      %v1561 = vpop.permute.xlu0 %1560
      %1562 = vrot.lane.b32.xlu0 %v1540, 54
      %v1563 = vpop.permute.xlu0 %1562
      %1564 = vrot.lane.b32.xlu0 %v1541, 54
      %v1565 = vpop.permute.xlu0 %1564
      %v1566 = vrot.slane %v1551, 4
      %v1567 = vrot.slane %v1553, 4
      %v1568 = vrot.slane %v1555, 4
      %v1569 = vrot.slane %v1557, 4
      %v1570 = vrot.slane %v1559, 4
      %v1571 = vrot.slane %v1561, 4
      %v1572 = vrot.slane %v1563, 4
      %v1573 = vrot.slane %v1565, 4
      %v1574 = vsel %vm256, %v1566, %v1567
      %vm1575 = vcmask 441344
      %v1576 = vsel %vm1575, %v1551, %v1574
      %v1577 = vsel %vm256, %v1567, %v1568
      %v1578 = vsel %vm1575, %v1553, %v1577
      %v1579 = vsel %vm256, %v1568, %v1569
      %v1580 = vsel %vm1575, %v1555, %v1579
      %v1581 = vsel %vm256, %v1570, %v1571
      %v1582 = vsel %vm1575, %v1559, %v1581
      %v1583 = vsel %vm256, %v1571, %v1572
      %v1584 = vsel %vm1575, %v1561, %v1583
      %v1585 = vsel %vm256, %v1572, %v1573
      %v1586 = vsel %vm1575, %v1563, %v1585
      %1595 = vst [vmem:[#allocation2 + $0x460] sm:$0xff] %v1576
      %1596 = vst [vmem:[#allocation2 + $0x468] sm:$0xff] %v1578
      %1597 = vst [vmem:[#allocation2 + $0x470] sm:$0xff] %v1580
      %1598 = vst.msk [vmem:[#allocation2 + $0x478] sm:$0xf] %vm210, %v1557
      %1599 = vst [vmem:[#allocation2 + $0x47c] sm:$0xff] %v1582
      %1600 = vst [vmem:[#allocation2 + $0x484] sm:$0xff] %v1584
      %1601 = vst [vmem:[#allocation2 + $0x48c] sm:$0xff] %v1586
      %1602 = vst.msk [vmem:[#allocation2 + $0x494] sm:$0xf] %vm210, %v1565
      %v1603 = vld [vmem:[%s192 + $0x4] sm:$0xff]
      %v1604 = vld [vmem:[%s192 + $0xc] sm:$0xff]
      %v1605 = vld [vmem:[%s192 + $0x14] sm:$0xff]
      %v1606 = vld [vmem:[%s192 + $0x1c] sm:$0xf]
      %v1607 = vld [vmem:[%s192 + $0x24] sm:$0xff]
      %v1608 = vld [vmem:[%s192 + $0x2c] sm:$0xff]
      %v1609 = vld [vmem:[%s192 + $0x34] sm:$0xff]
      %v1610 = vld [vmem:[%s192 + $0x3c] sm:$0xf]
      %1619 = vrot.lane.b32.xlu0 %v1603, 46
      %v1620 = vpop.permute.xlu0 %1619
      %1621 = vrot.lane.b32.xlu0 %v1604, 46
      %v1622 = vpop.permute.xlu0 %1621
      %1623 = vrot.lane.b32.xlu0 %v1605, 46
      %v1624 = vpop.permute.xlu0 %1623
      %1625 = vrot.lane.b32.xlu0 %v1606, 46
      %v1626 = vpop.permute.xlu0 %1625
      %1627 = vrot.lane.b32.xlu0 %v1607, 46
      %v1628 = vpop.permute.xlu0 %1627
      %1629 = vrot.lane.b32.xlu0 %v1608, 46
      %v1630 = vpop.permute.xlu0 %1629
      %1631 = vrot.lane.b32.xlu0 %v1609, 46
      %v1632 = vpop.permute.xlu0 %1631
      %1633 = vrot.lane.b32.xlu0 %v1610, 46
      %v1634 = vpop.permute.xlu0 %1633
      %v1635 = vrot.slane %v1620, 4
      %v1636 = vrot.slane %v1622, 4
      %v1637 = vrot.slane %v1624, 4
      %v1638 = vrot.slane %v1626, 4
      %v1639 = vrot.slane %v1628, 4
      %v1640 = vrot.slane %v1630, 4
      %v1641 = vrot.slane %v1632, 4
      %v1642 = vrot.slane %v1634, 4
      %v1643 = vsel %vm256, %v1635, %v1636
      %vm1644 = vcmask 375808
      %v1645 = vsel %vm1644, %v1620, %v1643
      %v1646 = vsel %vm256, %v1636, %v1637
      %v1647 = vsel %vm1644, %v1622, %v1646
      %v1648 = vsel %vm256, %v1637, %v1638
      %v1649 = vsel %vm1644, %v1624, %v1648
      %v1650 = vsel %vm256, %v1639, %v1640
      %v1651 = vsel %vm1644, %v1628, %v1650
      %v1652 = vsel %vm256, %v1640, %v1641
      %v1653 = vsel %vm1644, %v1630, %v1652
      %v1654 = vsel %vm256, %v1641, %v1642
      %v1655 = vsel %vm1644, %v1632, %v1654
      %1664 = vst [vmem:[#allocation2 + $0x498] sm:$0xff] %v1645
      %1665 = vst [vmem:[#allocation2 + $0x4a0] sm:$0xff] %v1647
      %1666 = vst [vmem:[#allocation2 + $0x4a8] sm:$0xff] %v1649
      %1667 = vst.msk [vmem:[#allocation2 + $0x4b0] sm:$0xf] %vm210, %v1626
      %1668 = vst [vmem:[#allocation2 + $0x4b4] sm:$0xff] %v1651
      %1669 = vst [vmem:[#allocation2 + $0x4bc] sm:$0xff] %v1653
      %1670 = vst [vmem:[#allocation2 + $0x4c4] sm:$0xff] %v1655
      %1671 = vst.msk [vmem:[#allocation2 + $0x4cc] sm:$0xf] %vm210, %v1634
      %v1672 = vld [vmem:[%s192 + $0x4] sm:$0xff]
      %v1673 = vld [vmem:[%s192 + $0xc] sm:$0xff]
      %v1674 = vld [vmem:[%s192 + $0x14] sm:$0xff]
      %v1675 = vld [vmem:[%s192 + $0x1c] sm:$0xf]
      %v1676 = vld [vmem:[%s192 + $0x24] sm:$0xff]
      %v1677 = vld [vmem:[%s192 + $0x2c] sm:$0xff]
      %v1678 = vld [vmem:[%s192 + $0x34] sm:$0xff]
      %v1679 = vld [vmem:[%s192 + $0x3c] sm:$0xf]
      %1688 = vrot.lane.b32.xlu0 %v1672, 45
      %v1689 = vpop.permute.xlu0 %1688
      %1690 = vrot.lane.b32.xlu0 %v1673, 45
      %v1691 = vpop.permute.xlu0 %1690
      %1692 = vrot.lane.b32.xlu0 %v1674, 45
      %v1693 = vpop.permute.xlu0 %1692
      %1694 = vrot.lane.b32.xlu0 %v1675, 45
      %v1695 = vpop.permute.xlu0 %1694
      %1696 = vrot.lane.b32.xlu0 %v1676, 45
      %v1697 = vpop.permute.xlu0 %1696
      %1698 = vrot.lane.b32.xlu0 %v1677, 45
      %v1699 = vpop.permute.xlu0 %1698
      %1700 = vrot.lane.b32.xlu0 %v1678, 45
      %v1701 = vpop.permute.xlu0 %1700
      %1702 = vrot.lane.b32.xlu0 %v1679, 45
      %v1703 = vpop.permute.xlu0 %1702
      %v1704 = vrot.slane %v1689, 4
      %v1705 = vrot.slane %v1691, 4
      %v1706 = vrot.slane %v1693, 4
      %v1707 = vrot.slane %v1695, 4
      %v1708 = vrot.slane %v1697, 4
      %v1709 = vrot.slane %v1699, 4
      %v1710 = vrot.slane %v1701, 4
      %v1711 = vrot.slane %v1703, 4
      %v1712 = vsel %vm256, %v1704, %v1705
      %vm1713 = vcmask 367616
      %v1714 = vsel %vm1713, %v1689, %v1712
      %v1715 = vsel %vm256, %v1705, %v1706
      %v1716 = vsel %vm1713, %v1691, %v1715
      %v1717 = vsel %vm256, %v1706, %v1707
      %v1718 = vsel %vm1713, %v1693, %v1717
      %v1719 = vsel %vm256, %v1708, %v1709
      %v1720 = vsel %vm1713, %v1697, %v1719
      %v1721 = vsel %vm256, %v1709, %v1710
      %v1722 = vsel %vm1713, %v1699, %v1721
      %v1723 = vsel %vm256, %v1710, %v1711
      %v1724 = vsel %vm1713, %v1701, %v1723
      %1733 = vst [vmem:[#allocation2 + $0x4d0] sm:$0xff] %v1714
      %1734 = vst [vmem:[#allocation2 + $0x4d8] sm:$0xff] %v1716
      %1735 = vst [vmem:[#allocation2 + $0x4e0] sm:$0xff] %v1718
      %1736 = vst.msk [vmem:[#allocation2 + $0x4e8] sm:$0xf] %vm210, %v1695
      %1737 = vst [vmem:[#allocation2 + $0x4ec] sm:$0xff] %v1720
      %1738 = vst [vmem:[#allocation2 + $0x4f4] sm:$0xff] %v1722
      %1739 = vst [vmem:[#allocation2 + $0x4fc] sm:$0xff] %v1724
      %1740 = vst.msk [vmem:[#allocation2 + $0x504] sm:$0xf] %vm210, %v1703
      %v1741 = vld [vmem:[%s192 + $0x4] sm:$0xff]
      %v1742 = vld [vmem:[%s192 + $0xc] sm:$0xff]
      %v1743 = vld [vmem:[%s192 + $0x14] sm:$0xff]
      %v1744 = vld [vmem:[%s192 + $0x1c] sm:$0xf]
      %v1745 = vld [vmem:[%s192 + $0x24] sm:$0xff]
      %v1746 = vld [vmem:[%s192 + $0x2c] sm:$0xff]
      %v1747 = vld [vmem:[%s192 + $0x34] sm:$0xff]
      %v1748 = vld [vmem:[%s192 + $0x3c] sm:$0xf]
      %1757 = vrot.lane.b32.xlu0 %v1741, 44
      %v1758 = vpop.permute.xlu0 %1757
      %1759 = vrot.lane.b32.xlu0 %v1742, 44
      %v1760 = vpop.permute.xlu0 %1759
      %1761 = vrot.lane.b32.xlu0 %v1743, 44
      %v1762 = vpop.permute.xlu0 %1761
      %1763 = vrot.lane.b32.xlu0 %v1744, 44
      %v1764 = vpop.permute.xlu0 %1763
      %1765 = vrot.lane.b32.xlu0 %v1745, 44
      %v1766 = vpop.permute.xlu0 %1765
      %1767 = vrot.lane.b32.xlu0 %v1746, 44
      %v1768 = vpop.permute.xlu0 %1767
      %1769 = vrot.lane.b32.xlu0 %v1747, 44
      %v1770 = vpop.permute.xlu0 %1769
      %1771 = vrot.lane.b32.xlu0 %v1748, 44
      %v1772 = vpop.permute.xlu0 %1771
      %v1773 = vrot.slane %v1758, 4
      %v1774 = vrot.slane %v1760, 4
      %v1775 = vrot.slane %v1762, 4
      %v1776 = vrot.slane %v1764, 4
      %v1777 = vrot.slane %v1766, 4
      %v1778 = vrot.slane %v1768, 4
      %v1779 = vrot.slane %v1770, 4
      %v1780 = vrot.slane %v1772, 4
      %v1781 = vsel %vm256, %v1773, %v1774
      %vm1782 = vcmask 359424
      %v1783 = vsel %vm1782, %v1758, %v1781
      %v1784 = vsel %vm256, %v1774, %v1775
      %v1785 = vsel %vm1782, %v1760, %v1784
      %v1786 = vsel %vm256, %v1775, %v1776
      %v1787 = vsel %vm1782, %v1762, %v1786
      %v1788 = vsel %vm256, %v1777, %v1778
      %v1789 = vsel %vm1782, %v1766, %v1788
      %v1790 = vsel %vm256, %v1778, %v1779
      %v1791 = vsel %vm1782, %v1768, %v1790
      %v1792 = vsel %vm256, %v1779, %v1780
      %v1793 = vsel %vm1782, %v1770, %v1792
      %1802 = vst [vmem:[#allocation2 + $0x508] sm:$0xff] %v1783
      %1803 = vst [vmem:[#allocation2 + $0x510] sm:$0xff] %v1785
      %1804 = vst [vmem:[#allocation2 + $0x518] sm:$0xff] %v1787
      %1805 = vst.msk [vmem:[#allocation2 + $0x520] sm:$0xf] %vm210, %v1764
      %1806 = vst [vmem:[#allocation2 + $0x524] sm:$0xff] %v1789
      %1807 = vst [vmem:[#allocation2 + $0x52c] sm:$0xff] %v1791
      %1808 = vst [vmem:[#allocation2 + $0x534] sm:$0xff] %v1793
      %1809 = vst.msk [vmem:[#allocation2 + $0x53c] sm:$0xf] %vm210, %v1772
      %v1810 = vld [vmem:[%s192 + $0x4] sm:$0xff]
      %v1811 = vld [vmem:[%s192 + $0xc] sm:$0xff]
      %v1812 = vld [vmem:[%s192 + $0x14] sm:$0xff]
      %v1813 = vld [vmem:[%s192 + $0x1c] sm:$0xf]
      %v1814 = vld [vmem:[%s192 + $0x24] sm:$0xff]
      %v1815 = vld [vmem:[%s192 + $0x2c] sm:$0xff]
      %v1816 = vld [vmem:[%s192 + $0x34] sm:$0xff]
      %v1817 = vld [vmem:[%s192 + $0x3c] sm:$0xf]
      %1826 = vrot.lane.b32.xlu0 %v1810, 36
      %v1827 = vpop.permute.xlu0 %1826
      %1828 = vrot.lane.b32.xlu0 %v1811, 36
      %v1829 = vpop.permute.xlu0 %1828
      %1830 = vrot.lane.b32.xlu0 %v1812, 36
      %v1831 = vpop.permute.xlu0 %1830
      %1832 = vrot.lane.b32.xlu0 %v1813, 36
      %v1833 = vpop.permute.xlu0 %1832
      %1834 = vrot.lane.b32.xlu0 %v1814, 36
      %v1835 = vpop.permute.xlu0 %1834
      %1836 = vrot.lane.b32.xlu0 %v1815, 36
      %v1837 = vpop.permute.xlu0 %1836
      %1838 = vrot.lane.b32.xlu0 %v1816, 36
      %v1839 = vpop.permute.xlu0 %1838
      %1840 = vrot.lane.b32.xlu0 %v1817, 36
      %v1841 = vpop.permute.xlu0 %1840
      %v1842 = vrot.slane %v1827, 4
      %v1843 = vrot.slane %v1829, 4
      %v1844 = vrot.slane %v1831, 4
      %v1845 = vrot.slane %v1833, 4
      %v1846 = vrot.slane %v1835, 4
      %v1847 = vrot.slane %v1837, 4
      %v1848 = vrot.slane %v1839, 4
      %v1849 = vrot.slane %v1841, 4
      %v1850 = vsel %vm256, %v1842, %v1843
      %vm1851 = vcmask 293888
      %v1852 = vsel %vm1851, %v1827, %v1850
      %v1853 = vsel %vm256, %v1843, %v1844
      %v1854 = vsel %vm1851, %v1829, %v1853
      %v1855 = vsel %vm256, %v1844, %v1845
      %v1856 = vsel %vm1851, %v1831, %v1855
      %v1857 = vsel %vm256, %v1846, %v1847
      %v1858 = vsel %vm1851, %v1835, %v1857
      %v1859 = vsel %vm256, %v1847, %v1848
      %v1860 = vsel %vm1851, %v1837, %v1859
      %v1861 = vsel %vm256, %v1848, %v1849
      %v1862 = vsel %vm1851, %v1839, %v1861
      %1871 = vst [vmem:[#allocation2 + $0x540] sm:$0xff] %v1852
      %1872 = vst [vmem:[#allocation2 + $0x548] sm:$0xff] %v1854
      %1873 = vst [vmem:[#allocation2 + $0x550] sm:$0xff] %v1856
      %1874 = vst.msk [vmem:[#allocation2 + $0x558] sm:$0xf] %vm210, %v1833
      %1875 = vst [vmem:[#allocation2 + $0x55c] sm:$0xff] %v1858
      %1876 = vst [vmem:[#allocation2 + $0x564] sm:$0xff] %v1860
      %1877 = vst [vmem:[#allocation2 + $0x56c] sm:$0xff] %v1862
      %1878 = vst.msk [vmem:[#allocation2 + $0x574] sm:$0xf] %vm210, %v1841
      %v1879 = vld [vmem:[%s192 + $0x4] sm:$0xff]
      %v1880 = vld [vmem:[%s192 + $0xc] sm:$0xff]
      %v1881 = vld [vmem:[%s192 + $0x14] sm:$0xff]
      %v1882 = vld [vmem:[%s192 + $0x1c] sm:$0xf]
      %v1883 = vld [vmem:[%s192 + $0x24] sm:$0xff]
      %v1884 = vld [vmem:[%s192 + $0x2c] sm:$0xff]
      %v1885 = vld [vmem:[%s192 + $0x34] sm:$0xff]
      %v1886 = vld [vmem:[%s192 + $0x3c] sm:$0xf]
      %1895 = vrot.lane.b32.xlu0 %v1879, 35
      %v1896 = vpop.permute.xlu0 %1895
      %1897 = vrot.lane.b32.xlu0 %v1880, 35
      %v1898 = vpop.permute.xlu0 %1897
      %1899 = vrot.lane.b32.xlu0 %v1881, 35
      %v1900 = vpop.permute.xlu0 %1899
      %1901 = vrot.lane.b32.xlu0 %v1882, 35
      %v1902 = vpop.permute.xlu0 %1901
      %1903 = vrot.lane.b32.xlu0 %v1883, 35
      %v1904 = vpop.permute.xlu0 %1903
      %1905 = vrot.lane.b32.xlu0 %v1884, 35
      %v1906 = vpop.permute.xlu0 %1905
      %1907 = vrot.lane.b32.xlu0 %v1885, 35
      %v1908 = vpop.permute.xlu0 %1907
      %1909 = vrot.lane.b32.xlu0 %v1886, 35
      %v1910 = vpop.permute.xlu0 %1909
      %v1911 = vrot.slane %v1896, 4
      %v1912 = vrot.slane %v1898, 4
      %v1913 = vrot.slane %v1900, 4
      %v1914 = vrot.slane %v1902, 4
      %v1915 = vrot.slane %v1904, 4
      %v1916 = vrot.slane %v1906, 4
      %v1917 = vrot.slane %v1908, 4
      %v1918 = vrot.slane %v1910, 4
      %v1919 = vsel %vm256, %v1911, %v1912
      %vm1920 = vcmask 285696
      %v1921 = vsel %vm1920, %v1896, %v1919
      %v1922 = vsel %vm256, %v1912, %v1913
      %v1923 = vsel %vm1920, %v1898, %v1922
      %v1924 = vsel %vm256, %v1913, %v1914
      %v1925 = vsel %vm1920, %v1900, %v1924
      %v1926 = vsel %vm256, %v1915, %v1916
      %v1927 = vsel %vm1920, %v1904, %v1926
      %v1928 = vsel %vm256, %v1916, %v1917
      %v1929 = vsel %vm1920, %v1906, %v1928
      %v1930 = vsel %vm256, %v1917, %v1918
      %v1931 = vsel %vm1920, %v1908, %v1930
      %1940 = vst [vmem:[#allocation2 + $0x578] sm:$0xff] %v1921
      %1941 = vst [vmem:[#allocation2 + $0x580] sm:$0xff] %v1923
      %1942 = vst [vmem:[#allocation2 + $0x588] sm:$0xff] %v1925
      %1943 = vst.msk [vmem:[#allocation2 + $0x590] sm:$0xf] %vm210, %v1902
      %1944 = vst [vmem:[#allocation2 + $0x594] sm:$0xff] %v1927
      %1945 = vst [vmem:[#allocation2 + $0x59c] sm:$0xff] %v1929
      %1946 = vst [vmem:[#allocation2 + $0x5a4] sm:$0xff] %v1931
      %1947 = vst.msk [vmem:[#allocation2 + $0x5ac] sm:$0xf] %vm210, %v1910
      %v1948 = vld [vmem:[%s192 + $0x4] sm:$0xff]
      %v1949 = vld [vmem:[%s192 + $0xc] sm:$0xff]
      %v1950 = vld [vmem:[%s192 + $0x14] sm:$0xff]
      %v1951 = vld [vmem:[%s192 + $0x1c] sm:$0xf]
      %v1952 = vld [vmem:[%s192 + $0x24] sm:$0xff]
      %v1953 = vld [vmem:[%s192 + $0x2c] sm:$0xff]
      %v1954 = vld [vmem:[%s192 + $0x34] sm:$0xff]
      %v1955 = vld [vmem:[%s192 + $0x3c] sm:$0xf]
      %1964 = vrot.lane.b32.xlu0 %v1948, 34
      %v1965 = vpop.permute.xlu0 %1964
      %1966 = vrot.lane.b32.xlu0 %v1949, 34
      %v1967 = vpop.permute.xlu0 %1966
      %1968 = vrot.lane.b32.xlu0 %v1950, 34
      %v1969 = vpop.permute.xlu0 %1968
      %1970 = vrot.lane.b32.xlu0 %v1951, 34
      %v1971 = vpop.permute.xlu0 %1970
      %1972 = vrot.lane.b32.xlu0 %v1952, 34
      %v1973 = vpop.permute.xlu0 %1972
      %1974 = vrot.lane.b32.xlu0 %v1953, 34
      %v1975 = vpop.permute.xlu0 %1974
      %1976 = vrot.lane.b32.xlu0 %v1954, 34
      %v1977 = vpop.permute.xlu0 %1976
      %1978 = vrot.lane.b32.xlu0 %v1955, 34
      %v1979 = vpop.permute.xlu0 %1978
      %v1980 = vrot.slane %v1965, 4
      %v1981 = vrot.slane %v1967, 4
      %v1982 = vrot.slane %v1969, 4
      %v1983 = vrot.slane %v1971, 4
      %v1984 = vrot.slane %v1973, 4
      %v1985 = vrot.slane %v1975, 4
      %v1986 = vrot.slane %v1977, 4
      %v1987 = vrot.slane %v1979, 4
      %v1988 = vsel %vm256, %v1980, %v1981
      %vm1989 = vcmask 277504
      %v1990 = vsel %vm1989, %v1965, %v1988
      %v1991 = vsel %vm256, %v1981, %v1982
      %v1992 = vsel %vm1989, %v1967, %v1991
      %v1993 = vsel %vm256, %v1982, %v1983
      %v1994 = vsel %vm1989, %v1969, %v1993
      %v1995 = vsel %vm256, %v1984, %v1985
      %v1996 = vsel %vm1989, %v1973, %v1995
      %v1997 = vsel %vm256, %v1985, %v1986
      %v1998 = vsel %vm1989, %v1975, %v1997
      %v1999 = vsel %vm256, %v1986, %v1987
      %v2000 = vsel %vm1989, %v1977, %v1999
      %2009 = vst [vmem:[#allocation2 + $0x5b0] sm:$0xff] %v1990
      %2010 = vst [vmem:[#allocation2 + $0x5b8] sm:$0xff] %v1992
      %2011 = vst [vmem:[#allocation2 + $0x5c0] sm:$0xff] %v1994
      %2012 = vst.msk [vmem:[#allocation2 + $0x5c8] sm:$0xf] %vm210, %v1971
      %2013 = vst [vmem:[#allocation2 + $0x5cc] sm:$0xff] %v1996
      %2014 = vst [vmem:[#allocation2 + $0x5d4] sm:$0xff] %v1998
      %2015 = vst [vmem:[#allocation2 + $0x5dc] sm:$0xff] %v2000
      %2016 = vst.msk [vmem:[#allocation2 + $0x5e4] sm:$0xf] %vm210, %v1979
      %v2017 = vld [vmem:[%s1] sm:$0xff]
      %v2018 = vld [vmem:[%s1 + $0x8] sm:$0xff]
      %v2019 = vld [vmem:[#allocation2] sm:$0xff]
      %v2020 = vld [vmem:[#allocation2 + $0x8] sm:$0xff]
      %v2021 = vld [vmem:[#allocation2 + $0x10] sm:$0xff]
      %v2022 = vld [vmem:[#allocation2 + $0x18] sm:$0xf]
      %v2023 = vld [vmem:[#allocation2 + $0x1c] sm:$0xff]
      %v2024 = vld [vmem:[#allocation2 + $0x24] sm:$0xff]
      %v2025 = vld [vmem:[#allocation2 + $0x2c] sm:$0xff]
      %v2026 = vld [vmem:[#allocation2 + $0x34] sm:$0xf]
      %v2027 = vld [vmem:[#allocation2 + $0x38] sm:$0xff]
      %v2028 = vld [vmem:[#allocation2 + $0x40] sm:$0xff]
      %v2029 = vld [vmem:[#allocation2 + $0x48] sm:$0xff]
      %v2030 = vld [vmem:[#allocation2 + $0x50] sm:$0xf]
      %v2031 = vld [vmem:[#allocation2 + $0x54] sm:$0xff]
      %v2032 = vld [vmem:[#allocation2 + $0x5c] sm:$0xff]
      %v2033 = vld [vmem:[#allocation2 + $0x64] sm:$0xff]
      %v2034 = vld [vmem:[#allocation2 + $0x6c] sm:$0xf]
      %v2035 = vld [vmem:[#allocation2 + $0x70] sm:$0xff]
      %v2036 = vld [vmem:[#allocation2 + $0x78] sm:$0xff]
      %v2037 = vld [vmem:[#allocation2 + $0x80] sm:$0xff]
      %v2038 = vld [vmem:[#allocation2 + $0x88] sm:$0xf]
      %v2039 = vld [vmem:[#allocation2 + $0x8c] sm:$0xff]
      %v2040 = vld [vmem:[#allocation2 + $0x94] sm:$0xff]
      %v2041 = vld [vmem:[#allocation2 + $0x9c] sm:$0xff]
      %v2042 = vld [vmem:[#allocation2 + $0xa4] sm:$0xf]
      %v2043 = vld [vmem:[#allocation2 + $0xa8] sm:$0xff]
      %v2044 = vld [vmem:[#allocation2 + $0xb0] sm:$0xff]
      %v2045 = vld [vmem:[#allocation2 + $0xb8] sm:$0xff]
      %v2046 = vld [vmem:[#allocation2 + $0xc0] sm:$0xf]
      %v2047 = vld [vmem:[#allocation2 + $0xc4] sm:$0xff]
      %v2048 = vld [vmem:[#allocation2 + $0xcc] sm:$0xff]
      %v2049 = vld [vmem:[#allocation2 + $0xd4] sm:$0xff]
      %v2050 = vld [vmem:[#allocation2 + $0xdc] sm:$0xf]
      %v2051 = vld [vmem:[#allocation2 + $0xe0] sm:$0xff]
      %v2052 = vld [vmem:[#allocation2 + $0xe8] sm:$0xff]
      %v2053 = vld [vmem:[#allocation2 + $0xf0] sm:$0xff]
      %v2054 = vld [vmem:[#allocation2 + $0xf8] sm:$0xf]
      %v2055 = vld [vmem:[#allocation2 + $0xfc] sm:$0xff]
      %v2056 = vld [vmem:[#allocation2 + $0x104] sm:$0xff]
      %v2057 = vld [vmem:[#allocation2 + $0x10c] sm:$0xff]
      %v2058 = vld [vmem:[#allocation2 + $0x114] sm:$0xf]
      %v2059 = vld [vmem:[#allocation2 + $0x118] sm:$0xff]
      %v2060 = vld [vmem:[#allocation2 + $0x120] sm:$0xff]
      %v2061 = vld [vmem:[#allocation2 + $0x128] sm:$0xff]
      %v2062 = vld [vmem:[#allocation2 + $0x130] sm:$0xf]
      %v2063 = vld [vmem:[#allocation2 + $0x134] sm:$0xff]
      %v2064 = vld [vmem:[#allocation2 + $0x13c] sm:$0xff]
      %v2065 = vld [vmem:[#allocation2 + $0x144] sm:$0xff]
      %v2066 = vld [vmem:[#allocation2 + $0x14c] sm:$0xf]
      %v2067 = vld [vmem:[#allocation2 + $0x150] sm:$0xff]
      %v2068 = vld [vmem:[#allocation2 + $0x158] sm:$0xff]
      %v2069 = vld [vmem:[#allocation2 + $0x160] sm:$0xff]
      %v2070 = vld [vmem:[#allocation2 + $0x168] sm:$0xf]
      %v2071 = vld [vmem:[#allocation2 + $0x16c] sm:$0xff]
      %v2072 = vld [vmem:[#allocation2 + $0x174] sm:$0xff]
      %v2073 = vld [vmem:[#allocation2 + $0x17c] sm:$0xff]
      %v2074 = vld [vmem:[#allocation2 + $0x184] sm:$0xf]
      %v2075 = vld [vmem:[#allocation2 + $0x188] sm:$0xff]
      %v2076 = vld [vmem:[#allocation2 + $0x190] sm:$0xff]
      %v2077 = vld [vmem:[#allocation2 + $0x198] sm:$0xff]
      %v2078 = vld [vmem:[#allocation2 + $0x1a0] sm:$0xf]
      %v2079 = vld [vmem:[#allocation2 + $0x1a4] sm:$0xff]
      %v2080 = vld [vmem:[#allocation2 + $0x1ac] sm:$0xff]
      %v2081 = vld [vmem:[#allocation2 + $0x1b4] sm:$0xff]
      %v2082 = vld [vmem:[#allocation2 + $0x1bc] sm:$0xf]
      %v2083 = vld [vmem:[#allocation2 + $0x1c0] sm:$0xff]
      %v2084 = vld [vmem:[#allocation2 + $0x1c8] sm:$0xff]
      %v2085 = vld [vmem:[#allocation2 + $0x1d0] sm:$0xff]
      %v2086 = vld [vmem:[#allocation2 + $0x1d8] sm:$0xf]
      %v2087 = vld [vmem:[#allocation2 + $0x1dc] sm:$0xff]
      %v2088 = vld [vmem:[#allocation2 + $0x1e4] sm:$0xff]
      %v2089 = vld [vmem:[#allocation2 + $0x1ec] sm:$0xff]
      %v2090 = vld [vmem:[#allocation2 + $0x1f4] sm:$0xf]
      %v2091 = vld [vmem:[#allocation2 + $0x1f8] sm:$0xff]
      %v2092 = vld [vmem:[#allocation2 + $0x200] sm:$0xff]
      %v2093 = vld [vmem:[#allocation2 + $0x208] sm:$0xff]
      %v2094 = vld [vmem:[#allocation2 + $0x210] sm:$0xf]
      %v2095 = vld [vmem:[#allocation2 + $0x214] sm:$0xff]
      %v2096 = vld [vmem:[#allocation2 + $0x21c] sm:$0xff]
      %v2097 = vld [vmem:[#allocation2 + $0x224] sm:$0xff]
      %v2098 = vld [vmem:[#allocation2 + $0x22c] sm:$0xf]
      %v2099 = vld [vmem:[#allocation2 + $0x230] sm:$0xff]
      %v2100 = vld [vmem:[#allocation2 + $0x238] sm:$0xff]
      %v2101 = vld [vmem:[#allocation2 + $0x240] sm:$0xff]
      %v2102 = vld [vmem:[#allocation2 + $0x248] sm:$0xf]
      %v2103 = vld [vmem:[#allocation2 + $0x24c] sm:$0xff]
      %v2104 = vld [vmem:[#allocation2 + $0x254] sm:$0xff]
      %v2105 = vld [vmem:[#allocation2 + $0x25c] sm:$0xff]
      %v2106 = vld [vmem:[#allocation2 + $0x264] sm:$0xf]
      %v2107 = vld [vmem:[#allocation2 + $0x268] sm:$0xff]
      %v2108 = vld [vmem:[#allocation2 + $0x270] sm:$0xff]
      %v2109 = vld [vmem:[#allocation2 + $0x278] sm:$0xff]
      %v2110 = vld [vmem:[#allocation2 + $0x280] sm:$0xf]
      %v2111 = vld [vmem:[#allocation2 + $0x284] sm:$0xff]
      %v2112 = vld [vmem:[#allocation2 + $0x28c] sm:$0xff]
      %v2113 = vld [vmem:[#allocation2 + $0x294] sm:$0xff]
      %v2114 = vld [vmem:[#allocation2 + $0x29c] sm:$0xf]
      %v2115 = vld [vmem:[#allocation2 + $0x2a0] sm:$0xff]
      %v2116 = vld [vmem:[#allocation2 + $0x2a8] sm:$0xff]
      %v2117 = vld [vmem:[#allocation2 + $0x2b0] sm:$0xff]
      %v2118 = vld [vmem:[#allocation2 + $0x2b8] sm:$0xf]
      %v2119 = vld [vmem:[#allocation2 + $0x2bc] sm:$0xff]
      %v2120 = vld [vmem:[#allocation2 + $0x2c4] sm:$0xff]
      %v2121 = vld [vmem:[#allocation2 + $0x2cc] sm:$0xff]
      %v2122 = vld [vmem:[#allocation2 + $0x2d4] sm:$0xf]
      %v2123 = vld [vmem:[#allocation2 + $0x2d8] sm:$0xff]
      %v2124 = vld [vmem:[#allocation2 + $0x2e0] sm:$0xff]
      %v2125 = vld [vmem:[#allocation2 + $0x2e8] sm:$0xff]
      %v2126 = vld [vmem:[#allocation2 + $0x2f0] sm:$0xf]
      %v2127 = vld [vmem:[#allocation2 + $0x2f4] sm:$0xff]
      %v2128 = vld [vmem:[#allocation2 + $0x2fc] sm:$0xff]
      %v2129 = vld [vmem:[#allocation2 + $0x304] sm:$0xff]
      %v2130 = vld [vmem:[#allocation2 + $0x30c] sm:$0xf]
      %v2131 = vld [vmem:[#allocation2 + $0x310] sm:$0xff]
      %v2132 = vld [vmem:[#allocation2 + $0x318] sm:$0xff]
      %v2133 = vld [vmem:[#allocation2 + $0x320] sm:$0xff]
      %v2134 = vld [vmem:[#allocation2 + $0x328] sm:$0xf]
      %v2135 = vld [vmem:[#allocation2 + $0x32c] sm:$0xff]
      %v2136 = vld [vmem:[#allocation2 + $0x334] sm:$0xff]
      %v2137 = vld [vmem:[#allocation2 + $0x33c] sm:$0xff]
      %v2138 = vld [vmem:[#allocation2 + $0x344] sm:$0xf]
      %v2139 = vld [vmem:[#allocation2 + $0x348] sm:$0xff]
      %v2140 = vld [vmem:[#allocation2 + $0x350] sm:$0xff]
      %v2141 = vld [vmem:[#allocation2 + $0x358] sm:$0xff]
      %v2142 = vld [vmem:[#allocation2 + $0x360] sm:$0xf]
      %v2143 = vld [vmem:[#allocation2 + $0x364] sm:$0xff]
      %v2144 = vld [vmem:[#allocation2 + $0x36c] sm:$0xff]
      %v2145 = vld [vmem:[#allocation2 + $0x374] sm:$0xff]
      %v2146 = vld [vmem:[#allocation2 + $0x37c] sm:$0xf]
      %v2147 = vld [vmem:[#allocation2 + $0x380] sm:$0xff]
      %v2148 = vld [vmem:[#allocation2 + $0x388] sm:$0xff]
      %v2149 = vld [vmem:[#allocation2 + $0x390] sm:$0xff]
      %v2150 = vld [vmem:[#allocation2 + $0x398] sm:$0xf]
      %v2151 = vld [vmem:[#allocation2 + $0x39c] sm:$0xff]
      %v2152 = vld [vmem:[#allocation2 + $0x3a4] sm:$0xff]
      %v2153 = vld [vmem:[#allocation2 + $0x3ac] sm:$0xff]
      %v2154 = vld [vmem:[#allocation2 + $0x3b4] sm:$0xf]
      %v2155 = vld [vmem:[#allocation2 + $0x3b8] sm:$0xff]
      %v2156 = vld [vmem:[#allocation2 + $0x3c0] sm:$0xff]
      %v2157 = vld [vmem:[#allocation2 + $0x3c8] sm:$0xff]
      %v2158 = vld [vmem:[#allocation2 + $0x3d0] sm:$0xf]
      %v2159 = vld [vmem:[#allocation2 + $0x3d4] sm:$0xff]
      %v2160 = vld [vmem:[#allocation2 + $0x3dc] sm:$0xff]
      %v2161 = vld [vmem:[#allocation2 + $0x3e4] sm:$0xff]
      %v2162 = vld [vmem:[#allocation2 + $0x3ec] sm:$0xf]
      %v2163 = vld [vmem:[#allocation2 + $0x3f0] sm:$0xff]
      %v2164 = vld [vmem:[#allocation2 + $0x3f8] sm:$0xff]
      %v2165 = vld [vmem:[#allocation2 + $0x400] sm:$0xff]
      %v2166 = vld [vmem:[#allocation2 + $0x408] sm:$0xf]
      %v2167 = vld [vmem:[#allocation2 + $0x40c] sm:$0xff]
      %v2168 = vld [vmem:[#allocation2 + $0x414] sm:$0xff]
      %v2169 = vld [vmem:[#allocation2 + $0x41c] sm:$0xff]
      %v2170 = vld [vmem:[#allocation2 + $0x424] sm:$0xf]
      %v2171 = vld [vmem:[#allocation2 + $0x428] sm:$0xff]
      %v2172 = vld [vmem:[#allocation2 + $0x430] sm:$0xff]
      %v2173 = vld [vmem:[#allocation2 + $0x438] sm:$0xff]
      %v2174 = vld [vmem:[#allocation2 + $0x440] sm:$0xf]
      %v2175 = vld [vmem:[#allocation2 + $0x444] sm:$0xff]
      %v2176 = vld [vmem:[#allocation2 + $0x44c] sm:$0xff]
      %v2177 = vld [vmem:[#allocation2 + $0x454] sm:$0xff]
      %v2178 = vld [vmem:[#allocation2 + $0x45c] sm:$0xf]
      %v2179 = vld [vmem:[#allocation2 + $0x460] sm:$0xff]
      %v2180 = vld [vmem:[#allocation2 + $0x468] sm:$0xff]
      %v2181 = vld [vmem:[#allocation2 + $0x470] sm:$0xff]
      %v2182 = vld [vmem:[#allocation2 + $0x478] sm:$0xf]
      %v2183 = vld [vmem:[#allocation2 + $0x47c] sm:$0xff]
      %v2184 = vld [vmem:[#allocation2 + $0x484] sm:$0xff]
      %v2185 = vld [vmem:[#allocation2 + $0x48c] sm:$0xff]
      %v2186 = vld [vmem:[#allocation2 + $0x494] sm:$0xf]
      %v2187 = vld [vmem:[#allocation2 + $0x498] sm:$0xff]
      %v2188 = vld [vmem:[#allocation2 + $0x4a0] sm:$0xff]
      %v2189 = vld [vmem:[#allocation2 + $0x4a8] sm:$0xff]
      %v2190 = vld [vmem:[#allocation2 + $0x4b0] sm:$0xf]
      %v2191 = vld [vmem:[#allocation2 + $0x4b4] sm:$0xff]
      %v2192 = vld [vmem:[#allocation2 + $0x4bc] sm:$0xff]
      %v2193 = vld [vmem:[#allocation2 + $0x4c4] sm:$0xff]
      %v2194 = vld [vmem:[#allocation2 + $0x4cc] sm:$0xf]
      %v2195 = vld [vmem:[#allocation2 + $0x4d0] sm:$0xff]
      %v2196 = vld [vmem:[#allocation2 + $0x4d8] sm:$0xff]
      %v2197 = vld [vmem:[#allocation2 + $0x4e0] sm:$0xff]
      %v2198 = vld [vmem:[#allocation2 + $0x4e8] sm:$0xf]
      %v2199 = vld [vmem:[#allocation2 + $0x4ec] sm:$0xff]
      %v2200 = vld [vmem:[#allocation2 + $0x4f4] sm:$0xff]
      %v2201 = vld [vmem:[#allocation2 + $0x4fc] sm:$0xff]
      %v2202 = vld [vmem:[#allocation2 + $0x504] sm:$0xf]
      %v2203 = vld [vmem:[#allocation2 + $0x508] sm:$0xff]
      %v2204 = vld [vmem:[#allocation2 + $0x510] sm:$0xff]
      %v2205 = vld [vmem:[#allocation2 + $0x518] sm:$0xff]
      %v2206 = vld [vmem:[#allocation2 + $0x520] sm:$0xf]
      %v2207 = vld [vmem:[#allocation2 + $0x524] sm:$0xff]
      %v2208 = vld [vmem:[#allocation2 + $0x52c] sm:$0xff]
      %v2209 = vld [vmem:[#allocation2 + $0x534] sm:$0xff]
      %v2210 = vld [vmem:[#allocation2 + $0x53c] sm:$0xf]
      %v2211 = vld [vmem:[#allocation2 + $0x540] sm:$0xff]
      %v2212 = vld [vmem:[#allocation2 + $0x548] sm:$0xff]
      %v2213 = vld [vmem:[#allocation2 + $0x550] sm:$0xff]
      %v2214 = vld [vmem:[#allocation2 + $0x558] sm:$0xf]
      %v2215 = vld [vmem:[#allocation2 + $0x55c] sm:$0xff]
      %v2216 = vld [vmem:[#allocation2 + $0x564] sm:$0xff]
      %v2217 = vld [vmem:[#allocation2 + $0x56c] sm:$0xff]
      %v2218 = vld [vmem:[#allocation2 + $0x574] sm:$0xf]
      %v2219 = vld [vmem:[#allocation2 + $0x578] sm:$0xff]
      %v2220 = vld [vmem:[#allocation2 + $0x580] sm:$0xff]
      %v2221 = vld [vmem:[#allocation2 + $0x588] sm:$0xff]
      %v2222 = vld [vmem:[#allocation2 + $0x590] sm:$0xf]
      %v2223 = vld [vmem:[#allocation2 + $0x594] sm:$0xff]
      %v2224 = vld [vmem:[#allocation2 + $0x59c] sm:$0xff]
      %v2225 = vld [vmem:[#allocation2 + $0x5a4] sm:$0xff]
      %v2226 = vld [vmem:[#allocation2 + $0x5ac] sm:$0xf]
      %v2227 = vld [vmem:[#allocation2 + $0x5b0] sm:$0xff]
      %v2228 = vld [vmem:[#allocation2 + $0x5b8] sm:$0xff]
      %v2229 = vld [vmem:[#allocation2 + $0x5c0] sm:$0xff]
      %v2230 = vld [vmem:[#allocation2 + $0x5c8] sm:$0xf]
      %v2231 = vld [vmem:[#allocation2 + $0x5cc] sm:$0xff]
      %v2232 = vld [vmem:[#allocation2 + $0x5d4] sm:$0xff]
      %v2233 = vld [vmem:[#allocation2 + $0x5dc] sm:$0xff]
      %v2234 = vld [vmem:[#allocation2 + $0x5e4] sm:$0xf]
      %v2235 = vld [vmem:[%s2] sm:$0xff]
      %2237 = vset.pattern.permute.xlu0 0
      %2238 = vperm.xlu0 %2237, %v2235
      %v2239 = vpop.permute.xlu0 %2238
      %v2243 = vunpack.c.l.b16 %v2017
      %v2244 = vunpack.c.h.b16 %v2017
      %v2245 = vunpack.c.l.b16 %v2018
      %v2246 = vunpack.c.h.b16 %v2018
      %v2247 = vpack.c.b16 %v2243, %v2243
      %v2248 = vpack.c.b16 %v2244, %v2244
      %v2249 = vpack.c.b16 %v2245, %v2245
      %v2250 = vpack.c.b16 %v2246, %v2246
      %v2470 = vunpack.c.l.b16 %v2019
      %v2471 = vunpack.c.h.b16 %v2019
      %v2472 = vunpack.c.l.b16 %v2020
      %v2473 = vunpack.c.h.b16 %v2020
      %v2474 = vunpack.c.l.b16 %v2021
      %v2475 = vunpack.c.h.b16 %v2021
      %v2476 = vunpack.c.l.b16 %v2022
      %v2477 = vunpack.c.l.b16 %v2023
      %v2478 = vunpack.c.h.b16 %v2023
      %v2479 = vunpack.c.l.b16 %v2024
      %v2480 = vunpack.c.h.b16 %v2024
      %v2481 = vunpack.c.l.b16 %v2025
      %v2482 = vunpack.c.h.b16 %v2025
      %v2483 = vunpack.c.l.b16 %v2026
      %v2484 = vunpack.c.l.b16 %v2027
      %v2485 = vunpack.c.h.b16 %v2027
      %v2486 = vunpack.c.l.b16 %v2028
      %v2487 = vunpack.c.h.b16 %v2028
      %v2488 = vunpack.c.l.b16 %v2029
      %v2489 = vunpack.c.h.b16 %v2029
      %v2490 = vunpack.c.l.b16 %v2030
      %v2491 = vunpack.c.l.b16 %v2031
      %v2492 = vunpack.c.h.b16 %v2031
      %v2493 = vunpack.c.l.b16 %v2032
      %v2494 = vunpack.c.h.b16 %v2032
      %v2495 = vunpack.c.l.b16 %v2033
      %v2496 = vunpack.c.h.b16 %v2033
      %v2497 = vunpack.c.l.b16 %v2034
      %v2498 = vunpack.c.l.b16 %v2035
      %v2499 = vunpack.c.h.b16 %v2035
      %v2500 = vunpack.c.l.b16 %v2036
      %v2501 = vunpack.c.h.b16 %v2036
      %v2502 = vunpack.c.l.b16 %v2037
      %v2503 = vunpack.c.h.b16 %v2037
      %v2504 = vunpack.c.l.b16 %v2038
      %v2505 = vunpack.c.l.b16 %v2039
      %v2506 = vunpack.c.h.b16 %v2039
      %v2507 = vunpack.c.l.b16 %v2040
      %v2508 = vunpack.c.h.b16 %v2040
      %v2509 = vunpack.c.l.b16 %v2041
      %v2510 = vunpack.c.h.b16 %v2041
      %v2511 = vunpack.c.l.b16 %v2042
      %v2512 = vunpack.c.l.b16 %v2043
      %v2513 = vunpack.c.h.b16 %v2043
      %v2514 = vunpack.c.l.b16 %v2044
      %v2515 = vunpack.c.h.b16 %v2044
      %v2516 = vunpack.c.l.b16 %v2045
      %v2517 = vunpack.c.h.b16 %v2045
      %v2518 = vunpack.c.l.b16 %v2046
      %v2519 = vunpack.c.l.b16 %v2047
      %v2520 = vunpack.c.h.b16 %v2047
      %v2521 = vunpack.c.l.b16 %v2048
      %v2522 = vunpack.c.h.b16 %v2048
      %v2523 = vunpack.c.l.b16 %v2049
      %v2524 = vunpack.c.h.b16 %v2049
      %v2525 = vunpack.c.l.b16 %v2050
      %v2526 = vunpack.c.l.b16 %v2051
      %v2527 = vunpack.c.h.b16 %v2051
      %v2528 = vunpack.c.l.b16 %v2052
      %v2529 = vunpack.c.h.b16 %v2052
      %v2530 = vunpack.c.l.b16 %v2053
      %v2531 = vunpack.c.h.b16 %v2053
      %v2532 = vunpack.c.l.b16 %v2054
      %v2533 = vunpack.c.l.b16 %v2055
      %v2534 = vunpack.c.h.b16 %v2055
      %v2535 = vunpack.c.l.b16 %v2056
      %v2536 = vunpack.c.h.b16 %v2056
      %v2537 = vunpack.c.l.b16 %v2057
      %v2538 = vunpack.c.h.b16 %v2057
      %v2539 = vunpack.c.l.b16 %v2058
      %v2540 = vunpack.c.l.b16 %v2059
      %v2541 = vunpack.c.h.b16 %v2059
      %v2542 = vunpack.c.l.b16 %v2060
      %v2543 = vunpack.c.h.b16 %v2060
      %v2544 = vunpack.c.l.b16 %v2061
      %v2545 = vunpack.c.h.b16 %v2061
      %v2546 = vunpack.c.l.b16 %v2062
      %v2547 = vunpack.c.l.b16 %v2063
      %v2548 = vunpack.c.h.b16 %v2063
      %v2549 = vunpack.c.l.b16 %v2064
      %v2550 = vunpack.c.h.b16 %v2064
      %v2551 = vunpack.c.l.b16 %v2065
      %v2552 = vunpack.c.h.b16 %v2065
      %v2553 = vunpack.c.l.b16 %v2066
      %v2554 = vunpack.c.l.b16 %v2067
      %v2555 = vunpack.c.h.b16 %v2067
      %v2556 = vunpack.c.l.b16 %v2068
      %v2557 = vunpack.c.h.b16 %v2068
      %v2558 = vunpack.c.l.b16 %v2069
      %v2559 = vunpack.c.h.b16 %v2069
      %v2560 = vunpack.c.l.b16 %v2070
      %v2561 = vunpack.c.l.b16 %v2071
      %v2562 = vunpack.c.h.b16 %v2071
      %v2563 = vunpack.c.l.b16 %v2072
      %v2564 = vunpack.c.h.b16 %v2072
      %v2565 = vunpack.c.l.b16 %v2073
      %v2566 = vunpack.c.h.b16 %v2073
      %v2567 = vunpack.c.l.b16 %v2074
      %v2568 = vunpack.c.l.b16 %v2075
      %v2569 = vunpack.c.h.b16 %v2075
      %v2570 = vunpack.c.l.b16 %v2076
      %v2571 = vunpack.c.h.b16 %v2076
      %v2572 = vunpack.c.l.b16 %v2077
      %v2573 = vunpack.c.h.b16 %v2077
      %v2574 = vunpack.c.l.b16 %v2078
      %v2575 = vunpack.c.l.b16 %v2079
      %v2576 = vunpack.c.h.b16 %v2079
      %v2577 = vunpack.c.l.b16 %v2080
      %v2578 = vunpack.c.h.b16 %v2080
      %v2579 = vunpack.c.l.b16 %v2081
      %v2580 = vunpack.c.h.b16 %v2081
      %v2581 = vunpack.c.l.b16 %v2082
      %v2582 = vunpack.c.l.b16 %v2083
      %v2583 = vunpack.c.h.b16 %v2083
      %v2584 = vunpack.c.l.b16 %v2084
      %v2585 = vunpack.c.h.b16 %v2084
      %v2586 = vunpack.c.l.b16 %v2085
      %v2587 = vunpack.c.h.b16 %v2085
      %v2588 = vunpack.c.l.b16 %v2086
      %v2589 = vunpack.c.l.b16 %v2087
      %v2590 = vunpack.c.h.b16 %v2087
      %v2591 = vunpack.c.l.b16 %v2088
      %v2592 = vunpack.c.h.b16 %v2088
      %v2593 = vunpack.c.l.b16 %v2089
      %v2594 = vunpack.c.h.b16 %v2089
      %v2595 = vunpack.c.l.b16 %v2090
      %v2596 = vunpack.c.l.b16 %v2091
      %v2597 = vunpack.c.h.b16 %v2091
      %v2598 = vunpack.c.l.b16 %v2092
      %v2599 = vunpack.c.h.b16 %v2092
      %v2600 = vunpack.c.l.b16 %v2093
      %v2601 = vunpack.c.h.b16 %v2093
      %v2602 = vunpack.c.l.b16 %v2094
      %v2603 = vunpack.c.l.b16 %v2095
      %v2604 = vunpack.c.h.b16 %v2095
      %v2605 = vunpack.c.l.b16 %v2096
      %v2606 = vunpack.c.h.b16 %v2096
      %v2607 = vunpack.c.l.b16 %v2097
      %v2608 = vunpack.c.h.b16 %v2097
      %v2609 = vunpack.c.l.b16 %v2098
      %v2610 = vunpack.c.l.b16 %v2099
      %v2611 = vunpack.c.h.b16 %v2099
      %v2612 = vunpack.c.l.b16 %v2100
      %v2613 = vunpack.c.h.b16 %v2100
      %v2614 = vunpack.c.l.b16 %v2101
      %v2615 = vunpack.c.h.b16 %v2101
      %v2616 = vunpack.c.l.b16 %v2102
      %v2617 = vunpack.c.l.b16 %v2103
      %v2618 = vunpack.c.h.b16 %v2103
      %v2619 = vunpack.c.l.b16 %v2104
      %v2620 = vunpack.c.h.b16 %v2104
      %v2621 = vunpack.c.l.b16 %v2105
      %v2622 = vunpack.c.h.b16 %v2105
      %v2623 = vunpack.c.l.b16 %v2106
      %v2624 = vunpack.c.l.b16 %v2107
      %v2625 = vunpack.c.h.b16 %v2107
      %v2626 = vunpack.c.l.b16 %v2108
      %v2627 = vunpack.c.h.b16 %v2108
      %v2628 = vunpack.c.l.b16 %v2109
      %v2629 = vunpack.c.h.b16 %v2109
      %v2630 = vunpack.c.l.b16 %v2110
      %v2631 = vunpack.c.l.b16 %v2111
      %v2632 = vunpack.c.h.b16 %v2111
      %v2633 = vunpack.c.l.b16 %v2112
      %v2634 = vunpack.c.h.b16 %v2112
      %v2635 = vunpack.c.l.b16 %v2113
      %v2636 = vunpack.c.h.b16 %v2113
      %v2637 = vunpack.c.l.b16 %v2114
      %v2638 = vunpack.c.l.b16 %v2115
      %v2639 = vunpack.c.h.b16 %v2115
      %v2640 = vunpack.c.l.b16 %v2116
      %v2641 = vunpack.c.h.b16 %v2116
      %v2642 = vunpack.c.l.b16 %v2117
      %v2643 = vunpack.c.h.b16 %v2117
      %v2644 = vunpack.c.l.b16 %v2118
      %v2645 = vunpack.c.l.b16 %v2119
      %v2646 = vunpack.c.h.b16 %v2119
      %v2647 = vunpack.c.l.b16 %v2120
      %v2648 = vunpack.c.h.b16 %v2120
      %v2649 = vunpack.c.l.b16 %v2121
      %v2650 = vunpack.c.h.b16 %v2121
      %v2651 = vunpack.c.l.b16 %v2122
      %v2652 = vunpack.c.l.b16 %v2123
      %v2653 = vunpack.c.h.b16 %v2123
      %v2654 = vunpack.c.l.b16 %v2124
      %v2655 = vunpack.c.h.b16 %v2124
      %v2656 = vunpack.c.l.b16 %v2125
      %v2657 = vunpack.c.h.b16 %v2125
      %v2658 = vunpack.c.l.b16 %v2126
      %v2659 = vunpack.c.l.b16 %v2127
      %v2660 = vunpack.c.h.b16 %v2127
      %v2661 = vunpack.c.l.b16 %v2128
      %v2662 = vunpack.c.h.b16 %v2128
      %v2663 = vunpack.c.l.b16 %v2129
      %v2664 = vunpack.c.h.b16 %v2129
      %v2665 = vunpack.c.l.b16 %v2130
      %v2666 = vunpack.c.l.b16 %v2131
      %v2667 = vunpack.c.h.b16 %v2131
      %v2668 = vunpack.c.l.b16 %v2132
      %v2669 = vunpack.c.h.b16 %v2132
      %v2670 = vunpack.c.l.b16 %v2133
      %v2671 = vunpack.c.h.b16 %v2133
      %v2672 = vunpack.c.l.b16 %v2134
      %v2673 = vunpack.c.l.b16 %v2135
      %v2674 = vunpack.c.h.b16 %v2135
      %v2675 = vunpack.c.l.b16 %v2136
      %v2676 = vunpack.c.h.b16 %v2136
      %v2677 = vunpack.c.l.b16 %v2137
      %v2678 = vunpack.c.h.b16 %v2137
      %v2679 = vunpack.c.l.b16 %v2138
      %v2680 = vunpack.c.l.b16 %v2139
      %v2681 = vunpack.c.h.b16 %v2139
      %v2682 = vunpack.c.l.b16 %v2140
      %v2683 = vunpack.c.h.b16 %v2140
      %v2684 = vunpack.c.l.b16 %v2141
      %v2685 = vunpack.c.h.b16 %v2141
      %v2686 = vunpack.c.l.b16 %v2142
      %v2687 = vunpack.c.l.b16 %v2143
      %v2688 = vunpack.c.h.b16 %v2143
      %v2689 = vunpack.c.l.b16 %v2144
      %v2690 = vunpack.c.h.b16 %v2144
      %v2691 = vunpack.c.l.b16 %v2145
      %v2692 = vunpack.c.h.b16 %v2145
      %v2693 = vunpack.c.l.b16 %v2146
      %v2694 = vunpack.c.l.b16 %v2147
      %v2695 = vunpack.c.h.b16 %v2147
      %v2696 = vunpack.c.l.b16 %v2148
      %v2697 = vunpack.c.h.b16 %v2148
      %v2698 = vunpack.c.l.b16 %v2149
      %v2699 = vunpack.c.h.b16 %v2149
      %v2700 = vunpack.c.l.b16 %v2150
      %v2701 = vunpack.c.l.b16 %v2151
      %v2702 = vunpack.c.h.b16 %v2151
      %v2703 = vunpack.c.l.b16 %v2152
      %v2704 = vunpack.c.h.b16 %v2152
      %v2705 = vunpack.c.l.b16 %v2153
      %v2706 = vunpack.c.h.b16 %v2153
      %v2707 = vunpack.c.l.b16 %v2154
      %v2708 = vunpack.c.l.b16 %v2155
      %v2709 = vunpack.c.h.b16 %v2155
      %v2710 = vunpack.c.l.b16 %v2156
      %v2711 = vunpack.c.h.b16 %v2156
      %v2712 = vunpack.c.l.b16 %v2157
      %v2713 = vunpack.c.h.b16 %v2157
      %v2714 = vunpack.c.l.b16 %v2158
      %v2715 = vunpack.c.l.b16 %v2159
      %v2716 = vunpack.c.h.b16 %v2159
      %v2717 = vunpack.c.l.b16 %v2160
      %v2718 = vunpack.c.h.b16 %v2160
      %v2719 = vunpack.c.l.b16 %v2161
      %v2720 = vunpack.c.h.b16 %v2161
      %v2721 = vunpack.c.l.b16 %v2162
      %v2722 = vunpack.c.l.b16 %v2163
      %v2723 = vunpack.c.h.b16 %v2163
      %v2724 = vunpack.c.l.b16 %v2164
      %v2725 = vunpack.c.h.b16 %v2164
      %v2726 = vunpack.c.l.b16 %v2165
      %v2727 = vunpack.c.h.b16 %v2165
      %v2728 = vunpack.c.l.b16 %v2166
      %v2729 = vunpack.c.l.b16 %v2167
      %v2730 = vunpack.c.h.b16 %v2167
      %v2731 = vunpack.c.l.b16 %v2168
      %v2732 = vunpack.c.h.b16 %v2168
      %v2733 = vunpack.c.l.b16 %v2169
      %v2734 = vunpack.c.h.b16 %v2169
      %v2735 = vunpack.c.l.b16 %v2170
      %v2736 = vunpack.c.l.b16 %v2171
      %v2737 = vunpack.c.h.b16 %v2171
      %v2738 = vunpack.c.l.b16 %v2172
      %v2739 = vunpack.c.h.b16 %v2172
      %v2740 = vunpack.c.l.b16 %v2173
      %v2741 = vunpack.c.h.b16 %v2173
      %v2742 = vunpack.c.l.b16 %v2174
      %v2743 = vunpack.c.l.b16 %v2175
      %v2744 = vunpack.c.h.b16 %v2175
      %v2745 = vunpack.c.l.b16 %v2176
      %v2746 = vunpack.c.h.b16 %v2176
      %v2747 = vunpack.c.l.b16 %v2177
      %v2748 = vunpack.c.h.b16 %v2177
      %v2749 = vunpack.c.l.b16 %v2178
      %v2750 = vunpack.c.l.b16 %v2179
      %v2751 = vunpack.c.h.b16 %v2179
      %v2752 = vunpack.c.l.b16 %v2180
      %v2753 = vunpack.c.h.b16 %v2180
      %v2754 = vunpack.c.l.b16 %v2181
      %v2755 = vunpack.c.h.b16 %v2181
      %v2756 = vunpack.c.l.b16 %v2182
      %v2757 = vunpack.c.l.b16 %v2183
      %v2758 = vunpack.c.h.b16 %v2183
      %v2759 = vunpack.c.l.b16 %v2184
      %v2760 = vunpack.c.h.b16 %v2184
      %v2761 = vunpack.c.l.b16 %v2185
      %v2762 = vunpack.c.h.b16 %v2185
      %v2763 = vunpack.c.l.b16 %v2186
      %v2764 = vunpack.c.l.b16 %v2187
      %v2765 = vunpack.c.h.b16 %v2187
      %v2766 = vunpack.c.l.b16 %v2188
      %v2767 = vunpack.c.h.b16 %v2188
      %v2768 = vunpack.c.l.b16 %v2189
      %v2769 = vunpack.c.h.b16 %v2189
      %v2770 = vunpack.c.l.b16 %v2190
      %v2771 = vunpack.c.l.b16 %v2191
      %v2772 = vunpack.c.h.b16 %v2191
      %v2773 = vunpack.c.l.b16 %v2192
      %v2774 = vunpack.c.h.b16 %v2192
      %v2775 = vunpack.c.l.b16 %v2193
      %v2776 = vunpack.c.h.b16 %v2193
      %v2777 = vunpack.c.l.b16 %v2194
      %v2778 = vunpack.c.l.b16 %v2195
      %v2779 = vunpack.c.h.b16 %v2195
      %v2780 = vunpack.c.l.b16 %v2196
      %v2781 = vunpack.c.h.b16 %v2196
      %v2782 = vunpack.c.l.b16 %v2197
      %v2783 = vunpack.c.h.b16 %v2197
      %v2784 = vunpack.c.l.b16 %v2198
      %v2785 = vunpack.c.l.b16 %v2199
      %v2786 = vunpack.c.h.b16 %v2199
      %v2787 = vunpack.c.l.b16 %v2200
      %v2788 = vunpack.c.h.b16 %v2200
      %v2789 = vunpack.c.l.b16 %v2201
      %v2790 = vunpack.c.h.b16 %v2201
      %v2791 = vunpack.c.l.b16 %v2202
      %v2792 = vunpack.c.l.b16 %v2203
      %v2793 = vunpack.c.h.b16 %v2203
      %v2794 = vunpack.c.l.b16 %v2204
      %v2795 = vunpack.c.h.b16 %v2204
      %v2796 = vunpack.c.l.b16 %v2205
      %v2797 = vunpack.c.h.b16 %v2205
      %v2798 = vunpack.c.l.b16 %v2206
      %v2799 = vunpack.c.l.b16 %v2207
      %v2800 = vunpack.c.h.b16 %v2207
      %v2801 = vunpack.c.l.b16 %v2208
      %v2802 = vunpack.c.h.b16 %v2208
      %v2803 = vunpack.c.l.b16 %v2209
      %v2804 = vunpack.c.h.b16 %v2209
      %v2805 = vunpack.c.l.b16 %v2210
      %v2806 = vunpack.c.l.b16 %v2211
      %v2807 = vunpack.c.h.b16 %v2211
      %v2808 = vunpack.c.l.b16 %v2212
      %v2809 = vunpack.c.h.b16 %v2212
      %v2810 = vunpack.c.l.b16 %v2213
      %v2811 = vunpack.c.h.b16 %v2213
      %v2812 = vunpack.c.l.b16 %v2214
      %v2813 = vunpack.c.l.b16 %v2215
      %v2814 = vunpack.c.h.b16 %v2215
      %v2815 = vunpack.c.l.b16 %v2216
      %v2816 = vunpack.c.h.b16 %v2216
      %v2817 = vunpack.c.l.b16 %v2217
      %v2818 = vunpack.c.h.b16 %v2217
      %v2819 = vunpack.c.l.b16 %v2218
      %v2820 = vunpack.c.l.b16 %v2219
      %v2821 = vunpack.c.h.b16 %v2219
      %v2822 = vunpack.c.l.b16 %v2220
      %v2823 = vunpack.c.h.b16 %v2220
      %v2824 = vunpack.c.l.b16 %v2221
      %v2825 = vunpack.c.h.b16 %v2221
      %v2826 = vunpack.c.l.b16 %v2222
      %v2827 = vunpack.c.l.b16 %v2223
      %v2828 = vunpack.c.h.b16 %v2223
      %v2829 = vunpack.c.l.b16 %v2224
      %v2830 = vunpack.c.h.b16 %v2224
      %v2831 = vunpack.c.l.b16 %v2225
      %v2832 = vunpack.c.h.b16 %v2225
      %v2833 = vunpack.c.l.b16 %v2226
      %v2834 = vunpack.c.l.b16 %v2227
      %v2835 = vunpack.c.h.b16 %v2227
      %v2836 = vunpack.c.l.b16 %v2228
      %v2837 = vunpack.c.h.b16 %v2228
      %v2838 = vunpack.c.l.b16 %v2229
      %v2839 = vunpack.c.h.b16 %v2229
      %v2840 = vunpack.c.l.b16 %v2230
      %v2841 = vunpack.c.l.b16 %v2231
      %v2842 = vunpack.c.h.b16 %v2231
      %v2843 = vunpack.c.l.b16 %v2232
      %v2844 = vunpack.c.h.b16 %v2232
      %v2845 = vunpack.c.l.b16 %v2233
      %v2846 = vunpack.c.h.b16 %v2233
      %v2847 = vunpack.c.l.b16 %v2234
      %v2848 = vpack.c.b16 %v2477, %v2470
      %v2849 = vpack.c.b16 %v2478, %v2471
      %v2850 = vpack.c.b16 %v2479, %v2472
      %v2851 = vpack.c.b16 %v2480, %v2473
      %v2852 = vpack.c.b16 %v2481, %v2474
      %v2853 = vpack.c.b16 %v2482, %v2475
      %v2854 = vpack.c.b16 %v2483, %v2476
      %v2855 = vpack.c.b16 %v2491, %v2484
      %v2856 = vpack.c.b16 %v2492, %v2485
      %v2857 = vpack.c.b16 %v2493, %v2486
      %v2858 = vpack.c.b16 %v2494, %v2487
      %v2859 = vpack.c.b16 %v2495, %v2488
      %v2860 = vpack.c.b16 %v2496, %v2489
      %v2861 = vpack.c.b16 %v2497, %v2490
      %v2862 = vpack.c.b16 %v2505, %v2498
      %v2863 = vpack.c.b16 %v2506, %v2499
      %v2864 = vpack.c.b16 %v2507, %v2500
      %v2865 = vpack.c.b16 %v2508, %v2501
      %v2866 = vpack.c.b16 %v2509, %v2502
      %v2867 = vpack.c.b16 %v2510, %v2503
      %v2868 = vpack.c.b16 %v2511, %v2504
      %v2869 = vpack.c.b16 %v2519, %v2512
      %v2870 = vpack.c.b16 %v2520, %v2513
      %v2871 = vpack.c.b16 %v2521, %v2514
      %v2872 = vpack.c.b16 %v2522, %v2515
      %v2873 = vpack.c.b16 %v2523, %v2516
      %v2874 = vpack.c.b16 %v2524, %v2517
      %v2875 = vpack.c.b16 %v2525, %v2518
      %v2876 = vpack.c.b16 %v2533, %v2526
      %v2877 = vpack.c.b16 %v2534, %v2527
      %v2878 = vpack.c.b16 %v2535, %v2528
      %v2879 = vpack.c.b16 %v2536, %v2529
      %v2880 = vpack.c.b16 %v2537, %v2530
      %v2881 = vpack.c.b16 %v2538, %v2531
      %v2882 = vpack.c.b16 %v2539, %v2532
      %v2883 = vpack.c.b16 %v2547, %v2540
      %v2884 = vpack.c.b16 %v2548, %v2541
      %v2885 = vpack.c.b16 %v2549, %v2542
      %v2886 = vpack.c.b16 %v2550, %v2543
      %v2887 = vpack.c.b16 %v2551, %v2544
      %v2888 = vpack.c.b16 %v2552, %v2545
      %v2889 = vpack.c.b16 %v2553, %v2546
      %v2890 = vpack.c.b16 %v2561, %v2554
      %v2891 = vpack.c.b16 %v2562, %v2555
      %v2892 = vpack.c.b16 %v2563, %v2556
      %v2893 = vpack.c.b16 %v2564, %v2557
      %v2894 = vpack.c.b16 %v2565, %v2558
      %v2895 = vpack.c.b16 %v2566, %v2559
      %v2896 = vpack.c.b16 %v2567, %v2560
      %v2897 = vpack.c.b16 %v2575, %v2568
      %v2898 = vpack.c.b16 %v2576, %v2569
      %v2899 = vpack.c.b16 %v2577, %v2570
      %v2900 = vpack.c.b16 %v2578, %v2571
      %v2901 = vpack.c.b16 %v2579, %v2572
      %v2902 = vpack.c.b16 %v2580, %v2573
      %v2903 = vpack.c.b16 %v2581, %v2574
      %v2904 = vpack.c.b16 %v2589, %v2582
      %v2905 = vpack.c.b16 %v2590, %v2583
      %v2906 = vpack.c.b16 %v2591, %v2584
      %v2907 = vpack.c.b16 %v2592, %v2585
      %v2908 = vpack.c.b16 %v2593, %v2586
      %v2909 = vpack.c.b16 %v2594, %v2587
      %v2910 = vpack.c.b16 %v2595, %v2588
      %v2911 = vpack.c.b16 %v2603, %v2596
      %v2912 = vpack.c.b16 %v2604, %v2597
      %v2913 = vpack.c.b16 %v2605, %v2598
      %v2914 = vpack.c.b16 %v2606, %v2599
      %v2915 = vpack.c.b16 %v2607, %v2600
      %v2916 = vpack.c.b16 %v2608, %v2601
      %v2917 = vpack.c.b16 %v2609, %v2602
      %v2918 = vpack.c.b16 %v2617, %v2610
      %v2919 = vpack.c.b16 %v2618, %v2611
      %v2920 = vpack.c.b16 %v2619, %v2612
      %v2921 = vpack.c.b16 %v2620, %v2613
      %v2922 = vpack.c.b16 %v2621, %v2614
      %v2923 = vpack.c.b16 %v2622, %v2615
      %v2924 = vpack.c.b16 %v2623, %v2616
      %v2925 = vpack.c.b16 %v2631, %v2624
      %v2926 = vpack.c.b16 %v2632, %v2625
      %v2927 = vpack.c.b16 %v2633, %v2626
      %v2928 = vpack.c.b16 %v2634, %v2627
      %v2929 = vpack.c.b16 %v2635, %v2628
      %v2930 = vpack.c.b16 %v2636, %v2629
      %v2931 = vpack.c.b16 %v2637, %v2630
      %v2932 = vpack.c.b16 %v2645, %v2638
      %v2933 = vpack.c.b16 %v2646, %v2639
      %v2934 = vpack.c.b16 %v2647, %v2640
      %v2935 = vpack.c.b16 %v2648, %v2641
      %v2936 = vpack.c.b16 %v2649, %v2642
      %v2937 = vpack.c.b16 %v2650, %v2643
      %v2938 = vpack.c.b16 %v2651, %v2644
      %v2939 = vpack.c.b16 %v2659, %v2652
      %v2940 = vpack.c.b16 %v2660, %v2653
      %v2941 = vpack.c.b16 %v2661, %v2654
      %v2942 = vpack.c.b16 %v2662, %v2655
      %v2943 = vpack.c.b16 %v2663, %v2656
      %v2944 = vpack.c.b16 %v2664, %v2657
      %v2945 = vpack.c.b16 %v2665, %v2658
      %v2946 = vpack.c.b16 %v2673, %v2666
      %v2947 = vpack.c.b16 %v2674, %v2667
      %v2948 = vpack.c.b16 %v2675, %v2668
      %v2949 = vpack.c.b16 %v2676, %v2669
      %v2950 = vpack.c.b16 %v2677, %v2670
      %v2951 = vpack.c.b16 %v2678, %v2671
      %v2952 = vpack.c.b16 %v2679, %v2672
      %v2953 = vpack.c.b16 %v2687, %v2680
      %v2954 = vpack.c.b16 %v2688, %v2681
      %v2955 = vpack.c.b16 %v2689, %v2682
      %v2956 = vpack.c.b16 %v2690, %v2683
      %v2957 = vpack.c.b16 %v2691, %v2684
      %v2958 = vpack.c.b16 %v2692, %v2685
      %v2959 = vpack.c.b16 %v2693, %v2686
      %v2960 = vpack.c.b16 %v2701, %v2694
      %v2961 = vpack.c.b16 %v2702, %v2695
      %v2962 = vpack.c.b16 %v2703, %v2696
      %v2963 = vpack.c.b16 %v2704, %v2697
      %v2964 = vpack.c.b16 %v2705, %v2698
      %v2965 = vpack.c.b16 %v2706, %v2699
      %v2966 = vpack.c.b16 %v2707, %v2700
      %v2967 = vpack.c.b16 %v2715, %v2708
      %v2968 = vpack.c.b16 %v2716, %v2709
      %v2969 = vpack.c.b16 %v2717, %v2710
      %v2970 = vpack.c.b16 %v2718, %v2711
      %v2971 = vpack.c.b16 %v2719, %v2712
      %v2972 = vpack.c.b16 %v2720, %v2713
      %v2973 = vpack.c.b16 %v2721, %v2714
      %v2974 = vpack.c.b16 %v2729, %v2722
      %v2975 = vpack.c.b16 %v2730, %v2723
      %v2976 = vpack.c.b16 %v2731, %v2724
      %v2977 = vpack.c.b16 %v2732, %v2725
      %v2978 = vpack.c.b16 %v2733, %v2726
      %v2979 = vpack.c.b16 %v2734, %v2727
      %v2980 = vpack.c.b16 %v2735, %v2728
      %v2981 = vpack.c.b16 %v2743, %v2736
      %v2982 = vpack.c.b16 %v2744, %v2737
      %v2983 = vpack.c.b16 %v2745, %v2738
      %v2984 = vpack.c.b16 %v2746, %v2739
      %v2985 = vpack.c.b16 %v2747, %v2740
      %v2986 = vpack.c.b16 %v2748, %v2741
      %v2987 = vpack.c.b16 %v2749, %v2742
      %v2988 = vpack.c.b16 %v2757, %v2750
      %v2989 = vpack.c.b16 %v2758, %v2751
      %v2990 = vpack.c.b16 %v2759, %v2752
      %v2991 = vpack.c.b16 %v2760, %v2753
      %v2992 = vpack.c.b16 %v2761, %v2754
      %v2993 = vpack.c.b16 %v2762, %v2755
      %v2994 = vpack.c.b16 %v2763, %v2756
      %v2995 = vpack.c.b16 %v2771, %v2764
      %v2996 = vpack.c.b16 %v2772, %v2765
      %v2997 = vpack.c.b16 %v2773, %v2766
      %v2998 = vpack.c.b16 %v2774, %v2767
      %v2999 = vpack.c.b16 %v2775, %v2768
      %v3000 = vpack.c.b16 %v2776, %v2769
      %v3001 = vpack.c.b16 %v2777, %v2770
      %v3002 = vpack.c.b16 %v2785, %v2778
      %v3003 = vpack.c.b16 %v2786, %v2779
      %v3004 = vpack.c.b16 %v2787, %v2780
      %v3005 = vpack.c.b16 %v2788, %v2781
      %v3006 = vpack.c.b16 %v2789, %v2782
      %v3007 = vpack.c.b16 %v2790, %v2783
      %v3008 = vpack.c.b16 %v2791, %v2784
      %v3009 = vpack.c.b16 %v2799, %v2792
      %v3010 = vpack.c.b16 %v2800, %v2793
      %v3011 = vpack.c.b16 %v2801, %v2794
      %v3012 = vpack.c.b16 %v2802, %v2795
      %v3013 = vpack.c.b16 %v2803, %v2796
      %v3014 = vpack.c.b16 %v2804, %v2797
      %v3015 = vpack.c.b16 %v2805, %v2798
      %v3016 = vpack.c.b16 %v2813, %v2806
      %v3017 = vpack.c.b16 %v2814, %v2807
      %v3018 = vpack.c.b16 %v2815, %v2808
      %v3019 = vpack.c.b16 %v2816, %v2809
      %v3020 = vpack.c.b16 %v2817, %v2810
      %v3021 = vpack.c.b16 %v2818, %v2811
      %v3022 = vpack.c.b16 %v2819, %v2812
      %v3023 = vpack.c.b16 %v2827, %v2820
      %v3024 = vpack.c.b16 %v2828, %v2821
      %v3025 = vpack.c.b16 %v2829, %v2822
      %v3026 = vpack.c.b16 %v2830, %v2823
      %v3027 = vpack.c.b16 %v2831, %v2824
      %v3028 = vpack.c.b16 %v2832, %v2825
      %v3029 = vpack.c.b16 %v2833, %v2826
      %v3030 = vpack.c.b16 %v2841, %v2834
      %v3031 = vpack.c.b16 %v2842, %v2835
      %v3032 = vpack.c.b16 %v2843, %v2836
      %v3033 = vpack.c.b16 %v2844, %v2837
      %v3034 = vpack.c.b16 %v2845, %v2838
      %v3035 = vpack.c.b16 %v2846, %v2839
      %v3036 = vpack.c.b16 %v2847, %v2840
      %vm3226 = vcmask 392192
      %v3228 = vsel %vm3226, %v2250, 0
      %3230 = vmatprep.subr.bf16.mxu0 %v2898
      %3231 = vmatpush1.bf16.msra.mxu0 %v2897
      %3232 = vmatprep.subr.bf16.mxu0 %v2891
      %3233 = vmatpush1.bf16.msra.mxu0 %v2890
      %3234 = vmatprep.subr.bf16.mxu0 %v2884
      %3235 = vmatpush1.bf16.msra.mxu0 %v2883
      %3236 = vmatprep.subr.bf16.mxu0 %v2877
      %3237 = vmatpush1.bf16.msra.mxu0 %v2876
      %3238 = vmatprep.subr.bf16.mxu0 %v2870
      %3239 = vmatpush1.bf16.msra.mxu0 %v2869
      %3240 = vmatprep.subr.bf16.mxu0 %v2863
      %3241 = vmatpush1.bf16.msra.mxu0 %v2862
      %3242 = vmatprep.subr.bf16.mxu0 %v2856
      %3243 = vmatpush1.bf16.msra.mxu0 %v2855
      %3244 = vmatprep.subr.bf16.mxu0 %v2849
      %3245 = vmatpush1.bf16.msra.mxu0 %v2848
      %3246 = vmatprep.subr.bf16.mxu0 %v2954
      %3247 = vmatpush2.bf16.msra.mxu0 %v2953
      %3248 = vmatprep.subr.bf16.mxu0 %v2947
      %3249 = vmatpush2.bf16.msra.mxu0 %v2946
      %3250 = vmatprep.subr.bf16.mxu0 %v2940
      %3251 = vmatpush2.bf16.msra.mxu0 %v2939
      %3252 = vmatprep.subr.bf16.mxu0 %v2933
      %3253 = vmatpush2.bf16.msra.mxu0 %v2932
      %3254 = vmatprep.subr.bf16.mxu0 %v2926
      %3255 = vmatpush2.bf16.msra.mxu0 %v2925
      %3256 = vmatprep.subr.bf16.mxu0 %v2919
      %3257 = vmatpush2.bf16.msra.mxu0 %v2918
      %3258 = vmatprep.subr.bf16.mxu0 %v2912
      %3259 = vmatpush2.bf16.msra.mxu0 %v2911
      %3260 = vmatprep.subr.bf16.mxu0 %v2905
      %3261 = vmatpush2.bf16.msra.mxu0 %v2904
      %3262 = vmatprep.mubr.bf16.mxu0 %v2248
      %3263 = vmatmul.mubr.bf16.gmra.mxu0 %v2247
      %v3264 = vpop.f32.mrf.mxu0
      %v3265 = vadd.f32 %v2239, %v3264
      %v3266 = vpop.f32.mrf.mxu0
      %v3267 = vadd.f32 %v2239, %v3266
      %v3268 = vpop.f32.mrf.mxu0
      %v3269 = vpop.f32.mrf.mxu0
      %3270 = vdwg.mxu0
      %3271 = vmatprep.subr.bf16.mxu0 %v3010
      %3272 = vmatpush1.bf16.msra.mxu0 %v3009
      %3273 = vmatprep.subr.bf16.mxu0 %v3003
      %3274 = vmatpush1.bf16.msra.mxu0 %v3002
      %3275 = vmatprep.subr.bf16.mxu0 %v2996
      %3276 = vmatpush1.bf16.msra.mxu0 %v2995
      %3277 = vmatprep.subr.bf16.mxu0 %v2989
      %3278 = vmatpush1.bf16.msra.mxu0 %v2988
      %3279 = vmatprep.subr.bf16.mxu0 %v2982
      %3280 = vmatpush1.bf16.msra.mxu0 %v2981
      %3281 = vmatprep.subr.bf16.mxu0 %v2975
      %3282 = vmatpush1.bf16.msra.mxu0 %v2974
      %3283 = vmatprep.subr.bf16.mxu0 %v2968
      %3284 = vmatpush1.bf16.msra.mxu0 %v2967
      %3285 = vmatprep.subr.bf16.mxu0 %v2961
      %3286 = vmatpush1.bf16.msra.mxu0 %v2960
      %3287 = vmatprep.subr.bf16.mxu0 0
      %3288 = vmatpush2.bf16.msra.mxu0 0
      %3289 = vmatprep.subr.bf16.mxu0 0
      %3290 = vmatpush2.bf16.msra.mxu0 0
      %3291 = vmatprep.subr.bf16.mxu0 0
      %3292 = vmatpush2.bf16.msra.mxu0 0
      %3293 = vmatprep.subr.bf16.mxu0 0
      %3294 = vmatpush2.bf16.msra.mxu0 0
      %3295 = vmatprep.subr.bf16.mxu0 0
      %3296 = vmatpush2.bf16.msra.mxu0 0
      %3297 = vmatprep.subr.bf16.mxu0 %v3031
      %3298 = vmatpush2.bf16.msra.mxu0 %v3030
      %3299 = vmatprep.subr.bf16.mxu0 %v3024
      %3300 = vmatpush2.bf16.msra.mxu0 %v3023
      %3301 = vmatprep.subr.bf16.mxu0 %v3017
      %3302 = vmatpush2.bf16.msra.mxu0 %v3016
      %3303 = vmatprep.mubr.bf16.mxu0 %v3228
      %3304 = vmatmul.mubr.bf16.gmra.mxu0 %v2249
      %v3305 = vpop.f32.mrf.mxu0
      %v3306 = vadd.f32 %v3265, %v3305
      %v3307 = vpop.f32.mrf.mxu0
      %v3308 = vadd.f32 %v3267, %v3307
      %v3309 = vpop.f32.mrf.mxu0
      %v3310 = vpop.f32.mrf.mxu0
      %3311 = vdwg.mxu0
      %3312 = vmatprep.subr.bf16.mxu0 %v2900
      %3313 = vmatpush1.bf16.msra.mxu0 %v2899
      %3314 = vmatprep.subr.bf16.mxu0 %v2893
      %3315 = vmatpush1.bf16.msra.mxu0 %v2892
      %3316 = vmatprep.subr.bf16.mxu0 %v2886
      %3317 = vmatpush1.bf16.msra.mxu0 %v2885
      %3318 = vmatprep.subr.bf16.mxu0 %v2879
      %3319 = vmatpush1.bf16.msra.mxu0 %v2878
      %3320 = vmatprep.subr.bf16.mxu0 %v2872
      %3321 = vmatpush1.bf16.msra.mxu0 %v2871
      %3322 = vmatprep.subr.bf16.mxu0 %v2865
      %3323 = vmatpush1.bf16.msra.mxu0 %v2864
      %3324 = vmatprep.subr.bf16.mxu0 %v2858
      %3325 = vmatpush1.bf16.msra.mxu0 %v2857
      %3326 = vmatprep.subr.bf16.mxu0 %v2851
      %3327 = vmatpush1.bf16.msra.mxu0 %v2850
      %3328 = vmatprep.subr.bf16.mxu0 %v2956
      %3329 = vmatpush2.bf16.msra.mxu0 %v2955
      %3330 = vmatprep.subr.bf16.mxu0 %v2949
      %3331 = vmatpush2.bf16.msra.mxu0 %v2948
      %3332 = vmatprep.subr.bf16.mxu0 %v2942
      %3333 = vmatpush2.bf16.msra.mxu0 %v2941
      %3334 = vmatprep.subr.bf16.mxu0 %v2935
      %3335 = vmatpush2.bf16.msra.mxu0 %v2934
      %3336 = vmatprep.subr.bf16.mxu0 %v2928
      %3337 = vmatpush2.bf16.msra.mxu0 %v2927
      %3338 = vmatprep.subr.bf16.mxu0 %v2921
      %3339 = vmatpush2.bf16.msra.mxu0 %v2920
      %3340 = vmatprep.subr.bf16.mxu0 %v2914
      %3341 = vmatpush2.bf16.msra.mxu0 %v2913
      %3342 = vmatprep.subr.bf16.mxu0 %v2907
      %3343 = vmatpush2.bf16.msra.mxu0 %v2906
      %3344 = vmatprep.mubr.bf16.mxu0 %v2248
      %3345 = vmatmul.mubr.bf16.gmra.mxu0 %v2247
      %v3346 = vpop.f32.mrf.mxu0
      %v3347 = vadd.f32 %v2239, %v3346
      %v3348 = vpop.f32.mrf.mxu0
      %v3349 = vadd.f32 %v2239, %v3348
      %v3350 = vpop.f32.mrf.mxu0
      %v3351 = vpop.f32.mrf.mxu0
      %3352 = vdwg.mxu0
      %3353 = vmatprep.subr.bf16.mxu0 %v3012
      %3354 = vmatpush1.bf16.msra.mxu0 %v3011
      %3355 = vmatprep.subr.bf16.mxu0 %v3005
      %3356 = vmatpush1.bf16.msra.mxu0 %v3004
      %3357 = vmatprep.subr.bf16.mxu0 %v2998
      %3358 = vmatpush1.bf16.msra.mxu0 %v2997
      %3359 = vmatprep.subr.bf16.mxu0 %v2991
      %3360 = vmatpush1.bf16.msra.mxu0 %v2990
      %3361 = vmatprep.subr.bf16.mxu0 %v2984
      %3362 = vmatpush1.bf16.msra.mxu0 %v2983
      %3363 = vmatprep.subr.bf16.mxu0 %v2977
      %3364 = vmatpush1.bf16.msra.mxu0 %v2976
      %3365 = vmatprep.subr.bf16.mxu0 %v2970
      %3366 = vmatpush1.bf16.msra.mxu0 %v2969
      %3367 = vmatprep.subr.bf16.mxu0 %v2963
      %3368 = vmatpush1.bf16.msra.mxu0 %v2962
      %3369 = vmatprep.subr.bf16.mxu0 0
      %3370 = vmatpush2.bf16.msra.mxu0 0
      %3371 = vmatprep.subr.bf16.mxu0 0
      %3372 = vmatpush2.bf16.msra.mxu0 0
      %3373 = vmatprep.subr.bf16.mxu0 0
      %3374 = vmatpush2.bf16.msra.mxu0 0
      %3375 = vmatprep.subr.bf16.mxu0 0
      %3376 = vmatpush2.bf16.msra.mxu0 0
      %3377 = vmatprep.subr.bf16.mxu0 0
      %3378 = vmatpush2.bf16.msra.mxu0 0
      %3379 = vmatprep.subr.bf16.mxu0 %v3033
      %3380 = vmatpush2.bf16.msra.mxu0 %v3032
      %3381 = vmatprep.subr.bf16.mxu0 %v3026
      %3382 = vmatpush2.bf16.msra.mxu0 %v3025
      %3383 = vmatprep.subr.bf16.mxu0 %v3019
      %3384 = vmatpush2.bf16.msra.mxu0 %v3018
      %3385 = vmatprep.mubr.bf16.mxu0 %v3228
      %3386 = vmatmul.mubr.bf16.gmra.mxu0 %v2249
      %v3387 = vpop.f32.mrf.mxu0
      %v3388 = vadd.f32 %v3347, %v3387
      %v3389 = vpop.f32.mrf.mxu0
      %v3390 = vadd.f32 %v3349, %v3389
      %v3391 = vpop.f32.mrf.mxu0
      %v3392 = vpop.f32.mrf.mxu0
      %3393 = vdwg.mxu0
      %3394 = vmatprep.subr.bf16.mxu0 %v2902
      %3395 = vmatpush1.bf16.msra.mxu0 %v2901
      %3396 = vmatprep.subr.bf16.mxu0 %v2895
      %3397 = vmatpush1.bf16.msra.mxu0 %v2894
      %3398 = vmatprep.subr.bf16.mxu0 %v2888
      %3399 = vmatpush1.bf16.msra.mxu0 %v2887
      %3400 = vmatprep.subr.bf16.mxu0 %v2881
      %3401 = vmatpush1.bf16.msra.mxu0 %v2880
      %3402 = vmatprep.subr.bf16.mxu0 %v2874
      %3403 = vmatpush1.bf16.msra.mxu0 %v2873
      %3404 = vmatprep.subr.bf16.mxu0 %v2867
      %3405 = vmatpush1.bf16.msra.mxu0 %v2866
      %3406 = vmatprep.subr.bf16.mxu0 %v2860
      %3407 = vmatpush1.bf16.msra.mxu0 %v2859
      %3408 = vmatprep.subr.bf16.mxu0 %v2853
      %3409 = vmatpush1.bf16.msra.mxu0 %v2852
      %3410 = vmatprep.subr.bf16.mxu0 %v2958
      %3411 = vmatpush2.bf16.msra.mxu0 %v2957
      %3412 = vmatprep.subr.bf16.mxu0 %v2951
      %3413 = vmatpush2.bf16.msra.mxu0 %v2950
      %3414 = vmatprep.subr.bf16.mxu0 %v2944
      %3415 = vmatpush2.bf16.msra.mxu0 %v2943
      %3416 = vmatprep.subr.bf16.mxu0 %v2937
      %3417 = vmatpush2.bf16.msra.mxu0 %v2936
      %3418 = vmatprep.subr.bf16.mxu0 %v2930
      %3419 = vmatpush2.bf16.msra.mxu0 %v2929
      %3420 = vmatprep.subr.bf16.mxu0 %v2923
      %3421 = vmatpush2.bf16.msra.mxu0 %v2922
      %3422 = vmatprep.subr.bf16.mxu0 %v2916
      %3423 = vmatpush2.bf16.msra.mxu0 %v2915
      %3424 = vmatprep.subr.bf16.mxu0 %v2909
      %3425 = vmatpush2.bf16.msra.mxu0 %v2908
      %3426 = vmatprep.mubr.bf16.mxu0 %v2248
      %3427 = vmatmul.mubr.bf16.gmra.mxu0 %v2247
      %v3428 = vpop.f32.mrf.mxu0
      %v3429 = vadd.f32 %v2239, %v3428
      %v3430 = vpop.f32.mrf.mxu0
      %v3431 = vadd.f32 %v2239, %v3430
      %v3432 = vpop.f32.mrf.mxu0
      %v3433 = vpop.f32.mrf.mxu0
      %3434 = vdwg.mxu0
      %3435 = vmatprep.subr.bf16.mxu0 %v3014
      %3436 = vmatpush1.bf16.msra.mxu0 %v3013
      %3437 = vmatprep.subr.bf16.mxu0 %v3007
      %3438 = vmatpush1.bf16.msra.mxu0 %v3006
      %3439 = vmatprep.subr.bf16.mxu0 %v3000
      %3440 = vmatpush1.bf16.msra.mxu0 %v2999
      %3441 = vmatprep.subr.bf16.mxu0 %v2993
      %3442 = vmatpush1.bf16.msra.mxu0 %v2992
      %3443 = vmatprep.subr.bf16.mxu0 %v2986
      %3444 = vmatpush1.bf16.msra.mxu0 %v2985
      %3445 = vmatprep.subr.bf16.mxu0 %v2979
      %3446 = vmatpush1.bf16.msra.mxu0 %v2978
      %3447 = vmatprep.subr.bf16.mxu0 %v2972
      %3448 = vmatpush1.bf16.msra.mxu0 %v2971
      %3449 = vmatprep.subr.bf16.mxu0 %v2965
      %3450 = vmatpush1.bf16.msra.mxu0 %v2964
      %3451 = vmatprep.subr.bf16.mxu0 0
      %3452 = vmatpush2.bf16.msra.mxu0 0
      %3453 = vmatprep.subr.bf16.mxu0 0
      %3454 = vmatpush2.bf16.msra.mxu0 0
      %3455 = vmatprep.subr.bf16.mxu0 0
      %3456 = vmatpush2.bf16.msra.mxu0 0
      %3457 = vmatprep.subr.bf16.mxu0 0
      %3458 = vmatpush2.bf16.msra.mxu0 0
      %3459 = vmatprep.subr.bf16.mxu0 0
      %3460 = vmatpush2.bf16.msra.mxu0 0
      %3461 = vmatprep.subr.bf16.mxu0 %v3035
      %3462 = vmatpush2.bf16.msra.mxu0 %v3034
      %3463 = vmatprep.subr.bf16.mxu0 %v3028
      %3464 = vmatpush2.bf16.msra.mxu0 %v3027
      %3465 = vmatprep.subr.bf16.mxu0 %v3021
      %3466 = vmatpush2.bf16.msra.mxu0 %v3020
      %3467 = vmatprep.mubr.bf16.mxu0 %v3228
      %3468 = vmatmul.mubr.bf16.gmra.mxu0 %v2249
      %v3469 = vpop.f32.mrf.mxu0
      %v3470 = vadd.f32 %v3429, %v3469
      %v3471 = vpop.f32.mrf.mxu0
      %v3472 = vadd.f32 %v3431, %v3471
      %v3473 = vpop.f32.mrf.mxu0
      %v3474 = vpop.f32.mrf.mxu0
      %3475 = vdwg.mxu0
      %3476 = vmatprep.subr.bf16.mxu0 0
      %3477 = vmatpush1.bf16.msra.mxu0 %v2903
      %3478 = vmatprep.subr.bf16.mxu0 0
      %3479 = vmatpush1.bf16.msra.mxu0 %v2896
      %3480 = vmatprep.subr.bf16.mxu0 0
      %3481 = vmatpush1.bf16.msra.mxu0 %v2889
      %3482 = vmatprep.subr.bf16.mxu0 0
      %3483 = vmatpush1.bf16.msra.mxu0 %v2882
      %3484 = vmatprep.subr.bf16.mxu0 0
      %3485 = vmatpush1.bf16.msra.mxu0 %v2875
      %3486 = vmatprep.subr.bf16.mxu0 0
      %3487 = vmatpush1.bf16.msra.mxu0 %v2868
      %3488 = vmatprep.subr.bf16.mxu0 0
      %3489 = vmatpush1.bf16.msra.mxu0 %v2861
      %3490 = vmatprep.subr.bf16.mxu0 0
      %3491 = vmatpush1.bf16.msra.mxu0 %v2854
      %3492 = vmatprep.subr.bf16.mxu0 0
      %3493 = vmatpush2.bf16.msra.mxu0 %v2959
      %3494 = vmatprep.subr.bf16.mxu0 0
      %3495 = vmatpush2.bf16.msra.mxu0 %v2952
      %3496 = vmatprep.subr.bf16.mxu0 0
      %3497 = vmatpush2.bf16.msra.mxu0 %v2945
      %3498 = vmatprep.subr.bf16.mxu0 0
      %3499 = vmatpush2.bf16.msra.mxu0 %v2938
      %3500 = vmatprep.subr.bf16.mxu0 0
      %3501 = vmatpush2.bf16.msra.mxu0 %v2931
      %3502 = vmatprep.subr.bf16.mxu0 0
      %3503 = vmatpush2.bf16.msra.mxu0 %v2924
      %3504 = vmatprep.subr.bf16.mxu0 0
      %3505 = vmatpush2.bf16.msra.mxu0 %v2917
      %3506 = vmatprep.subr.bf16.mxu0 0
      %3507 = vmatpush2.bf16.msra.mxu0 %v2910
      %3508 = vmatprep.mubr.bf16.mxu0 %v2248
      %3509 = vmatmul.mubr.bf16.gmra.mxu0 %v2247
      %v3510 = vpop.f32.mrf.mxu0
      %v3511 = vadd.f32 %v2239, %v3510
      %v3512 = vpop.f32.mrf.mxu0
      %v3513 = vpop.f32.mrf.mxu0
      %v3514 = vpop.f32.mrf.mxu0
      %3515 = vdwg.mxu0
      %3516 = vmatprep.subr.bf16.mxu0 0
      %3517 = vmatpush1.bf16.msra.mxu0 %v3015
      %3518 = vmatprep.subr.bf16.mxu0 0
      %3519 = vmatpush1.bf16.msra.mxu0 %v3008
      %3520 = vmatprep.subr.bf16.mxu0 0
      %3521 = vmatpush1.bf16.msra.mxu0 %v3001
      %3522 = vmatprep.subr.bf16.mxu0 0
      %3523 = vmatpush1.bf16.msra.mxu0 %v2994
      %3524 = vmatprep.subr.bf16.mxu0 0
      %3525 = vmatpush1.bf16.msra.mxu0 %v2987
      %3526 = vmatprep.subr.bf16.mxu0 0
      %3527 = vmatpush1.bf16.msra.mxu0 %v2980
      %3528 = vmatprep.subr.bf16.mxu0 0
      %3529 = vmatpush1.bf16.msra.mxu0 %v2973
      %3530 = vmatprep.subr.bf16.mxu0 0
      %3531 = vmatpush1.bf16.msra.mxu0 %v2966
      %3532 = vmatprep.subr.bf16.mxu0 0
      %3533 = vmatpush2.bf16.msra.mxu0 0
      %3534 = vmatprep.subr.bf16.mxu0 0
      %3535 = vmatpush2.bf16.msra.mxu0 0
      %3536 = vmatprep.subr.bf16.mxu0 0
      %3537 = vmatpush2.bf16.msra.mxu0 0
      %3538 = vmatprep.subr.bf16.mxu0 0
      %3539 = vmatpush2.bf16.msra.mxu0 0
      %3540 = vmatprep.subr.bf16.mxu0 0
      %3541 = vmatpush2.bf16.msra.mxu0 0
      %3542 = vmatprep.subr.bf16.mxu0 0
      %3543 = vmatpush2.bf16.msra.mxu0 %v3036
      %3544 = vmatprep.subr.bf16.mxu0 0
      %3545 = vmatpush2.bf16.msra.mxu0 %v3029
      %3546 = vmatprep.subr.bf16.mxu0 0
      %3547 = vmatpush2.bf16.msra.mxu0 %v3022
      %3548 = vmatprep.mubr.bf16.mxu0 %v3228
      %3549 = vmatmul.mubr.bf16.gmra.mxu0 %v2249
      %v3550 = vpop.f32.mrf.mxu0
      %v3551 = vadd.f32 %v3511, %v3550
      %v3552 = vpop.f32.mrf.mxu0
      %v3553 = vpop.f32.mrf.mxu0
      %v3554 = vpop.f32.mrf.mxu0
      %3555 = vdwg.mxu0
      %v3556 = vld [vmem:[%s3] sm:$0x7f]
      %v3558 = vlaneseq
      %v3559 = vshrl.u32 %v3558, 7
      %v3560 = vsub.s32 0, %v3559
      %v3561 = vrot.slane %v3556, %v3560
      %v3562 = vlaneseq
      %v3563 = vshrl.u32 %v3562, 7
      %v3564 = vsub.s32 1, %v3563
      %v3565 = vrot.slane %v3556, %v3564
      %v3566 = vlaneseq
      %v3567 = vshrl.u32 %v3566, 7
      %v3568 = vsub.s32 2, %v3567
      %v3569 = vrot.slane %v3556, %v3568
      %v3570 = vlaneseq
      %v3571 = vshrl.u32 %v3570, 7
      %v3572 = vsub.s32 3, %v3571
      %v3573 = vrot.slane %v3556, %v3572
      %v3574 = vlaneseq
      %v3575 = vshrl.u32 %v3574, 7
      %v3576 = vsub.s32 4, %v3575
      %v3577 = vrot.slane %v3556, %v3576
      %v3578 = vlaneseq
      %v3579 = vshrl.u32 %v3578, 7
      %v3580 = vsub.s32 5, %v3579
      %v3581 = vrot.slane %v3556, %v3580
      %v3582 = vlaneseq
      %v3583 = vshrl.u32 %v3582, 7
      %v3584 = vsub.s32 6, %v3583
      %v3585 = vrot.slane %v3556, %v3584
      %v3593 = vmul.f32 %v3306, %v3561
      %v3594 = vmul.f32 %v3308, %v3565
      %v3595 = vmul.f32 %v3388, %v3569
      %v3596 = vmul.f32 %v3390, %v3573
      %v3597 = vmul.f32 %v3470, %v3577
      %v3598 = vmul.f32 %v3472, %v3581
      %v3599 = vmul.f32 %v3551, %v3585
      %v3600 = vadd.f32 %v3593, %v3594
      %v3601 = vadd.f32 %v3600, %v3595
      %v3602 = vadd.f32 %v3601, %v3596
      %v3603 = vadd.f32 %v3602, %v3597
      %v3604 = vadd.f32 %v3603, %v3598
      %vm3605 = vcmask 80896
      %v3606 = vsel %vm3605, %v3599, 0.0
      %v3607 = vadd.f32 %v3604, %v3606
      %3608 = vadd.xlane.f32.xlu0 %v3607
      %v3609 = vpop.xlane.xlu0 %3608
      %v3610 = vmul.f32 %v3593, %v3306
      %v3611 = vmul.f32 %v3594, %v3308
      %v3612 = vmul.f32 %v3595, %v3388
      %v3613 = vmul.f32 %v3596, %v3390
      %v3614 = vmul.f32 %v3597, %v3470
      %v3615 = vmul.f32 %v3598, %v3472
      %v3616 = vmul.f32 %v3599, %v3551
      %v3617 = vadd.f32 %v3610, %v3611
      %v3618 = vadd.f32 %v3617, %v3612
      %v3619 = vadd.f32 %v3618, %v3613
      %v3620 = vadd.f32 %v3619, %v3614
      %v3621 = vadd.f32 %v3620, %v3615
      %v3622 = vsel %vm3605, %v3616, 0.0
      %v3623 = vadd.f32 %v3621, %v3622
      %3624 = vadd.xlane.f32.xlu0 %v3623
      %v3625 = vpop.xlane.xlu0 %3624
      %v3626 = vlaneseq
      %v3627 = vshrl.u32 %v3626, 7
      %vm3628 = vcmp.ge.s32.totalorder %v3627, 0
      %vm3629 = vcmp.lt.s32.totalorder %v3627, 2
      %vm3630 = vmand %vm3628, %vm3629
      %v3631 = vsel %vm3630, %v3609, 0.0
      %v3632 = vrot.slane %v3631, 4
      %v3633 = vadd.f32 %v3631, %v3632
      %v3634 = vrot.slane %v3633, 2
      %v3635 = vadd.f32 %v3633, %v3634
      %v3636 = vrot.slane %v3635, 1
      %v3637 = vadd.f32 %v3635, %v3636
      %v3638 = vsel %vm3630, %v3625, 0.0
      %v3639 = vrot.slane %v3638, 4
      %v3640 = vadd.f32 %v3638, %v3639
      %v3641 = vrot.slane %v3640, 2
      %v3642 = vadd.f32 %v3640, %v3641
      %v3643 = vrot.slane %v3642, 1
      %v3644 = vadd.f32 %v3642, %v3643
      %v3645 = vmul.f32 %v3637, 0.0009765625
      %v3646 = vmul.f32 %v3644, 0.0009765625
      %v3647 = vmul.f32 %v3645, %v3645
      %v3648 = vsub.f32 %v3646, %v3647
      %v3649 = vsel %vm3630, %v3645, 0.0
      %v3650 = vsel %vm3630, %v3648, 0.0
      %vm3651 = vcmp.ge.s32.totalorder %v3627, 2
      %vm3652 = vcmp.lt.s32.totalorder %v3627, 4
      %vm3653 = vmand %vm3651, %vm3652
      %v3654 = vsel %vm3653, %v3609, 0.0
      %v3655 = vrot.slane %v3654, 4
      %v3656 = vadd.f32 %v3654, %v3655
      %v3657 = vrot.slane %v3656, 2
      %v3658 = vadd.f32 %v3656, %v3657
      %v3659 = vrot.slane %v3658, 1
      %v3660 = vadd.f32 %v3658, %v3659
      %v3661 = vsel %vm3653, %v3625, 0.0
      %v3662 = vrot.slane %v3661, 4
      %v3663 = vadd.f32 %v3661, %v3662
      %v3664 = vrot.slane %v3663, 2
      %v3665 = vadd.f32 %v3663, %v3664
      %v3666 = vrot.slane %v3665, 1
      %v3667 = vadd.f32 %v3665, %v3666
      %v3668 = vmul.f32 %v3660, 0.0009765625
      %v3669 = vmul.f32 %v3667, 0.0009765625
      %v3670 = vmul.f32 %v3668, %v3668
      %v3671 = vsub.f32 %v3669, %v3670
      %v3672 = vsel %vm3653, %v3668, %v3649
      %v3673 = vsel %vm3653, %v3671, %v3650
      %vm3674 = vcmp.ge.s32.totalorder %v3627, 4
      %vm3675 = vcmp.lt.s32.totalorder %v3627, 6
      %vm3676 = vmand %vm3674, %vm3675
      %v3677 = vsel %vm3676, %v3609, 0.0
      %v3678 = vrot.slane %v3677, 4
      %v3679 = vadd.f32 %v3677, %v3678
      %v3680 = vrot.slane %v3679, 2
      %v3681 = vadd.f32 %v3679, %v3680
      %v3682 = vrot.slane %v3681, 1
      %v3683 = vadd.f32 %v3681, %v3682
      %v3684 = vsel %vm3676, %v3625, 0.0
      %v3685 = vrot.slane %v3684, 4
      %v3686 = vadd.f32 %v3684, %v3685
      %v3687 = vrot.slane %v3686, 2
      %v3688 = vadd.f32 %v3686, %v3687
      %v3689 = vrot.slane %v3688, 1
      %v3690 = vadd.f32 %v3688, %v3689
      %v3691 = vmul.f32 %v3683, 0.0009765625
      %v3692 = vmul.f32 %v3690, 0.0009765625
      %v3693 = vmul.f32 %v3691, %v3691
      %v3694 = vsub.f32 %v3692, %v3693
      %v3695 = vsel %vm3676, %v3691, %v3672
      %v3696 = vsel %vm3676, %v3694, %v3673
      %vm3697 = vcmp.ge.s32.totalorder %v3627, 6
      %vm3698 = vcmp.lt.s32.totalorder %v3627, 8
      %vm3699 = vmand %vm3697, %vm3698
      %v3700 = vsel %vm3699, %v3609, 0.0
      %v3701 = vrot.slane %v3700, 4
      %v3702 = vadd.f32 %v3700, %v3701
      %v3703 = vrot.slane %v3702, 2
      %v3704 = vadd.f32 %v3702, %v3703
      %v3705 = vrot.slane %v3704, 1
      %v3706 = vadd.f32 %v3704, %v3705
      %v3707 = vsel %vm3699, %v3625, 0.0
      %v3708 = vrot.slane %v3707, 4
      %v3709 = vadd.f32 %v3707, %v3708
      %v3710 = vrot.slane %v3709, 2
      %v3711 = vadd.f32 %v3709, %v3710
      %v3712 = vrot.slane %v3711, 1
      %v3713 = vadd.f32 %v3711, %v3712
      %v3714 = vmul.f32 %v3706, 0.0009765625
      %v3715 = vmul.f32 %v3713, 0.0009765625
      %v3716 = vmul.f32 %v3714, %v3714
      %v3717 = vsub.f32 %v3715, %v3716
      %v3718 = vsel %vm3699, %v3714, %v3695
      %v3719 = vsel %vm3699, %v3717, %v3696
      %v3720 = vadd.f32 %v3719, 1e-05
      %v3721 = vrsqrt.pop %v3720
      %v3722 = vmul.f32 %v2235, %v3721
      %v3723 = vmul.f32 %v3718, %v3722
      %3725 = vrot.lane.b32.xlu0 %v3723, 1
      %v3726 = vpop.permute.xlu0 %3725
      %v3728 = vsub.f32 %v2235, %v3726
      %3730 = vset.pattern.permute.xlu0 1
      %3731 = vperm.xlu0 %3730, %v3722
      %v3732 = vpop.permute.xlu0 %3731
      %v3734 = vmul.f32 %v3306, %v3732
      %v3735 = vmul.f32 %v3308, %v3732
      %v3736 = vmul.f32 %v3388, %v3732
      %v3737 = vmul.f32 %v3390, %v3732
      %v3738 = vmul.f32 %v3470, %v3732
      %v3739 = vmul.f32 %v3472, %v3732
      %v3740 = vmul.f32 %v3551, %v3732
      %3742 = vset.pattern.permute.xlu0 2
      %3743 = vperm.xlu0 %3742, %v3728
      %v3744 = vpop.permute.xlu0 %3743
      %v3746 = vadd.f32 %v3734, %v3744
      %v3747 = vadd.f32 %v3735, %v3744
      %v3748 = vadd.f32 %v3736, %v3744
      %v3749 = vadd.f32 %v3737, %v3744
      %v3750 = vadd.f32 %v3738, %v3744
      %v3751 = vadd.f32 %v3739, %v3744
      %v3752 = vadd.f32 %v3740, %v3744
      %v3753 = vmax.f32 %v3746, 0.0
      %v3754 = vmax.f32 %v3747, 0.0
      %v3755 = vmax.f32 %v3748, 0.0
      %v3756 = vmax.f32 %v3749, 0.0
      %v3757 = vmax.f32 %v3750, 0.0
      %v3758 = vmax.f32 %v3751, 0.0
      %v3759 = vmax.f32 %v3752, 0.0
      %v3760 = vmul.f32 %v3753, %v3561
      %v3761 = vmul.f32 %v3754, %v3565
      %v3762 = vmul.f32 %v3755, %v3569
      %v3763 = vmul.f32 %v3756, %v3573
      %v3764 = vmul.f32 %v3757, %v3577
      %v3765 = vmul.f32 %v3758, %v3581
      %v3766 = vmul.f32 %v3759, %v3585
      %3767 = vst [vmem:[%s197] sm:$0xff] %v3760
      %3768 = vst [vmem:[%s197 + $0x8] sm:$0xff] %v3761
      %3769 = vst [vmem:[%s197 + $0x10] sm:$0xff] %v3762
      %3770 = vst [vmem:[%s197 + $0x18] sm:$0xff] %v3763
      %3771 = vst [vmem:[%s197 + $0x20] sm:$0xff] %v3764
      %3772 = vst [vmem:[%s197 + $0x28] sm:$0xff] %v3765
      %3773 = vst.msk [vmem:[%s197 + $0x30] sm:$0xff] %vm3605, %v3766
      %p3774 = scmp.lt.s32.totalorder %s15, 1
      %s3775 = scalar_select %p3774, %s15, 1
      %s3776 = smul.addr %s3775, 7
      %s3777 = smul.addr %s3776, 8
      %s3778 = scalar_lea.vmem %s4, %s3777
      // Predicated region
      $region37: #{single_conv_forward.1} parent=35 // pred_check
        %p3779 = pneg %p122
      $region38: #{single_conv_forward.1} parent=35 // pred_check_branch
        %3781 = sbr.rel (%p3779) target = $region40
      $region39: #{single_conv_forward.1} parent=35 // pred_region
        _
      $region40: #{single_conv_forward.1} parent=35 // pred_fallthru
        _
    $region36: #{single_conv_forward.1} parent=5 // pred_fallthru
      _
    %p3782 = scmp.le.s32.totalorder 2, %s10
    // Predicated region
    $region41: #{single_conv_forward.1} parent=5 // pred_check
      %p3783 = pneg %p3782
    $region42: #{single_conv_forward.1} parent=5 // pred_check_branch
      %3785 = sbr.rel (%p3783) target = $region44
    $region43: #{single_conv_forward.1} parent=5 // pred_region
      %s3786 = ssub.s32 %s10, 2
      // Predicated region
      $region45: #{single_conv_forward.1} parent=43 // pred_check
        %p3787 = pneg %p128
      $region46: #{single_conv_forward.1} parent=43 // pred_check_branch
        %3789 = sbr.rel (%p3787) target = $region48
      $region47: #{single_conv_forward.1} parent=43 // pred_region
        %p3790 = scmp.lt.s32.totalorder %s16, 1
        %s3791 = scalar_select %p3790, %s16, 1
        %s3792 = smul.addr %s3791, 7
        %s3793 = smul.addr %s3792, 8
        %s3794 = scalar_lea.vmem %s4, %s3793
      $region48: #{single_conv_forward.1} parent=43 // pred_fallthru
        _
    $region44: #{single_conv_forward.1} parent=5 // pred_fallthru
      _
  $region6: #{single_conv_forward.1} parent=0 // loop_footer
    %s14 = sadd.s32 1, %s10
  $region7: #{single_conv_forward.1} parent=0 // loop_footer_branch
    %9 = sbr.rel target = $region3
  $region8: #{single_conv_forward.1} parent=0 // loop_exit
    _

</llo_original>
